<compile_context>
chip_gen: v7x
topology: tpu7x:2x2x1
jax: 0.10.0
libtpu: 0.0.40
codegen_flags: <defaults>
</compile_context>

<pallas_src>
import functools

import jax
import jax.numpy as jnp
from jax.experimental import pallas as pl
from jax.experimental.pallas import tpu as pltpu


_PAD = 3                              # largest separable kernel is 7 -> pad 3
_HDR = 16                             # header rows of the shared stacked-x buffer
_D_ORDER = (0, -1, 1, -2, 2, -3, 3)   # tap order: a prefix of length k covers a k-tap conv


# ----------------------------------------------------------------------------
# Exact GELU (erf) built only from ops guaranteed to lower in Mosaic.
# ----------------------------------------------------------------------------
def _erf(x):
    # Abramowitz & Stegun 7.1.26, max abs error ~1.5e-7.
    p = 0.3275911
    a1, a2, a3, a4, a5 = (0.254829592, -0.284496736, 1.421413741,
                          -1.453152027, 1.061405429)
    ax = jnp.abs(x)
    t = 1.0 / (1.0 + p * ax)
    poly = ((((a5 * t + a4) * t + a3) * t + a2) * t + a1) * t
    e = 1.0 - poly * jnp.exp(-ax * ax)
    return jnp.where(x >= 0, e, -e)


def _gelu_exact(x):
    return 0.5 * x * (1.0 + _erf(x * 0.7071067811865476))


# ----------------------------------------------------------------------------
# The fused GCM kernel (one grid step per batch element).
# ----------------------------------------------------------------------------
def _gcm_kernel(x_ref,
                whd_ref, w1_ref, w2_ref, w3_ref,
                w1h_ref, b1h_ref, w2h_ref, b2h_ref, w3h_ref, b3h_ref,
                fc1wt_ref, fc1b_ref, fc2w_ref, fc2b_ref,
                o_ref,
                halo_ref, stkw_ref, stkh_ref,
                *, H, W, off):
    bf16 = jnp.bfloat16
    cin = x_ref.shape[1]
    cout = o_ref.shape[1]
    hw = H * W
    hc = halo_ref.shape[0]

    # ---- zero only the halo borders; the centre is always fully overwritten.
    # (Deliberately NOT gated on program_id==0: megacore-safe.)
    halo_ref[:, :off] = jnp.zeros((hc, off), bf16)
    halo_ref[:, off + hw:] = jnp.zeros((hc, off), bf16)

    x = x_ref[0]                                       # (cin, hw) bf16
    halo_ref[:cin, off:off + hw] = x

    # ---- shared stacked input for both 1x1 heads and every (1,k) conv ------
    # rows [0.._HDR): [ones, mask(-1), mask(+1), mask(-2), mask(+2), mask(-3),
    #                  mask(+3), zeros...]  -- the ones/mask rows carry the
    #                  folded (boundary-exact) biases; then 7 blocks of cin
    #                  rows: x shifted along W by d in _D_ORDER, edge-masked.
    wcol = jax.lax.broadcasted_iota(jnp.int32, (1, hw), 1) % W
    stkw_ref[0:1, :] = jnp.ones((1, hw), bf16)
    stkw_ref[7:_HDR, :] = jnp.zeros((_HDR - 7, hw), bf16)
    stkw_ref[_HDR:_HDR + cin, :] = x                   # tap d = 0
    for i, d in enumerate(_D_ORDER[1:]):
        mask = ((wcol + d >= 0) & (wcol + d < W)).astype(bf16)       # (1, hw)
        stkw_ref[1 + i:2 + i, :] = mask                # mask row (bias support)
        r0 = _HDR + (1 + i) * cin
        stkw_ref[r0:r0 + cin, :] = halo_ref[:cin, off + d:off + d + hw] * mask

    def w_stage(w_ref):
        """1x1 heads / folded (1,k) convs: one matmul on a prefix of the stack."""
        kk = w_ref.shape[1]
        return jnp.dot(w_ref[...], stkw_ref[:kk, :],
                       preferred_element_type=jnp.float32)

    def h_stage(y, w_ref, b_ref):
        """(k,1) conv along H via ONE stacked matmul over k shifted copies."""
        k = w_ref.shape[1] // cout
        p = k // 2
        yb = y.astype(bf16)
        halo_ref[:cout, off:off + hw] = yb
        for t in range(k):
            d = t - p
            if d == 0:
                stkh_ref[t * cout:(t + 1) * cout, :] = yb
            else:
                stkh_ref[t * cout:(t + 1) * cout, :] = \
                    halo_ref[:cout, off + d * W:off + d * W + hw]
        return jnp.dot(w_ref[...], stkh_ref[:k * cout, :],
                       preferred_element_type=jnp.float32) + b_ref[...]

    heads = w_stage(whd_ref)                           # (2*cout, hw): [branch0 | conv_res]
    x0 = heads[:cout]
    res = heads[cout:]
    y1 = h_stage(w_stage(w1_ref), w1h_ref, b1h_ref)    # 1x1 + (1,3) folded, then (3,1)
    y2 = h_stage(w_stage(w2_ref), w2h_ref, b2h_ref)    # k = 5
    y3 = h_stage(w_stage(w3_ref), w3h_ref, b3h_ref)    # k = 7

    def se_gate(y):
        """Shared SE: sigmoid(fc2(gelu(fc1(mean(y))))) -> (cout, 1) f32."""
        m = jnp.mean(y, axis=1, keepdims=True)                                   # (cout, 1)
        h = jnp.sum(fc1wt_ref[...] * m, axis=0, keepdims=True) + fc1b_ref[...]   # (1, cr)
        h = _gelu_exact(h)
        g = jnp.sum(fc2w_ref[...] * h, axis=1, keepdims=True) + fc2b_ref[...]    # (cout, 1)
        return 1.0 / (1.0 + jnp.exp(-g))

    out = (se_gate(x0) * x0 + se_gate(y1) * y1 + se_gate(y2) * y2
           + se_gate(y3) * y3 + res)
    o_ref[0] = jnp.maximum(out, 0.0).astype(o_ref.dtype)


# ----------------------------------------------------------------------------
# Wrapper: NCHW in/out, one pallas_call for the whole module.
# ----------------------------------------------------------------------------
def gcm_forward(x_nchw, kp):
    B, cin, H, W = x_nchw.shape
    cout = kp["w1h"].shape[0]
    hw = H * W
    off = ((_PAD * W + 127) // 128) * 128            # lane-aligned halo centre
    x3 = x_nchw.reshape(B, cin, hw).astype(jnp.bfloat16)   # (C, HW): HW on lanes

    arg_order = ("whd", "w1", "w2", "w3",
                 "w1h", "b1h", "w2h", "b2h", "w3h", "b3h",
                 "fc1wt", "fc1b", "fc2w", "fc2b")
    const = lambda b: (0, 0)
    in_specs = [pl.BlockSpec((1, cin, hw), lambda b: (b, 0, 0))]
    in_specs += [pl.BlockSpec(kp[n].shape, const) for n in arg_order]

    hc = max(cin, cout)
    out = pl.pallas_call(
        functools.partial(_gcm_kernel, H=H, W=W, off=off),
        out_shape=jax.ShapeDtypeStruct((B, cout, hw), jnp.bfloat16),
        grid=(B,),
        in_specs=in_specs,
        out_specs=pl.BlockSpec((1, cout, hw), lambda b: (b, 0, 0)),
        scratch_shapes=[
            pltpu.VMEM((hc, hw + 2 * off), jnp.bfloat16),     # halo (W and H shifts)
            pltpu.VMEM((_HDR + 7 * cin, hw), jnp.bfloat16),   # shared stacked-x taps
            pltpu.VMEM((7 * cout, hw), jnp.bfloat16),         # per-branch stacked taps
        ],
        compiler_params=pltpu.CompilerParams(
            dimension_semantics=("parallel",),
            vmem_limit_bytes=64 * 1024 * 1024),
    )(x3, *[kp[n] for n in arg_order])
    return out.reshape(B, cout, H, W)


# ----------------------------------------------------------------------------
# Deterministic synthetic parameters (torch layouts).
# ----------------------------------------------------------------------------
def make_gcm_params(key, cin, cout):
    keys = iter(jax.random.split(key, 40))
    nk = lambda: next(keys)
    conv = lambda shape: 0.1 * jax.random.normal(nk(), shape, jnp.float32)

    def fold_bn(c, eps=1e-5):
        k1, k2, k3, k4 = jax.random.split(nk(), 4)
        gamma = 1.0 + 0.1 * jax.random.normal(k1, (c,), jnp.float32)
        beta = 0.05 * jax.random.normal(k2, (c,), jnp.float32)
        mean = 0.02 * jax.random.normal(k3, (c,), jnp.float32)
        var = 1.0 + 0.1 * jax.random.uniform(k4, (c,), jnp.float32)
        scale = gamma / jnp.sqrt(var + eps)
        bias = beta - mean * scale
        return scale, bias

    p = {}
    p["b0_w"] = conv((cout, cin, 1, 1)); p["b0_s"], p["b0_b"] = fold_bn(cout)
    p["b1_w"] = conv((cout, cin, 1, 1)); p["b1_s"], p["b1_b"] = fold_bn(cout)
    p["b1_1_w"] = conv((cout, cout, 1, 3)); p["b1_1_s"], p["b1_1_b"] = fold_bn(cout)
    p["b1_2_w"] = conv((cout, cout, 3, 1)); p["b1_2_s"], p["b1_2_b"] = fold_bn(cout)
    p["b2_w"] = conv((cout, cin, 1, 1)); p["b2_s"], p["b2_b"] = fold_bn(cout)
    p["b2_1_w"] = conv((cout, cout, 1, 5)); p["b2_1_s"], p["b2_1_b"] = fold_bn(cout)
    p["b2_2_w"] = conv((cout, cout, 5, 1)); p["b2_2_s"], p["b2_2_b"] = fold_bn(cout)
    p["b3_w"] = conv((cout, cin, 1, 1)); p["b3_s"], p["b3_b"] = fold_bn(cout)
    p["b3_1_w"] = conv((cout, cout, 1, 7)); p["b3_1_s"], p["b3_1_b"] = fold_bn(cout)
    p["b3_2_w"] = conv((cout, cout, 7, 1)); p["b3_2_s"], p["b3_2_b"] = fold_bn(cout)
    cr = max(cout // 4, 1)
    p["fc1_w"] = conv((cr, cout)); p["fc1_b"] = 0.05 * jax.random.normal(nk(), (cr,), jnp.float32)
    p["fc2_w"] = conv((cout, cr)); p["fc2_b"] = 0.05 * jax.random.normal(nk(), (cout,), jnp.float32)
    p["res_w"] = conv((cout, cin, 1, 1))
    p["res_b"] = 0.05 * jax.random.normal(nk(), (cout,), jnp.float32)
    return p


# ----------------------------------------------------------------------------
# Fold BN + 1x1 heads into the separable convs; pack kernel-ready layouts.
# ----------------------------------------------------------------------------
def prepare_kernel_params(p):
    cout, cin = p["b0_w"].shape[0], p["b0_w"].shape[1]

    def w_stage(head_w, head_s, head_b, sep_w, sep_s, sep_b):
        """Fold 1x1 head (+BN) into the (1,k) conv (+BN): (cout, _HDR + k*cin)."""
        k = sep_w.shape[3]
        pad = k // 2
        wk = sep_w.reshape(cout, cout, k)
        hm = head_w.reshape(cout, cin) * head_s[:, None]          # diag(s_h) W_h
        Wm = jnp.zeros((cout, _HDR + k * cin), jnp.float32)
        Wm = Wm.at[:, 0].add(sep_b)                               # sep BN bias on "ones" row
        for j in range(k):
            d = j - pad
            blk = _D_ORDER.index(d)                               # block == header row index
            A = sep_s[:, None] * (wk[:, :, j] @ hm)               # folded tap weight
            cvec = sep_s * (wk[:, :, j] @ head_b)                 # head bias through tap j
            Wm = Wm.at[:, _HDR + blk * cin:_HDR + (blk + 1) * cin].set(A)
            Wm = Wm.at[:, blk].add(cvec)                          # mask row -> boundary exact
        return Wm.astype(jnp.bfloat16)

    def h_stage(sep_w, sep_s, sep_b):
        """(k,1) conv (+BN) as a stacked (cout, k*cout) weight + (cout,1) bias."""
        k = sep_w.shape[2]
        wk = sep_w.reshape(cout, cout, k)
        Wm = jnp.concatenate([sep_s[:, None] * wk[:, :, j] for j in range(k)], axis=1)
        return Wm.astype(jnp.bfloat16), sep_b.reshape(cout, 1).astype(jnp.float32)

    # branch0 (1x1 + BN) and conv_res (1x1 with bias), batched; bias on the ones row.
    whd = jnp.zeros((2 * cout, _HDR + cin), jnp.float32)
    whd = whd.at[:cout, _HDR:].set(p["b0_w"].reshape(cout, cin) * p["b0_s"][:, None])
    whd = whd.at[:cout, 0].set(p["b0_b"])
    whd = whd.at[cout:, _HDR:].set(p["res_w"].reshape(cout, cin))
    whd = whd.at[cout:, 0].set(p["res_b"])

    w1 = w_stage(p["b1_w"], p["b1_s"], p["b1_b"], p["b1_1_w"], p["b1_1_s"], p["b1_1_b"])
    w2 = w_stage(p["b2_w"], p["b2_s"], p["b2_b"], p["b2_1_w"], p["b2_1_s"], p["b2_1_b"])
    w3 = w_stage(p["b3_w"], p["b3_s"], p["b3_b"], p["b3_1_w"], p["b3_1_s"], p["b3_1_b"])
    w1h, b1h = h_stage(p["b1_2_w"], p["b1_2_s"], p["b1_2_b"])
    w2h, b2h = h_stage(p["b2_2_w"], p["b2_2_s"], p["b2_2_b"])
    w3h, b3h = h_stage(p["b3_2_w"], p["b3_2_s"], p["b3_2_b"])

    cr = p["fc1_w"].shape[0]
    return {
        "whd": whd.astype(jnp.bfloat16),
        "w1": w1, "w2": w2, "w3": w3,
        "w1h": w1h, "b1h": b1h, "w2h": w2h, "b2h": b2h, "w3h": w3h, "b3h": b3h,
        "fc1wt": p["fc1_w"].T.astype(jnp.float32),                # (cout, cr)
        "fc1b": p["fc1_b"].reshape(1, cr).astype(jnp.float32),    # (1, cr)
        "fc2w": p["fc2_w"].astype(jnp.float32),                   # (cout, cr)
        "fc2b": p["fc2_b"].reshape(cout, 1).astype(jnp.float32),  # (cout, 1)
    }


# ----------------------------------------------------------------------------
# Pure-JAX float32 reference (loose correctness check).
# ----------------------------------------------------------------------------
def gcm_reference(x, p):
    dn = ("NCHW", "OIHW", "NCHW")
    prec = jax.lax.Precision.HIGHEST

    def conv(x, w, pad):
        return jax.lax.conv_general_dilated(x, w, (1, 1), pad,
                                            dimension_numbers=dn, precision=prec)

    def bconv(x, w, s, b, pad=((0, 0), (0, 0))):
        y = conv(x, w, pad)
        return y * s[None, :, None, None] + b[None, :, None, None]

    def se(t):
        m = jnp.mean(t, axis=(2, 3))
        h = jax.nn.gelu(m @ p["fc1_w"].T + p["fc1_b"], approximate=False)
        g = jax.nn.sigmoid(h @ p["fc2_w"].T + p["fc2_b"])
        return t * g[:, :, None, None]

    x0 = se(bconv(x, p["b0_w"], p["b0_s"], p["b0_b"]))
    t = bconv(x, p["b1_w"], p["b1_s"], p["b1_b"])
    t = bconv(t, p["b1_1_w"], p["b1_1_s"], p["b1_1_b"], ((0, 0), (1, 1)))
    t = bconv(t, p["b1_2_w"], p["b1_2_s"], p["b1_2_b"], ((1, 1), (0, 0)))
    x1 = se(t)
    t = bconv(x, p["b2_w"], p["b2_s"], p["b2_b"])
    t = bconv(t, p["b2_1_w"], p["b2_1_s"], p["b2_1_b"], ((0, 0), (2, 2)))
    t = bconv(t, p["b2_2_w"], p["b2_2_s"], p["b2_2_b"], ((2, 2), (0, 0)))
    x2 = se(t)
    t = bconv(x, p["b3_w"], p["b3_s"], p["b3_b"])
    t = bconv(t, p["b3_1_w"], p["b3_1_s"], p["b3_1_b"], ((0, 0), (3, 3)))
    t = bconv(t, p["b3_2_w"], p["b3_2_s"], p["b3_2_b"], ((3, 3), (0, 0)))
    x3 = se(t)
    res = conv(x, p["res_w"], ((0, 0), (0, 0))) + p["res_b"][None, :, None, None]
    return jax.nn.relu(x0 + x1 + x2 + x3 + res)


if __name__ == "__main__":
    key = jax.random.PRNGKey(0)
    k_x, k_p = jax.random.split(key)

    B, Cin, Cout, H, W = 2, 16, 16, 16, 16
    x = jax.random.normal(k_x, (B, Cin, H, W), jnp.float32)
    raw = make_gcm_params(k_p, Cin, Cout)
    kp = prepare_kernel_params(raw)

    out = jax.jit(gcm_forward)(x, kp)
    jax.block_until_ready(out)
    assert out.shape == (B, Cout, H, W), out.shape

    out_f32 = out.astype(jnp.float32)
    assert bool(jnp.all(out_f32 >= 0.0))            # ReLU output
    assert bool(jnp.all(jnp.isfinite(out_f32)))

    # Loose check vs the f32 reference (bf16 matmul/intermediate/output drift).
    ref = gcm_reference(x, raw)
    err = float(jnp.max(jnp.abs(out_f32 - ref)))
    assert err < 1e-1, f"max abs err vs reference: {err}"

    print("KERNEL_OK")
</pallas_src>

<mosaic_0001>
module attributes {stable_mosaic.version = 11 : i64} {
  func.func @_gcm_kernel(%arg0: i32, %arg1: memref<1x16x256xbf16, #tpu.memory_space<vmem>>, %arg2: memref<32x32xbf16, #tpu.memory_space<vmem>>, %arg3: memref<16x64xbf16, #tpu.memory_space<vmem>>, %arg4: memref<16x96xbf16, #tpu.memory_space<vmem>>, %arg5: memref<16x128xbf16, #tpu.memory_space<vmem>>, %arg6: memref<16x48xbf16, #tpu.memory_space<vmem>>, %arg7: memref<16x1xf32, #tpu.memory_space<vmem>>, %arg8: memref<16x80xbf16, #tpu.memory_space<vmem>>, %arg9: memref<16x1xf32, #tpu.memory_space<vmem>>, %arg10: memref<16x112xbf16, #tpu.memory_space<vmem>>, %arg11: memref<16x1xf32, #tpu.memory_space<vmem>>, %arg12: memref<16x4xf32, #tpu.memory_space<vmem>>, %arg13: memref<1x4xf32, #tpu.memory_space<vmem>>, %arg14: memref<16x4xf32, #tpu.memory_space<vmem>>, %arg15: memref<16x1xf32, #tpu.memory_space<vmem>>, %arg16: memref<1x16x256xbf16, #tpu.memory_space<vmem>>, %arg17: memref<16x512xbf16, #tpu.memory_space<vmem>>, %arg18: memref<128x256xbf16, #tpu.memory_space<vmem>>, %arg19: memref<112x256xbf16, #tpu.memory_space<vmem>>) attributes {dimension_semantics = [#tpu.dimension_semantics<parallel>], iteration_bounds = array<i64: 2>, scalar_prefetch = 0 : i64, scratch_operands = 3 : i64, tpu.core_type = #tpu.core_type<tc>, window_params = [{transform_indices = @transform_0, window_bounds = array<i64: 1, 16, 256>}, {pipeline_mode = #tpu.pipeline_mode<synchronous>, transform_indices = @transform_1, window_bounds = array<i64: 32, 32>}, {pipeline_mode = #tpu.pipeline_mode<synchronous>, transform_indices = @transform_2, window_bounds = array<i64: 16, 64>}, {pipeline_mode = #tpu.pipeline_mode<synchronous>, transform_indices = @transform_3, window_bounds = array<i64: 16, 96>}, {pipeline_mode = #tpu.pipeline_mode<synchronous>, transform_indices = @transform_4, window_bounds = array<i64: 16, 128>}, {pipeline_mode = #tpu.pipeline_mode<synchronous>, transform_indices = @transform_5, window_bounds = array<i64: 16, 48>}, {pipeline_mode = #tpu.pipeline_mode<synchronous>, transform_indices = @transform_6, window_bounds = array<i64: 16, 1>}, {pipeline_mode = #tpu.pipeline_mode<synchronous>, transform_indices = @transform_7, window_bounds = array<i64: 16, 80>}, {pipeline_mode = #tpu.pipeline_mode<synchronous>, transform_indices = @transform_8, window_bounds = array<i64: 16, 1>}, {pipeline_mode = #tpu.pipeline_mode<synchronous>, transform_indices = @transform_9, window_bounds = array<i64: 16, 112>}, {pipeline_mode = #tpu.pipeline_mode<synchronous>, transform_indices = @transform_10, window_bounds = array<i64: 16, 1>}, {pipeline_mode = #tpu.pipeline_mode<synchronous>, transform_indices = @transform_11, window_bounds = array<i64: 16, 4>}, {pipeline_mode = #tpu.pipeline_mode<synchronous>, transform_indices = @transform_12, window_bounds = array<i64: 1, 4>}, {pipeline_mode = #tpu.pipeline_mode<synchronous>, transform_indices = @transform_13, window_bounds = array<i64: 16, 4>}, {pipeline_mode = #tpu.pipeline_mode<synchronous>, transform_indices = @transform_14, window_bounds = array<i64: 16, 1>}, {transform_indices = @transform_15, window_bounds = array<i64: 1, 16, 256>}]} {
    %cst = arith.constant 0.000000e+00 : bf16
    %0 = vector.broadcast %cst : bf16 to vector<16x128xbf16>
    %c0 = arith.constant 0 : index
    %c0_0 = arith.constant 0 : index
    %1 = vector.load %arg17[%c0, %c0_0] : memref<16x512xbf16, #tpu.memory_space<vmem>>, vector<16x128xbf16>
    tpu.vector_store %arg17[%c0, %c0_0], %0 {strides = array<i32>} : memref<16x512xbf16, #tpu.memory_space<vmem>>, vector<16x128xbf16>,
    %cst_1 = arith.constant 0.000000e+00 : bf16
    %2 = vector.broadcast %cst_1 : bf16 to vector<16x128xbf16>
    %c0_2 = arith.constant 0 : index
    %c384 = arith.constant 384 : index
    %3 = vector.load %arg17[%c0_2, %c384] : memref<16x512xbf16, #tpu.memory_space<vmem>>, vector<16x128xbf16>
    tpu.vector_store %arg17[%c0_2, %c384], %2 {strides = array<i32>} : memref<16x512xbf16, #tpu.memory_space<vmem>>, vector<16x128xbf16>,
    %c0_3 = arith.constant 0 : index
    %c0_4 = arith.constant 0 : index
    %c0_5 = arith.constant 0 : index
    %4 = vector.load %arg1[%c0_3, %c0_4, %c0_5] : memref<1x16x256xbf16, #tpu.memory_space<vmem>>, vector<1x16x256xbf16>
    %5 = vector.shape_cast %4 : vector<1x16x256xbf16> to vector<16x256xbf16>
    %c0_6 = arith.constant 0 : index
    %c128 = arith.constant 128 : index
    %6 = vector.load %arg17[%c0_6, %c128] : memref<16x512xbf16, #tpu.memory_space<vmem>>, vector<16x256xbf16>
    tpu.vector_store %arg17[%c0_6, %c128], %5 {strides = array<i32>} : memref<16x512xbf16, #tpu.memory_space<vmem>>, vector<16x256xbf16>,
    %7 = tpu.iota {dimensions = array<i32: 1>} : vector<1x256xi32>
    %c16_i32 = arith.constant 16 : i32
    %c0_i32 = arith.constant 0 : i32
    %8 = arith.cmpi eq, %c16_i32, %c0_i32 : i32
    %c1_i32 = arith.constant 1 : i32
    %9 = arith.select %8, %c1_i32, %c16_i32 : i32
    %10 = vector.broadcast %9 : i32 to vector<1x256xi32>
    %11 = arith.remsi %7, %10 : vector<1x256xi32>
    %c0_i32_7 = arith.constant 0 : i32
    %12 = vector.broadcast %c0_i32_7 : i32 to vector<1x256xi32>
    %13 = arith.cmpi ne, %11, %12 : vector<1x256xi32>
    %c0_i32_8 = arith.constant 0 : i32
    %14 = vector.broadcast %c0_i32_8 : i32 to vector<1x256xi32>
    %15 = arith.cmpi slt, %11, %14 : vector<1x256xi32>
    %c0_i32_9 = arith.constant 0 : i32
    %16 = arith.cmpi slt, %9, %c0_i32_9 : i32
    %17 = vector.broadcast %16 : i1 to vector<1x256xi1>
    %18 = vector.broadcast %17 : vector<1x256xi1> to vector<1x256xi1>
    %19 = arith.xori %15, %18 : vector<1x256xi1>
    %20 = arith.andi %19, %13 : vector<1x256xi1>
    %21 = vector.broadcast %9 : i32 to vector<1x256xi32>
    %22 = arith.addi %11, %21 : vector<1x256xi32>
    %23 = arith.select %20, %22, %11 : vector<1x256xi1>, vector<1x256xi32>
    %cst_10 = arith.constant 1.000000e+00 : bf16
    %24 = vector.broadcast %cst_10 : bf16 to vector<1x256xbf16>
    %c0_11 = arith.constant 0 : index
    %c0_12 = arith.constant 0 : index
    %25 = vector.load %arg18[%c0_11, %c0_12] : memref<128x256xbf16, #tpu.memory_space<vmem>>, vector<1x256xbf16>
    tpu.vector_store %arg18[%c0_11, %c0_12], %24 {strides = array<i32>} : memref<128x256xbf16, #tpu.memory_space<vmem>>, vector<1x256xbf16>,
    %cst_13 = arith.constant 0.000000e+00 : bf16
    %26 = vector.broadcast %cst_13 : bf16 to vector<9x256xbf16>
    %c7 = arith.constant 7 : index
    %c0_14 = arith.constant 0 : index
    %27 = vector.load %arg18[%c7, %c0_14] : memref<128x256xbf16, #tpu.memory_space<vmem>>, vector<9x256xbf16>
    tpu.vector_store %arg18[%c7, %c0_14], %26 {strides = array<i32>} : memref<128x256xbf16, #tpu.memory_space<vmem>>, vector<9x256xbf16>,
    %c16 = arith.constant 16 : index
    %c0_15 = arith.constant 0 : index
    %28 = vector.load %arg18[%c16, %c0_15] : memref<128x256xbf16, #tpu.memory_space<vmem>>, vector<16x256xbf16>
    tpu.vector_store %arg18[%c16, %c0_15], %5 {strides = array<i32>} : memref<128x256xbf16, #tpu.memory_space<vmem>>, vector<16x256xbf16>,
    %c-1_i32 = arith.constant -1 : i32
    %29 = vector.broadcast %c-1_i32 : i32 to vector<1x256xi32>
    %30 = arith.addi %23, %29 : vector<1x256xi32>
    %c0_i32_16 = arith.constant 0 : i32
    %31 = vector.broadcast %c0_i32_16 : i32 to vector<1x256xi32>
    %32 = arith.cmpi sge, %30, %31 : vector<1x256xi32>
    %c-1_i32_17 = arith.constant -1 : i32
    %33 = vector.broadcast %c-1_i32_17 : i32 to vector<1x256xi32>
    %34 = arith.addi %23, %33 : vector<1x256xi32>
    %c16_i32_18 = arith.constant 16 : i32
    %35 = vector.broadcast %c16_i32_18 : i32 to vector<1x256xi32>
    %36 = arith.cmpi slt, %34, %35 : vector<1x256xi32>
    %37 = arith.andi %32, %36 : vector<1x256xi1>
    %38 = arith.extui %37 : vector<1x256xi1> to vector<1x256xi32>
    %39 = arith.sitofp %38 : vector<1x256xi32> to vector<1x256xf32>
    %40 = arith.truncf %39 : vector<1x256xf32> to vector<1x256xbf16>
    %c1 = arith.constant 1 : index
    %c0_19 = arith.constant 0 : index
    %41 = vector.load %arg18[%c1, %c0_19] : memref<128x256xbf16, #tpu.memory_space<vmem>>, vector<1x256xbf16>
    tpu.vector_store %arg18[%c1, %c0_19], %40 {strides = array<i32>} : memref<128x256xbf16, #tpu.memory_space<vmem>>, vector<1x256xbf16>,
    %c0_20 = arith.constant 0 : index
    %c127 = arith.constant 127 : index
    %42 = vector.load %arg17[%c0_20, %c127] : memref<16x512xbf16, #tpu.memory_space<vmem>>, vector<16x256xbf16>
    %43 = vector.broadcast %40 : vector<1x256xbf16> to vector<16x256xbf16>
    %44 = arith.mulf %42, %43 : vector<16x256xbf16>
    %c32 = arith.constant 32 : index
    %c0_21 = arith.constant 0 : index
    %45 = vector.load %arg18[%c32, %c0_21] : memref<128x256xbf16, #tpu.memory_space<vmem>>, vector<16x256xbf16>
    tpu.vector_store %arg18[%c32, %c0_21], %44 {strides = array<i32>} : memref<128x256xbf16, #tpu.memory_space<vmem>>, vector<16x256xbf16>,
    %c1_i32_22 = arith.constant 1 : i32
    %46 = vector.broadcast %c1_i32_22 : i32 to vector<1x256xi32>
    %47 = arith.addi %23, %46 : vector<1x256xi32>
    %c0_i32_23 = arith.constant 0 : i32
    %48 = vector.broadcast %c0_i32_23 : i32 to vector<1x256xi32>
    %49 = arith.cmpi sge, %47, %48 : vector<1x256xi32>
    %c1_i32_24 = arith.constant 1 : i32
    %50 = vector.broadcast %c1_i32_24 : i32 to vector<1x256xi32>
    %51 = arith.addi %23, %50 : vector<1x256xi32>
    %c16_i32_25 = arith.constant 16 : i32
    %52 = vector.broadcast %c16_i32_25 : i32 to vector<1x256xi32>
    %53 = arith.cmpi slt, %51, %52 : vector<1x256xi32>
    %54 = arith.andi %49, %53 : vector<1x256xi1>
    %55 = arith.extui %54 : vector<1x256xi1> to vector<1x256xi32>
    %56 = arith.sitofp %55 : vector<1x256xi32> to vector<1x256xf32>
    %57 = arith.truncf %56 : vector<1x256xf32> to vector<1x256xbf16>
    %c2 = arith.constant 2 : index
    %c0_26 = arith.constant 0 : index
    %58 = vector.load %arg18[%c2, %c0_26] : memref<128x256xbf16, #tpu.memory_space<vmem>>, vector<1x256xbf16>
    tpu.vector_store %arg18[%c2, %c0_26], %57 {strides = array<i32>} : memref<128x256xbf16, #tpu.memory_space<vmem>>, vector<1x256xbf16>,
    %c0_27 = arith.constant 0 : index
    %c129 = arith.constant 129 : index
    %59 = vector.load %arg17[%c0_27, %c129] : memref<16x512xbf16, #tpu.memory_space<vmem>>, vector<16x256xbf16>
    %60 = vector.broadcast %57 : vector<1x256xbf16> to vector<16x256xbf16>
    %61 = arith.mulf %59, %60 : vector<16x256xbf16>
    %c48 = arith.constant 48 : index
    %c0_28 = arith.constant 0 : index
    %62 = vector.load %arg18[%c48, %c0_28] : memref<128x256xbf16, #tpu.memory_space<vmem>>, vector<16x256xbf16>
    tpu.vector_store %arg18[%c48, %c0_28], %61 {strides = array<i32>} : memref<128x256xbf16, #tpu.memory_space<vmem>>, vector<16x256xbf16>,
    %c-2_i32 = arith.constant -2 : i32
    %63 = vector.broadcast %c-2_i32 : i32 to vector<1x256xi32>
    %64 = arith.addi %23, %63 : vector<1x256xi32>
    %c0_i32_29 = arith.constant 0 : i32
    %65 = vector.broadcast %c0_i32_29 : i32 to vector<1x256xi32>
    %66 = arith.cmpi sge, %64, %65 : vector<1x256xi32>
    %c-2_i32_30 = arith.constant -2 : i32
    %67 = vector.broadcast %c-2_i32_30 : i32 to vector<1x256xi32>
    %68 = arith.addi %23, %67 : vector<1x256xi32>
    %c16_i32_31 = arith.constant 16 : i32
    %69 = vector.broadcast %c16_i32_31 : i32 to vector<1x256xi32>
    %70 = arith.cmpi slt, %68, %69 : vector<1x256xi32>
    %71 = arith.andi %66, %70 : vector<1x256xi1>
    %72 = arith.extui %71 : vector<1x256xi1> to vector<1x256xi32>
    %73 = arith.sitofp %72 : vector<1x256xi32> to vector<1x256xf32>
    %74 = arith.truncf %73 : vector<1x256xf32> to vector<1x256xbf16>
    %c3 = arith.constant 3 : index
    %c0_32 = arith.constant 0 : index
    %75 = vector.load %arg18[%c3, %c0_32] : memref<128x256xbf16, #tpu.memory_space<vmem>>, vector<1x256xbf16>
    tpu.vector_store %arg18[%c3, %c0_32], %74 {strides = array<i32>} : memref<128x256xbf16, #tpu.memory_space<vmem>>, vector<1x256xbf16>,
    %c0_33 = arith.constant 0 : index
    %c126 = arith.constant 126 : index
    %76 = vector.load %arg17[%c0_33, %c126] : memref<16x512xbf16, #tpu.memory_space<vmem>>, vector<16x256xbf16>
    %77 = vector.broadcast %74 : vector<1x256xbf16> to vector<16x256xbf16>
    %78 = arith.mulf %76, %77 : vector<16x256xbf16>
    %c64 = arith.constant 64 : index
    %c0_34 = arith.constant 0 : index
    %79 = vector.load %arg18[%c64, %c0_34] : memref<128x256xbf16, #tpu.memory_space<vmem>>, vector<16x256xbf16>
    tpu.vector_store %arg18[%c64, %c0_34], %78 {strides = array<i32>} : memref<128x256xbf16, #tpu.memory_space<vmem>>, vector<16x256xbf16>,
    %c2_i32 = arith.constant 2 : i32
    %80 = vector.broadcast %c2_i32 : i32 to vector<1x256xi32>
    %81 = arith.addi %23, %80 : vector<1x256xi32>
    %c0_i32_35 = arith.constant 0 : i32
    %82 = vector.broadcast %c0_i32_35 : i32 to vector<1x256xi32>
    %83 = arith.cmpi sge, %81, %82 : vector<1x256xi32>
    %c2_i32_36 = arith.constant 2 : i32
    %84 = vector.broadcast %c2_i32_36 : i32 to vector<1x256xi32>
    %85 = arith.addi %23, %84 : vector<1x256xi32>
    %c16_i32_37 = arith.constant 16 : i32
    %86 = vector.broadcast %c16_i32_37 : i32 to vector<1x256xi32>
    %87 = arith.cmpi slt, %85, %86 : vector<1x256xi32>
    %88 = arith.andi %83, %87 : vector<1x256xi1>
    %89 = arith.extui %88 : vector<1x256xi1> to vector<1x256xi32>
    %90 = arith.sitofp %89 : vector<1x256xi32> to vector<1x256xf32>
    %91 = arith.truncf %90 : vector<1x256xf32> to vector<1x256xbf16>
    %c4 = arith.constant 4 : index
    %c0_38 = arith.constant 0 : index
    %92 = vector.load %arg18[%c4, %c0_38] : memref<128x256xbf16, #tpu.memory_space<vmem>>, vector<1x256xbf16>
    tpu.vector_store %arg18[%c4, %c0_38], %91 {strides = array<i32>} : memref<128x256xbf16, #tpu.memory_space<vmem>>, vector<1x256xbf16>,
    %c0_39 = arith.constant 0 : index
    %c130 = arith.constant 130 : index
    %93 = vector.load %arg17[%c0_39, %c130] : memref<16x512xbf16, #tpu.memory_space<vmem>>, vector<16x256xbf16>
    %94 = vector.broadcast %91 : vector<1x256xbf16> to vector<16x256xbf16>
    %95 = arith.mulf %93, %94 : vector<16x256xbf16>
    %c80 = arith.constant 80 : index
    %c0_40 = arith.constant 0 : index
    %96 = vector.load %arg18[%c80, %c0_40] : memref<128x256xbf16, #tpu.memory_space<vmem>>, vector<16x256xbf16>
    tpu.vector_store %arg18[%c80, %c0_40], %95 {strides = array<i32>} : memref<128x256xbf16, #tpu.memory_space<vmem>>, vector<16x256xbf16>,
    %c-3_i32 = arith.constant -3 : i32
    %97 = vector.broadcast %c-3_i32 : i32 to vector<1x256xi32>
    %98 = arith.addi %23, %97 : vector<1x256xi32>
    %c0_i32_41 = arith.constant 0 : i32
    %99 = vector.broadcast %c0_i32_41 : i32 to vector<1x256xi32>
    %100 = arith.cmpi sge, %98, %99 : vector<1x256xi32>
    %c-3_i32_42 = arith.constant -3 : i32
    %101 = vector.broadcast %c-3_i32_42 : i32 to vector<1x256xi32>
    %102 = arith.addi %23, %101 : vector<1x256xi32>
    %c16_i32_43 = arith.constant 16 : i32
    %103 = vector.broadcast %c16_i32_43 : i32 to vector<1x256xi32>
    %104 = arith.cmpi slt, %102, %103 : vector<1x256xi32>
    %105 = arith.andi %100, %104 : vector<1x256xi1>
    %106 = arith.extui %105 : vector<1x256xi1> to vector<1x256xi32>
    %107 = arith.sitofp %106 : vector<1x256xi32> to vector<1x256xf32>
    %108 = arith.truncf %107 : vector<1x256xf32> to vector<1x256xbf16>
    %c5 = arith.constant 5 : index
    %c0_44 = arith.constant 0 : index
    %109 = vector.load %arg18[%c5, %c0_44] : memref<128x256xbf16, #tpu.memory_space<vmem>>, vector<1x256xbf16>
    tpu.vector_store %arg18[%c5, %c0_44], %108 {strides = array<i32>} : memref<128x256xbf16, #tpu.memory_space<vmem>>, vector<1x256xbf16>,
    %c0_45 = arith.constant 0 : index
    %c125 = arith.constant 125 : index
    %110 = vector.load %arg17[%c0_45, %c125] : memref<16x512xbf16, #tpu.memory_space<vmem>>, vector<16x256xbf16>
    %111 = vector.broadcast %108 : vector<1x256xbf16> to vector<16x256xbf16>
    %112 = arith.mulf %110, %111 : vector<16x256xbf16>
    %c96 = arith.constant 96 : index
    %c0_46 = arith.constant 0 : index
    %113 = vector.load %arg18[%c96, %c0_46] : memref<128x256xbf16, #tpu.memory_space<vmem>>, vector<16x256xbf16>
    tpu.vector_store %arg18[%c96, %c0_46], %112 {strides = array<i32>} : memref<128x256xbf16, #tpu.memory_space<vmem>>, vector<16x256xbf16>,
    %c3_i32 = arith.constant 3 : i32
    %114 = vector.broadcast %c3_i32 : i32 to vector<1x256xi32>
    %115 = arith.addi %23, %114 : vector<1x256xi32>
    %c0_i32_47 = arith.constant 0 : i32
    %116 = vector.broadcast %c0_i32_47 : i32 to vector<1x256xi32>
    %117 = arith.cmpi sge, %115, %116 : vector<1x256xi32>
    %c3_i32_48 = arith.constant 3 : i32
    %118 = vector.broadcast %c3_i32_48 : i32 to vector<1x256xi32>
    %119 = arith.addi %23, %118 : vector<1x256xi32>
    %c16_i32_49 = arith.constant 16 : i32
    %120 = vector.broadcast %c16_i32_49 : i32 to vector<1x256xi32>
    %121 = arith.cmpi slt, %119, %120 : vector<1x256xi32>
    %122 = arith.andi %117, %121 : vector<1x256xi1>
    %123 = arith.extui %122 : vector<1x256xi1> to vector<1x256xi32>
    %124 = arith.sitofp %123 : vector<1x256xi32> to vector<1x256xf32>
    %125 = arith.truncf %124 : vector<1x256xf32> to vector<1x256xbf16>
    %c6 = arith.constant 6 : index
    %c0_50 = arith.constant 0 : index
    %126 = vector.load %arg18[%c6, %c0_50] : memref<128x256xbf16, #tpu.memory_space<vmem>>, vector<1x256xbf16>
    tpu.vector_store %arg18[%c6, %c0_50], %125 {strides = array<i32>} : memref<128x256xbf16, #tpu.memory_space<vmem>>, vector<1x256xbf16>,
    %c0_51 = arith.constant 0 : index
    %c131 = arith.constant 131 : index
    %127 = vector.load %arg17[%c0_51, %c131] : memref<16x512xbf16, #tpu.memory_space<vmem>>, vector<16x256xbf16>
    %128 = vector.broadcast %125 : vector<1x256xbf16> to vector<16x256xbf16>
    %129 = arith.mulf %127, %128 : vector<16x256xbf16>
    %c112 = arith.constant 112 : index
    %c0_52 = arith.constant 0 : index
    %130 = vector.load %arg18[%c112, %c0_52] : memref<128x256xbf16, #tpu.memory_space<vmem>>, vector<16x256xbf16>
    tpu.vector_store %arg18[%c112, %c0_52], %129 {strides = array<i32>} : memref<128x256xbf16, #tpu.memory_space<vmem>>, vector<16x256xbf16>,
    %c0_53 = arith.constant 0 : index
    %c0_54 = arith.constant 0 : index
    %131 = vector.load %arg2[%c0_53, %c0_54] : memref<32x32xbf16, #tpu.memory_space<vmem>>, vector<32x32xbf16>
    %c0_55 = arith.constant 0 : index
    %c0_56 = arith.constant 0 : index
    %132 = vector.load %arg18[%c0_55, %c0_56] : memref<128x256xbf16, #tpu.memory_space<vmem>>, vector<32x256xbf16>
    %cst_57 = arith.constant dense<0.000000e+00> : vector<32x256xf32>
    %133 = tpu.matmul %131, %132, %cst_57 {dimension_numbers = #tpu.dot_dimension_numbers<[1], [0], [0], [1], [0, 0, 1, 1], [], []>} : vector<32x32xbf16>, vector<32x256xbf16>, vector<32x256xf32> -> vector<32x256xf32>
    %134 = vector.extract_strided_slice %133 {offsets = [0, 0], sizes = [16, 256], strides = [1, 1]} : vector<32x256xf32> to vector<16x256xf32>
    %135 = vector.extract_strided_slice %133 {offsets = [16, 0], sizes = [16, 256], strides = [1, 1]} : vector<32x256xf32> to vector<16x256xf32>
    %c0_58 = arith.constant 0 : index
    %c0_59 = arith.constant 0 : index
    %136 = vector.load %arg3[%c0_58, %c0_59] : memref<16x64xbf16, #tpu.memory_space<vmem>>, vector<16x64xbf16>
    %c0_60 = arith.constant 0 : index
    %c0_61 = arith.constant 0 : index
    %137 = vector.load %arg18[%c0_60, %c0_61] : memref<128x256xbf16, #tpu.memory_space<vmem>>, vector<64x256xbf16>
    %cst_62 = arith.constant dense<0.000000e+00> : vector<16x256xf32>
    %138 = tpu.matmul %136, %137, %cst_62 {dimension_numbers = #tpu.dot_dimension_numbers<[1], [0], [0], [1], [0, 0, 1, 1], [], []>} : vector<16x64xbf16>, vector<64x256xbf16>, vector<16x256xf32> -> vector<16x256xf32>
    %139 = arith.truncf %138 : vector<16x256xf32> to vector<16x256xbf16>
    %c0_63 = arith.constant 0 : index
    %c128_64 = arith.constant 128 : index
    %140 = vector.load %arg17[%c0_63, %c128_64] : memref<16x512xbf16, #tpu.memory_space<vmem>>, vector<16x256xbf16>
    tpu.vector_store %arg17[%c0_63, %c128_64], %139 {strides = array<i32>} : memref<16x512xbf16, #tpu.memory_space<vmem>>, vector<16x256xbf16>,
    %c0_65 = arith.constant 0 : index
    %c112_66 = arith.constant 112 : index
    %141 = vector.load %arg17[%c0_65, %c112_66] : memref<16x512xbf16, #tpu.memory_space<vmem>>, vector<16x256xbf16>
    %c0_67 = arith.constant 0 : index
    %c0_68 = arith.constant 0 : index
    %142 = vector.load %arg19[%c0_67, %c0_68] : memref<112x256xbf16, #tpu.memory_space<vmem>>, vector<16x256xbf16>
    tpu.vector_store %arg19[%c0_67, %c0_68], %141 {strides = array<i32>} : memref<112x256xbf16, #tpu.memory_space<vmem>>, vector<16x256xbf16>,
    %c16_69 = arith.constant 16 : index
    %c0_70 = arith.constant 0 : index
    %143 = vector.load %arg19[%c16_69, %c0_70] : memref<112x256xbf16, #tpu.memory_space<vmem>>, vector<16x256xbf16>
    tpu.vector_store %arg19[%c16_69, %c0_70], %139 {strides = array<i32>} : memref<112x256xbf16, #tpu.memory_space<vmem>>, vector<16x256xbf16>,
    %c0_71 = arith.constant 0 : index
    %c144 = arith.constant 144 : index
    %144 = vector.load %arg17[%c0_71, %c144] : memref<16x512xbf16, #tpu.memory_space<vmem>>, vector<16x256xbf16>
    %c32_72 = arith.constant 32 : index
    %c0_73 = arith.constant 0 : index
    %145 = vector.load %arg19[%c32_72, %c0_73] : memref<112x256xbf16, #tpu.memory_space<vmem>>, vector<16x256xbf16>
    tpu.vector_store %arg19[%c32_72, %c0_73], %144 {strides = array<i32>} : memref<112x256xbf16, #tpu.memory_space<vmem>>, vector<16x256xbf16>,
    %c0_74 = arith.constant 0 : index
    %c0_75 = arith.constant 0 : index
    %146 = vector.load %arg6[%c0_74, %c0_75] : memref<16x48xbf16, #tpu.memory_space<vmem>>, vector<16x48xbf16>
    %c0_76 = arith.constant 0 : index
    %c0_77 = arith.constant 0 : index
    %147 = vector.load %arg19[%c0_76, %c0_77] : memref<112x256xbf16, #tpu.memory_space<vmem>>, vector<48x256xbf16>
    %cst_78 = arith.constant dense<0.000000e+00> : vector<16x256xf32>
    %148 = tpu.matmul %146, %147, %cst_78 {dimension_numbers = #tpu.dot_dimension_numbers<[1], [0], [0], [1], [0, 0, 1, 1], [], []>} : vector<16x48xbf16>, vector<48x256xbf16>, vector<16x256xf32> -> vector<16x256xf32>
    %c0_79 = arith.constant 0 : index
    %c0_80 = arith.constant 0 : index
    %149 = vector.load %arg7[%c0_79, %c0_80] : memref<16x1xf32, #tpu.memory_space<vmem>>, vector<16x1xf32>
    %150 = vector.broadcast %149 : vector<16x1xf32> to vector<16x256xf32>
    %151 = arith.addf %148, %150 : vector<16x256xf32>
    %c0_81 = arith.constant 0 : index
    %c0_82 = arith.constant 0 : index
    %152 = vector.load %arg4[%c0_81, %c0_82] : memref<16x96xbf16, #tpu.memory_space<vmem>>, vector<16x96xbf16>
    %c0_83 = arith.constant 0 : index
    %c0_84 = arith.constant 0 : index
    %153 = vector.load %arg18[%c0_83, %c0_84] : memref<128x256xbf16, #tpu.memory_space<vmem>>, vector<96x256xbf16>
    %cst_85 = arith.constant dense<0.000000e+00> : vector<16x256xf32>
    %154 = tpu.matmul %152, %153, %cst_85 {dimension_numbers = #tpu.dot_dimension_numbers<[1], [0], [0], [1], [0, 0, 1, 1], [], []>} : vector<16x96xbf16>, vector<96x256xbf16>, vector<16x256xf32> -> vector<16x256xf32>
    %155 = arith.truncf %154 : vector<16x256xf32> to vector<16x256xbf16>
    %c0_86 = arith.constant 0 : index
    %c128_87 = arith.constant 128 : index
    %156 = vector.load %arg17[%c0_86, %c128_87] : memref<16x512xbf16, #tpu.memory_space<vmem>>, vector<16x256xbf16>
    tpu.vector_store %arg17[%c0_86, %c128_87], %155 {strides = array<i32>} : memref<16x512xbf16, #tpu.memory_space<vmem>>, vector<16x256xbf16>,
    %c0_88 = arith.constant 0 : index
    %c96_89 = arith.constant 96 : index
    %157 = vector.load %arg17[%c0_88, %c96_89] : memref<16x512xbf16, #tpu.memory_space<vmem>>, vector<16x256xbf16>
    %c0_90 = arith.constant 0 : index
    %c0_91 = arith.constant 0 : index
    %158 = vector.load %arg19[%c0_90, %c0_91] : memref<112x256xbf16, #tpu.memory_space<vmem>>, vector<16x256xbf16>
    tpu.vector_store %arg19[%c0_90, %c0_91], %157 {strides = array<i32>} : memref<112x256xbf16, #tpu.memory_space<vmem>>, vector<16x256xbf16>,
    %c0_92 = arith.constant 0 : index
    %c112_93 = arith.constant 112 : index
    %159 = vector.load %arg17[%c0_92, %c112_93] : memref<16x512xbf16, #tpu.memory_space<vmem>>, vector<16x256xbf16>
    %c16_94 = arith.constant 16 : index
    %c0_95 = arith.constant 0 : index
    %160 = vector.load %arg19[%c16_94, %c0_95] : memref<112x256xbf16, #tpu.memory_space<vmem>>, vector<16x256xbf16>
    tpu.vector_store %arg19[%c16_94, %c0_95], %159 {strides = array<i32>} : memref<112x256xbf16, #tpu.memory_space<vmem>>, vector<16x256xbf16>,
    %c32_96 = arith.constant 32 : index
    %c0_97 = arith.constant 0 : index
    %161 = vector.load %arg19[%c32_96, %c0_97] : memref<112x256xbf16, #tpu.memory_space<vmem>>, vector<16x256xbf16>
    tpu.vector_store %arg19[%c32_96, %c0_97], %155 {strides = array<i32>} : memref<112x256xbf16, #tpu.memory_space<vmem>>, vector<16x256xbf16>,
    %c0_98 = arith.constant 0 : index
    %c144_99 = arith.constant 144 : index
    %162 = vector.load %arg17[%c0_98, %c144_99] : memref<16x512xbf16, #tpu.memory_space<vmem>>, vector<16x256xbf16>
    %c48_100 = arith.constant 48 : index
    %c0_101 = arith.constant 0 : index
    %163 = vector.load %arg19[%c48_100, %c0_101] : memref<112x256xbf16, #tpu.memory_space<vmem>>, vector<16x256xbf16>
    tpu.vector_store %arg19[%c48_100, %c0_101], %162 {strides = array<i32>} : memref<112x256xbf16, #tpu.memory_space<vmem>>, vector<16x256xbf16>,
    %c0_102 = arith.constant 0 : index
    %c160 = arith.constant 160 : index
    %164 = vector.load %arg17[%c0_102, %c160] : memref<16x512xbf16, #tpu.memory_space<vmem>>, vector<16x256xbf16>
    %c64_103 = arith.constant 64 : index
    %c0_104 = arith.constant 0 : index
    %165 = vector.load %arg19[%c64_103, %c0_104] : memref<112x256xbf16, #tpu.memory_space<vmem>>, vector<16x256xbf16>
    tpu.vector_store %arg19[%c64_103, %c0_104], %164 {strides = array<i32>} : memref<112x256xbf16, #tpu.memory_space<vmem>>, vector<16x256xbf16>,
    %c0_105 = arith.constant 0 : index
    %c0_106 = arith.constant 0 : index
    %166 = vector.load %arg8[%c0_105, %c0_106] : memref<16x80xbf16, #tpu.memory_space<vmem>>, vector<16x80xbf16>
    %c0_107 = arith.constant 0 : index
    %c0_108 = arith.constant 0 : index
    %167 = vector.load %arg19[%c0_107, %c0_108] : memref<112x256xbf16, #tpu.memory_space<vmem>>, vector<80x256xbf16>
    %cst_109 = arith.constant dense<0.000000e+00> : vector<16x256xf32>
    %168 = tpu.matmul %166, %167, %cst_109 {dimension_numbers = #tpu.dot_dimension_numbers<[1], [0], [0], [1], [0, 0, 1, 1], [], []>} : vector<16x80xbf16>, vector<80x256xbf16>, vector<16x256xf32> -> vector<16x256xf32>
    %c0_110 = arith.constant 0 : index
    %c0_111 = arith.constant 0 : index
    %169 = vector.load %arg9[%c0_110, %c0_111] : memref<16x1xf32, #tpu.memory_space<vmem>>, vector<16x1xf32>
    %170 = vector.broadcast %169 : vector<16x1xf32> to vector<16x256xf32>
    %171 = arith.addf %168, %170 : vector<16x256xf32>
    %c0_112 = arith.constant 0 : index
    %c0_113 = arith.constant 0 : index
    %172 = vector.load %arg5[%c0_112, %c0_113] : memref<16x128xbf16, #tpu.memory_space<vmem>>, vector<16x128xbf16>
    %c0_114 = arith.constant 0 : index
    %c0_115 = arith.constant 0 : index
    %173 = vector.load %arg18[%c0_114, %c0_115] : memref<128x256xbf16, #tpu.memory_space<vmem>>, vector<128x256xbf16>
    %cst_116 = arith.constant dense<0.000000e+00> : vector<16x256xf32>
    %174 = tpu.matmul %172, %173, %cst_116 {dimension_numbers = #tpu.dot_dimension_numbers<[1], [0], [0], [1], [0, 0, 1, 1], [], []>} : vector<16x128xbf16>, vector<128x256xbf16>, vector<16x256xf32> -> vector<16x256xf32>
    %175 = arith.truncf %174 : vector<16x256xf32> to vector<16x256xbf16>
    %c0_117 = arith.constant 0 : index
    %c128_118 = arith.constant 128 : index
    %176 = vector.load %arg17[%c0_117, %c128_118] : memref<16x512xbf16, #tpu.memory_space<vmem>>, vector<16x256xbf16>
    tpu.vector_store %arg17[%c0_117, %c128_118], %175 {strides = array<i32>} : memref<16x512xbf16, #tpu.memory_space<vmem>>, vector<16x256xbf16>,
    %c0_119 = arith.constant 0 : index
    %c80_120 = arith.constant 80 : index
    %177 = vector.load %arg17[%c0_119, %c80_120] : memref<16x512xbf16, #tpu.memory_space<vmem>>, vector<16x256xbf16>
    %c0_121 = arith.constant 0 : index
    %c0_122 = arith.constant 0 : index
    %178 = vector.load %arg19[%c0_121, %c0_122] : memref<112x256xbf16, #tpu.memory_space<vmem>>, vector<16x256xbf16>
    tpu.vector_store %arg19[%c0_121, %c0_122], %177 {strides = array<i32>} : memref<112x256xbf16, #tpu.memory_space<vmem>>, vector<16x256xbf16>,
    %c0_123 = arith.constant 0 : index
    %c96_124 = arith.constant 96 : index
    %179 = vector.load %arg17[%c0_123, %c96_124] : memref<16x512xbf16, #tpu.memory_space<vmem>>, vector<16x256xbf16>
    %c16_125 = arith.constant 16 : index
    %c0_126 = arith.constant 0 : index
    %180 = vector.load %arg19[%c16_125, %c0_126] : memref<112x256xbf16, #tpu.memory_space<vmem>>, vector<16x256xbf16>
    tpu.vector_store %arg19[%c16_125, %c0_126], %179 {strides = array<i32>} : memref<112x256xbf16, #tpu.memory_space<vmem>>, vector<16x256xbf16>,
    %c0_127 = arith.constant 0 : index
    %c112_128 = arith.constant 112 : index
    %181 = vector.load %arg17[%c0_127, %c112_128] : memref<16x512xbf16, #tpu.memory_space<vmem>>, vector<16x256xbf16>
    %c32_129 = arith.constant 32 : index
    %c0_130 = arith.constant 0 : index
    %182 = vector.load %arg19[%c32_129, %c0_130] : memref<112x256xbf16, #tpu.memory_space<vmem>>, vector<16x256xbf16>
    tpu.vector_store %arg19[%c32_129, %c0_130], %181 {strides = array<i32>} : memref<112x256xbf16, #tpu.memory_space<vmem>>, vector<16x256xbf16>,
    %c48_131 = arith.constant 48 : index
    %c0_132 = arith.constant 0 : index
    %183 = vector.load %arg19[%c48_131, %c0_132] : memref<112x256xbf16, #tpu.memory_space<vmem>>, vector<16x256xbf16>
    tpu.vector_store %arg19[%c48_131, %c0_132], %175 {strides = array<i32>} : memref<112x256xbf16, #tpu.memory_space<vmem>>, vector<16x256xbf16>,
    %c0_133 = arith.constant 0 : index
    %c144_134 = arith.constant 144 : index
    %184 = vector.load %arg17[%c0_133, %c144_134] : memref<16x512xbf16, #tpu.memory_space<vmem>>, vector<16x256xbf16>
    %c64_135 = arith.constant 64 : index
    %c0_136 = arith.constant 0 : index
    %185 = vector.load %arg19[%c64_135, %c0_136] : memref<112x256xbf16, #tpu.memory_space<vmem>>, vector<16x256xbf16>
    tpu.vector_store %arg19[%c64_135, %c0_136], %184 {strides = array<i32>} : memref<112x256xbf16, #tpu.memory_space<vmem>>, vector<16x256xbf16>,
    %c0_137 = arith.constant 0 : index
    %c160_138 = arith.constant 160 : index
    %186 = vector.load %arg17[%c0_137, %c160_138] : memref<16x512xbf16, #tpu.memory_space<vmem>>, vector<16x256xbf16>
    %c80_139 = arith.constant 80 : index
    %c0_140 = arith.constant 0 : index
    %187 = vector.load %arg19[%c80_139, %c0_140] : memref<112x256xbf16, #tpu.memory_space<vmem>>, vector<16x256xbf16>
    tpu.vector_store %arg19[%c80_139, %c0_140], %186 {strides = array<i32>} : memref<112x256xbf16, #tpu.memory_space<vmem>>, vector<16x256xbf16>,
    %c0_141 = arith.constant 0 : index
    %c176 = arith.constant 176 : index
    %188 = vector.load %arg17[%c0_141, %c176] : memref<16x512xbf16, #tpu.memory_space<vmem>>, vector<16x256xbf16>
    %c96_142 = arith.constant 96 : index
    %c0_143 = arith.constant 0 : index
    %189 = vector.load %arg19[%c96_142, %c0_143] : memref<112x256xbf16, #tpu.memory_space<vmem>>, vector<16x256xbf16>
    tpu.vector_store %arg19[%c96_142, %c0_143], %188 {strides = array<i32>} : memref<112x256xbf16, #tpu.memory_space<vmem>>, vector<16x256xbf16>,
    %c0_144 = arith.constant 0 : index
    %c0_145 = arith.constant 0 : index
    %190 = vector.load %arg10[%c0_144, %c0_145] : memref<16x112xbf16, #tpu.memory_space<vmem>>, vector<16x112xbf16>
    %c0_146 = arith.constant 0 : index
    %c0_147 = arith.constant 0 : index
    %191 = vector.load %arg19[%c0_146, %c0_147] : memref<112x256xbf16, #tpu.memory_space<vmem>>, vector<112x256xbf16>
    %cst_148 = arith.constant dense<0.000000e+00> : vector<16x256xf32>
    %192 = tpu.matmul %190, %191, %cst_148 {dimension_numbers = #tpu.dot_dimension_numbers<[1], [0], [0], [1], [0, 0, 1, 1], [], []>} : vector<16x112xbf16>, vector<112x256xbf16>, vector<16x256xf32> -> vector<16x256xf32>
    %c0_149 = arith.constant 0 : index
    %c0_150 = arith.constant 0 : index
    %193 = vector.load %arg11[%c0_149, %c0_150] : memref<16x1xf32, #tpu.memory_space<vmem>>, vector<16x1xf32>
    %194 = vector.broadcast %193 : vector<16x1xf32> to vector<16x256xf32>
    %195 = arith.addf %192, %194 : vector<16x256xf32>
    %cst_151 = arith.constant dense<0.000000e+00> : vector<16xf32>
    %196 = vector.multi_reduction <add>, %134, %cst_151 [1] : vector<16x256xf32> to vector<16xf32>
    %197 = vector.shape_cast %196 : vector<16xf32> to vector<16x1xf32>
    %cst_152 = arith.constant 2.560000e+02 : f32
    %198 = vector.broadcast %cst_152 : f32 to vector<16x1xf32>
    %199 = arith.divf %197, %198 : vector<16x1xf32>
    %c0_153 = arith.constant 0 : index
    %c0_154 = arith.constant 0 : index
    %200 = vector.load %arg12[%c0_153, %c0_154] : memref<16x4xf32, #tpu.memory_space<vmem>>, vector<16x4xf32>
    %201 = vector.broadcast %199 : vector<16x1xf32> to vector<16x4xf32>
    %202 = arith.mulf %200, %201 : vector<16x4xf32>
    %cst_155 = arith.constant dense<0.000000e+00> : vector<4xf32>
    %203 = vector.multi_reduction <add>, %202, %cst_155 [0] : vector<16x4xf32> to vector<4xf32>
    %204 = vector.shape_cast %203 : vector<4xf32> to vector<1x4xf32>
    %c0_156 = arith.constant 0 : index
    %c0_157 = arith.constant 0 : index
    %205 = vector.load %arg13[%c0_156, %c0_157] : memref<1x4xf32, #tpu.memory_space<vmem>>, vector<1x4xf32>
    %206 = arith.addf %204, %205 : vector<1x4xf32>
    %cst_158 = arith.constant 5.000000e-01 : f32
    %207 = vector.broadcast %cst_158 : f32 to vector<1x4xf32>
    %208 = arith.mulf %207, %206 : vector<1x4xf32>
    %cst_159 = arith.constant 0.707106769 : f32
    %209 = vector.broadcast %cst_159 : f32 to vector<1x4xf32>
    %210 = arith.mulf %206, %209 : vector<1x4xf32>
    %211 = math.absf %210 : vector<1x4xf32>
    %cst_160 = arith.constant 0.327591091 : f32
    %212 = vector.broadcast %cst_160 : f32 to vector<1x4xf32>
    %213 = arith.mulf %212, %211 : vector<1x4xf32>
    %cst_161 = arith.constant 1.000000e+00 : f32
    %214 = vector.broadcast %cst_161 : f32 to vector<1x4xf32>
    %215 = arith.addf %214, %213 : vector<1x4xf32>
    %cst_162 = arith.constant 1.000000e+00 : f32
    %216 = vector.broadcast %cst_162 : f32 to vector<1x4xf32>
    %217 = arith.divf %216, %215 : vector<1x4xf32>
    %cst_163 = arith.constant 1.06140542 : f32
    %218 = vector.broadcast %cst_163 : f32 to vector<1x4xf32>
    %219 = arith.mulf %218, %217 : vector<1x4xf32>
    %cst_164 = arith.constant -1.45315206 : f32
    %220 = vector.broadcast %cst_164 : f32 to vector<1x4xf32>
    %221 = arith.addf %219, %220 : vector<1x4xf32>
    %222 = arith.mulf %221, %217 : vector<1x4xf32>
    %cst_165 = arith.constant 1.42141378 : f32
    %223 = vector.broadcast %cst_165 : f32 to vector<1x4xf32>
    %224 = arith.addf %222, %223 : vector<1x4xf32>
    %225 = arith.mulf %224, %217 : vector<1x4xf32>
    %cst_166 = arith.constant -0.284496725 : f32
    %226 = vector.broadcast %cst_166 : f32 to vector<1x4xf32>
    %227 = arith.addf %225, %226 : vector<1x4xf32>
    %228 = arith.mulf %227, %217 : vector<1x4xf32>
    %cst_167 = arith.constant 0.254829586 : f32
    %229 = vector.broadcast %cst_167 : f32 to vector<1x4xf32>
    %230 = arith.addf %228, %229 : vector<1x4xf32>
    %231 = arith.mulf %230, %217 : vector<1x4xf32>
    %cst_168 = arith.constant 0.000000e+00 : f32
    %232 = vector.broadcast %cst_168 : f32 to vector<1x4xf32>
    %233 = arith.subf %232, %211 : vector<1x4xf32>
    %234 = arith.mulf %233, %211 : vector<1x4xf32>
    %235 = math.exp %234 : vector<1x4xf32>
    %236 = arith.mulf %231, %235 : vector<1x4xf32>
    %cst_169 = arith.constant 1.000000e+00 : f32
    %237 = vector.broadcast %cst_169 : f32 to vector<1x4xf32>
    %238 = arith.subf %237, %236 : vector<1x4xf32>
    %cst_170 = arith.constant 0.000000e+00 : f32
    %239 = vector.broadcast %cst_170 : f32 to vector<1x4xf32>
    %240 = arith.cmpf oge, %210, %239 : vector<1x4xf32>
    %cst_171 = arith.constant 0.000000e+00 : f32
    %241 = vector.broadcast %cst_171 : f32 to vector<1x4xf32>
    %242 = arith.subf %241, %238 : vector<1x4xf32>
    %243 = arith.select %240, %238, %242 : vector<1x4xi1>, vector<1x4xf32>
    %cst_172 = arith.constant 1.000000e+00 : f32
    %244 = vector.broadcast %cst_172 : f32 to vector<1x4xf32>
    %245 = arith.addf %244, %243 : vector<1x4xf32>
    %246 = arith.mulf %208, %245 : vector<1x4xf32>
    %c0_173 = arith.constant 0 : index
    %c0_174 = arith.constant 0 : index
    %247 = vector.load %arg14[%c0_173, %c0_174] : memref<16x4xf32, #tpu.memory_space<vmem>>, vector<16x4xf32>
    %248 = vector.broadcast %246 : vector<1x4xf32> to vector<16x4xf32>
    %249 = arith.mulf %247, %248 : vector<16x4xf32>
    %cst_175 = arith.constant dense<0.000000e+00> : vector<16xf32>
    %250 = vector.multi_reduction <add>, %249, %cst_175 [1] : vector<16x4xf32> to vector<16xf32>
    %251 = vector.shape_cast %250 : vector<16xf32> to vector<16x1xf32>
    %c0_176 = arith.constant 0 : index
    %c0_177 = arith.constant 0 : index
    %252 = vector.load %arg15[%c0_176, %c0_177] : memref<16x1xf32, #tpu.memory_space<vmem>>, vector<16x1xf32>
    %253 = arith.addf %251, %252 : vector<16x1xf32>
    %cst_178 = arith.constant 0.000000e+00 : f32
    %254 = vector.broadcast %cst_178 : f32 to vector<16x1xf32>
    %255 = arith.subf %254, %253 : vector<16x1xf32>
    %256 = math.exp %255 : vector<16x1xf32>
    %cst_179 = arith.constant 1.000000e+00 : f32
    %257 = vector.broadcast %cst_179 : f32 to vector<16x1xf32>
    %258 = arith.addf %257, %256 : vector<16x1xf32>
    %cst_180 = arith.constant 1.000000e+00 : f32
    %259 = vector.broadcast %cst_180 : f32 to vector<16x1xf32>
    %260 = arith.divf %259, %258 : vector<16x1xf32>
    %261 = vector.broadcast %260 : vector<16x1xf32> to vector<16x256xf32>
    %262 = arith.mulf %261, %134 : vector<16x256xf32>
    %cst_181 = arith.constant dense<0.000000e+00> : vector<16xf32>
    %263 = vector.multi_reduction <add>, %151, %cst_181 [1] : vector<16x256xf32> to vector<16xf32>
    %264 = vector.shape_cast %263 : vector<16xf32> to vector<16x1xf32>
    %cst_182 = arith.constant 2.560000e+02 : f32
    %265 = vector.broadcast %cst_182 : f32 to vector<16x1xf32>
    %266 = arith.divf %264, %265 : vector<16x1xf32>
    %c0_183 = arith.constant 0 : index
    %c0_184 = arith.constant 0 : index
    %267 = vector.load %arg12[%c0_183, %c0_184] : memref<16x4xf32, #tpu.memory_space<vmem>>, vector<16x4xf32>
    %268 = vector.broadcast %266 : vector<16x1xf32> to vector<16x4xf32>
    %269 = arith.mulf %267, %268 : vector<16x4xf32>
    %cst_185 = arith.constant dense<0.000000e+00> : vector<4xf32>
    %270 = vector.multi_reduction <add>, %269, %cst_185 [0] : vector<16x4xf32> to vector<4xf32>
    %271 = vector.shape_cast %270 : vector<4xf32> to vector<1x4xf32>
    %c0_186 = arith.constant 0 : index
    %c0_187 = arith.constant 0 : index
    %272 = vector.load %arg13[%c0_186, %c0_187] : memref<1x4xf32, #tpu.memory_space<vmem>>, vector<1x4xf32>
    %273 = arith.addf %271, %272 : vector<1x4xf32>
    %cst_188 = arith.constant 5.000000e-01 : f32
    %274 = vector.broadcast %cst_188 : f32 to vector<1x4xf32>
    %275 = arith.mulf %274, %273 : vector<1x4xf32>
    %cst_189 = arith.constant 0.707106769 : f32
    %276 = vector.broadcast %cst_189 : f32 to vector<1x4xf32>
    %277 = arith.mulf %273, %276 : vector<1x4xf32>
    %278 = math.absf %277 : vector<1x4xf32>
    %cst_190 = arith.constant 0.327591091 : f32
    %279 = vector.broadcast %cst_190 : f32 to vector<1x4xf32>
    %280 = arith.mulf %279, %278 : vector<1x4xf32>
    %cst_191 = arith.constant 1.000000e+00 : f32
    %281 = vector.broadcast %cst_191 : f32 to vector<1x4xf32>
    %282 = arith.addf %281, %280 : vector<1x4xf32>
    %cst_192 = arith.constant 1.000000e+00 : f32
    %283 = vector.broadcast %cst_192 : f32 to vector<1x4xf32>
    %284 = arith.divf %283, %282 : vector<1x4xf32>
    %cst_193 = arith.constant 1.06140542 : f32
    %285 = vector.broadcast %cst_193 : f32 to vector<1x4xf32>
    %286 = arith.mulf %285, %284 : vector<1x4xf32>
    %cst_194 = arith.constant -1.45315206 : f32
    %287 = vector.broadcast %cst_194 : f32 to vector<1x4xf32>
    %288 = arith.addf %286, %287 : vector<1x4xf32>
    %289 = arith.mulf %288, %284 : vector<1x4xf32>
    %cst_195 = arith.constant 1.42141378 : f32
    %290 = vector.broadcast %cst_195 : f32 to vector<1x4xf32>
    %291 = arith.addf %289, %290 : vector<1x4xf32>
    %292 = arith.mulf %291, %284 : vector<1x4xf32>
    %cst_196 = arith.constant -0.284496725 : f32
    %293 = vector.broadcast %cst_196 : f32 to vector<1x4xf32>
    %294 = arith.addf %292, %293 : vector<1x4xf32>
    %295 = arith.mulf %294, %284 : vector<1x4xf32>
    %cst_197 = arith.constant 0.254829586 : f32
    %296 = vector.broadcast %cst_197 : f32 to vector<1x4xf32>
    %297 = arith.addf %295, %296 : vector<1x4xf32>
    %298 = arith.mulf %297, %284 : vector<1x4xf32>
    %cst_198 = arith.constant 0.000000e+00 : f32
    %299 = vector.broadcast %cst_198 : f32 to vector<1x4xf32>
    %300 = arith.subf %299, %278 : vector<1x4xf32>
    %301 = arith.mulf %300, %278 : vector<1x4xf32>
    %302 = math.exp %301 : vector<1x4xf32>
    %303 = arith.mulf %298, %302 : vector<1x4xf32>
    %cst_199 = arith.constant 1.000000e+00 : f32
    %304 = vector.broadcast %cst_199 : f32 to vector<1x4xf32>
    %305 = arith.subf %304, %303 : vector<1x4xf32>
    %cst_200 = arith.constant 0.000000e+00 : f32
    %306 = vector.broadcast %cst_200 : f32 to vector<1x4xf32>
    %307 = arith.cmpf oge, %277, %306 : vector<1x4xf32>
    %cst_201 = arith.constant 0.000000e+00 : f32
    %308 = vector.broadcast %cst_201 : f32 to vector<1x4xf32>
    %309 = arith.subf %308, %305 : vector<1x4xf32>
    %310 = arith.select %307, %305, %309 : vector<1x4xi1>, vector<1x4xf32>
    %cst_202 = arith.constant 1.000000e+00 : f32
    %311 = vector.broadcast %cst_202 : f32 to vector<1x4xf32>
    %312 = arith.addf %311, %310 : vector<1x4xf32>
    %313 = arith.mulf %275, %312 : vector<1x4xf32>
    %c0_203 = arith.constant 0 : index
    %c0_204 = arith.constant 0 : index
    %314 = vector.load %arg14[%c0_203, %c0_204] : memref<16x4xf32, #tpu.memory_space<vmem>>, vector<16x4xf32>
    %315 = vector.broadcast %313 : vector<1x4xf32> to vector<16x4xf32>
    %316 = arith.mulf %314, %315 : vector<16x4xf32>
    %cst_205 = arith.constant dense<0.000000e+00> : vector<16xf32>
    %317 = vector.multi_reduction <add>, %316, %cst_205 [1] : vector<16x4xf32> to vector<16xf32>
    %318 = vector.shape_cast %317 : vector<16xf32> to vector<16x1xf32>
    %c0_206 = arith.constant 0 : index
    %c0_207 = arith.constant 0 : index
    %319 = vector.load %arg15[%c0_206, %c0_207] : memref<16x1xf32, #tpu.memory_space<vmem>>, vector<16x1xf32>
    %320 = arith.addf %318, %319 : vector<16x1xf32>
    %cst_208 = arith.constant 0.000000e+00 : f32
    %321 = vector.broadcast %cst_208 : f32 to vector<16x1xf32>
    %322 = arith.subf %321, %320 : vector<16x1xf32>
    %323 = math.exp %322 : vector<16x1xf32>
    %cst_209 = arith.constant 1.000000e+00 : f32
    %324 = vector.broadcast %cst_209 : f32 to vector<16x1xf32>
    %325 = arith.addf %324, %323 : vector<16x1xf32>
    %cst_210 = arith.constant 1.000000e+00 : f32
    %326 = vector.broadcast %cst_210 : f32 to vector<16x1xf32>
    %327 = arith.divf %326, %325 : vector<16x1xf32>
    %328 = vector.broadcast %327 : vector<16x1xf32> to vector<16x256xf32>
    %329 = arith.mulf %328, %151 : vector<16x256xf32>
    %330 = arith.addf %262, %329 : vector<16x256xf32>
    %cst_211 = arith.constant dense<0.000000e+00> : vector<16xf32>
    %331 = vector.multi_reduction <add>, %171, %cst_211 [1] : vector<16x256xf32> to vector<16xf32>
    %332 = vector.shape_cast %331 : vector<16xf32> to vector<16x1xf32>
    %cst_212 = arith.constant 2.560000e+02 : f32
    %333 = vector.broadcast %cst_212 : f32 to vector<16x1xf32>
    %334 = arith.divf %332, %333 : vector<16x1xf32>
    %c0_213 = arith.constant 0 : index
    %c0_214 = arith.constant 0 : index
    %335 = vector.load %arg12[%c0_213, %c0_214] : memref<16x4xf32, #tpu.memory_space<vmem>>, vector<16x4xf32>
    %336 = vector.broadcast %334 : vector<16x1xf32> to vector<16x4xf32>
    %337 = arith.mulf %335, %336 : vector<16x4xf32>
    %cst_215 = arith.constant dense<0.000000e+00> : vector<4xf32>
    %338 = vector.multi_reduction <add>, %337, %cst_215 [0] : vector<16x4xf32> to vector<4xf32>
    %339 = vector.shape_cast %338 : vector<4xf32> to vector<1x4xf32>
    %c0_216 = arith.constant 0 : index
    %c0_217 = arith.constant 0 : index
    %340 = vector.load %arg13[%c0_216, %c0_217] : memref<1x4xf32, #tpu.memory_space<vmem>>, vector<1x4xf32>
    %341 = arith.addf %339, %340 : vector<1x4xf32>
    %cst_218 = arith.constant 5.000000e-01 : f32
    %342 = vector.broadcast %cst_218 : f32 to vector<1x4xf32>
    %343 = arith.mulf %342, %341 : vector<1x4xf32>
    %cst_219 = arith.constant 0.707106769 : f32
    %344 = vector.broadcast %cst_219 : f32 to vector<1x4xf32>
    %345 = arith.mulf %341, %344 : vector<1x4xf32>
    %346 = math.absf %345 : vector<1x4xf32>
    %cst_220 = arith.constant 0.327591091 : f32
    %347 = vector.broadcast %cst_220 : f32 to vector<1x4xf32>
    %348 = arith.mulf %347, %346 : vector<1x4xf32>
    %cst_221 = arith.constant 1.000000e+00 : f32
    %349 = vector.broadcast %cst_221 : f32 to vector<1x4xf32>
    %350 = arith.addf %349, %348 : vector<1x4xf32>
    %cst_222 = arith.constant 1.000000e+00 : f32
    %351 = vector.broadcast %cst_222 : f32 to vector<1x4xf32>
    %352 = arith.divf %351, %350 : vector<1x4xf32>
    %cst_223 = arith.constant 1.06140542 : f32
    %353 = vector.broadcast %cst_223 : f32 to vector<1x4xf32>
    %354 = arith.mulf %353, %352 : vector<1x4xf32>
    %cst_224 = arith.constant -1.45315206 : f32
    %355 = vector.broadcast %cst_224 : f32 to vector<1x4xf32>
    %356 = arith.addf %354, %355 : vector<1x4xf32>
    %357 = arith.mulf %356, %352 : vector<1x4xf32>
    %cst_225 = arith.constant 1.42141378 : f32
    %358 = vector.broadcast %cst_225 : f32 to vector<1x4xf32>
    %359 = arith.addf %357, %358 : vector<1x4xf32>
    %360 = arith.mulf %359, %352 : vector<1x4xf32>
    %cst_226 = arith.constant -0.284496725 : f32
    %361 = vector.broadcast %cst_226 : f32 to vector<1x4xf32>
    %362 = arith.addf %360, %361 : vector<1x4xf32>
    %363 = arith.mulf %362, %352 : vector<1x4xf32>
    %cst_227 = arith.constant 0.254829586 : f32
    %364 = vector.broadcast %cst_227 : f32 to vector<1x4xf32>
    %365 = arith.addf %363, %364 : vector<1x4xf32>
    %366 = arith.mulf %365, %352 : vector<1x4xf32>
    %cst_228 = arith.constant 0.000000e+00 : f32
    %367 = vector.broadcast %cst_228 : f32 to vector<1x4xf32>
    %368 = arith.subf %367, %346 : vector<1x4xf32>
    %369 = arith.mulf %368, %346 : vector<1x4xf32>
    %370 = math.exp %369 : vector<1x4xf32>
    %371 = arith.mulf %366, %370 : vector<1x4xf32>
    %cst_229 = arith.constant 1.000000e+00 : f32
    %372 = vector.broadcast %cst_229 : f32 to vector<1x4xf32>
    %373 = arith.subf %372, %371 : vector<1x4xf32>
    %cst_230 = arith.constant 0.000000e+00 : f32
    %374 = vector.broadcast %cst_230 : f32 to vector<1x4xf32>
    %375 = arith.cmpf oge, %345, %374 : vector<1x4xf32>
    %cst_231 = arith.constant 0.000000e+00 : f32
    %376 = vector.broadcast %cst_231 : f32 to vector<1x4xf32>
    %377 = arith.subf %376, %373 : vector<1x4xf32>
    %378 = arith.select %375, %373, %377 : vector<1x4xi1>, vector<1x4xf32>
    %cst_232 = arith.constant 1.000000e+00 : f32
    %379 = vector.broadcast %cst_232 : f32 to vector<1x4xf32>
    %380 = arith.addf %379, %378 : vector<1x4xf32>
    %381 = arith.mulf %343, %380 : vector<1x4xf32>
    %c0_233 = arith.constant 0 : index
    %c0_234 = arith.constant 0 : index
    %382 = vector.load %arg14[%c0_233, %c0_234] : memref<16x4xf32, #tpu.memory_space<vmem>>, vector<16x4xf32>
    %383 = vector.broadcast %381 : vector<1x4xf32> to vector<16x4xf32>
    %384 = arith.mulf %382, %383 : vector<16x4xf32>
    %cst_235 = arith.constant dense<0.000000e+00> : vector<16xf32>
    %385 = vector.multi_reduction <add>, %384, %cst_235 [1] : vector<16x4xf32> to vector<16xf32>
    %386 = vector.shape_cast %385 : vector<16xf32> to vector<16x1xf32>
    %c0_236 = arith.constant 0 : index
    %c0_237 = arith.constant 0 : index
    %387 = vector.load %arg15[%c0_236, %c0_237] : memref<16x1xf32, #tpu.memory_space<vmem>>, vector<16x1xf32>
    %388 = arith.addf %386, %387 : vector<16x1xf32>
    %cst_238 = arith.constant 0.000000e+00 : f32
    %389 = vector.broadcast %cst_238 : f32 to vector<16x1xf32>
    %390 = arith.subf %389, %388 : vector<16x1xf32>
    %391 = math.exp %390 : vector<16x1xf32>
    %cst_239 = arith.constant 1.000000e+00 : f32
    %392 = vector.broadcast %cst_239 : f32 to vector<16x1xf32>
    %393 = arith.addf %392, %391 : vector<16x1xf32>
    %cst_240 = arith.constant 1.000000e+00 : f32
    %394 = vector.broadcast %cst_240 : f32 to vector<16x1xf32>
    %395 = arith.divf %394, %393 : vector<16x1xf32>
    %396 = vector.broadcast %395 : vector<16x1xf32> to vector<16x256xf32>
    %397 = arith.mulf %396, %171 : vector<16x256xf32>
    %398 = arith.addf %330, %397 : vector<16x256xf32>
    %cst_241 = arith.constant dense<0.000000e+00> : vector<16xf32>
    %399 = vector.multi_reduction <add>, %195, %cst_241 [1] : vector<16x256xf32> to vector<16xf32>
    %400 = vector.shape_cast %399 : vector<16xf32> to vector<16x1xf32>
    %cst_242 = arith.constant 2.560000e+02 : f32
    %401 = vector.broadcast %cst_242 : f32 to vector<16x1xf32>
    %402 = arith.divf %400, %401 : vector<16x1xf32>
    %c0_243 = arith.constant 0 : index
    %c0_244 = arith.constant 0 : index
    %403 = vector.load %arg12[%c0_243, %c0_244] : memref<16x4xf32, #tpu.memory_space<vmem>>, vector<16x4xf32>
    %404 = vector.broadcast %402 : vector<16x1xf32> to vector<16x4xf32>
    %405 = arith.mulf %403, %404 : vector<16x4xf32>
    %cst_245 = arith.constant dense<0.000000e+00> : vector<4xf32>
    %406 = vector.multi_reduction <add>, %405, %cst_245 [0] : vector<16x4xf32> to vector<4xf32>
    %407 = vector.shape_cast %406 : vector<4xf32> to vector<1x4xf32>
    %c0_246 = arith.constant 0 : index
    %c0_247 = arith.constant 0 : index
    %408 = vector.load %arg13[%c0_246, %c0_247] : memref<1x4xf32, #tpu.memory_space<vmem>>, vector<1x4xf32>
    %409 = arith.addf %407, %408 : vector<1x4xf32>
    %cst_248 = arith.constant 5.000000e-01 : f32
    %410 = vector.broadcast %cst_248 : f32 to vector<1x4xf32>
    %411 = arith.mulf %410, %409 : vector<1x4xf32>
    %cst_249 = arith.constant 0.707106769 : f32
    %412 = vector.broadcast %cst_249 : f32 to vector<1x4xf32>
    %413 = arith.mulf %409, %412 : vector<1x4xf32>
    %414 = math.absf %413 : vector<1x4xf32>
    %cst_250 = arith.constant 0.327591091 : f32
    %415 = vector.broadcast %cst_250 : f32 to vector<1x4xf32>
    %416 = arith.mulf %415, %414 : vector<1x4xf32>
    %cst_251 = arith.constant 1.000000e+00 : f32
    %417 = vector.broadcast %cst_251 : f32 to vector<1x4xf32>
    %418 = arith.addf %417, %416 : vector<1x4xf32>
    %cst_252 = arith.constant 1.000000e+00 : f32
    %419 = vector.broadcast %cst_252 : f32 to vector<1x4xf32>
    %420 = arith.divf %419, %418 : vector<1x4xf32>
    %cst_253 = arith.constant 1.06140542 : f32
    %421 = vector.broadcast %cst_253 : f32 to vector<1x4xf32>
    %422 = arith.mulf %421, %420 : vector<1x4xf32>
    %cst_254 = arith.constant -1.45315206 : f32
    %423 = vector.broadcast %cst_254 : f32 to vector<1x4xf32>
    %424 = arith.addf %422, %423 : vector<1x4xf32>
    %425 = arith.mulf %424, %420 : vector<1x4xf32>
    %cst_255 = arith.constant 1.42141378 : f32
    %426 = vector.broadcast %cst_255 : f32 to vector<1x4xf32>
    %427 = arith.addf %425, %426 : vector<1x4xf32>
    %428 = arith.mulf %427, %420 : vector<1x4xf32>
    %cst_256 = arith.constant -0.284496725 : f32
    %429 = vector.broadcast %cst_256 : f32 to vector<1x4xf32>
    %430 = arith.addf %428, %429 : vector<1x4xf32>
    %431 = arith.mulf %430, %420 : vector<1x4xf32>
    %cst_257 = arith.constant 0.254829586 : f32
    %432 = vector.broadcast %cst_257 : f32 to vector<1x4xf32>
    %433 = arith.addf %431, %432 : vector<1x4xf32>
    %434 = arith.mulf %433, %420 : vector<1x4xf32>
    %cst_258 = arith.constant 0.000000e+00 : f32
    %435 = vector.broadcast %cst_258 : f32 to vector<1x4xf32>
    %436 = arith.subf %435, %414 : vector<1x4xf32>
    %437 = arith.mulf %436, %414 : vector<1x4xf32>
    %438 = math.exp %437 : vector<1x4xf32>
    %439 = arith.mulf %434, %438 : vector<1x4xf32>
    %cst_259 = arith.constant 1.000000e+00 : f32
    %440 = vector.broadcast %cst_259 : f32 to vector<1x4xf32>
    %441 = arith.subf %440, %439 : vector<1x4xf32>
    %cst_260 = arith.constant 0.000000e+00 : f32
    %442 = vector.broadcast %cst_260 : f32 to vector<1x4xf32>
    %443 = arith.cmpf oge, %413, %442 : vector<1x4xf32>
    %cst_261 = arith.constant 0.000000e+00 : f32
    %444 = vector.broadcast %cst_261 : f32 to vector<1x4xf32>
    %445 = arith.subf %444, %441 : vector<1x4xf32>
    %446 = arith.select %443, %441, %445 : vector<1x4xi1>, vector<1x4xf32>
    %cst_262 = arith.constant 1.000000e+00 : f32
    %447 = vector.broadcast %cst_262 : f32 to vector<1x4xf32>
    %448 = arith.addf %447, %446 : vector<1x4xf32>
    %449 = arith.mulf %411, %448 : vector<1x4xf32>
    %c0_263 = arith.constant 0 : index
    %c0_264 = arith.constant 0 : index
    %450 = vector.load %arg14[%c0_263, %c0_264] : memref<16x4xf32, #tpu.memory_space<vmem>>, vector<16x4xf32>
    %451 = vector.broadcast %449 : vector<1x4xf32> to vector<16x4xf32>
    %452 = arith.mulf %450, %451 : vector<16x4xf32>
    %cst_265 = arith.constant dense<0.000000e+00> : vector<16xf32>
    %453 = vector.multi_reduction <add>, %452, %cst_265 [1] : vector<16x4xf32> to vector<16xf32>
    %454 = vector.shape_cast %453 : vector<16xf32> to vector<16x1xf32>
    %c0_266 = arith.constant 0 : index
    %c0_267 = arith.constant 0 : index
    %455 = vector.load %arg15[%c0_266, %c0_267] : memref<16x1xf32, #tpu.memory_space<vmem>>, vector<16x1xf32>
    %456 = arith.addf %454, %455 : vector<16x1xf32>
    %cst_268 = arith.constant 0.000000e+00 : f32
    %457 = vector.broadcast %cst_268 : f32 to vector<16x1xf32>
    %458 = arith.subf %457, %456 : vector<16x1xf32>
    %459 = math.exp %458 : vector<16x1xf32>
    %cst_269 = arith.constant 1.000000e+00 : f32
    %460 = vector.broadcast %cst_269 : f32 to vector<16x1xf32>
    %461 = arith.addf %460, %459 : vector<16x1xf32>
    %cst_270 = arith.constant 1.000000e+00 : f32
    %462 = vector.broadcast %cst_270 : f32 to vector<16x1xf32>
    %463 = arith.divf %462, %461 : vector<16x1xf32>
    %464 = vector.broadcast %463 : vector<16x1xf32> to vector<16x256xf32>
    %465 = arith.mulf %464, %195 : vector<16x256xf32>
    %466 = arith.addf %398, %465 : vector<16x256xf32>
    %467 = arith.addf %466, %135 : vector<16x256xf32>
    %cst_271 = arith.constant 0.000000e+00 : f32
    %468 = vector.broadcast %cst_271 : f32 to vector<16x256xf32>
    %469 = arith.maximumf %467, %468 : vector<16x256xf32>
    %470 = arith.truncf %469 : vector<16x256xf32> to vector<16x256xbf16>
    %c0_272 = arith.constant 0 : index
    %c0_273 = arith.constant 0 : index
    %c0_274 = arith.constant 0 : index
    %471 = vector.load %arg16[%c0_272, %c0_273, %c0_274] : memref<1x16x256xbf16, #tpu.memory_space<vmem>>, vector<1x16x256xbf16>
    %472 = vector.shape_cast %471 : vector<1x16x256xbf16> to vector<16x256xbf16>
    %473 = vector.shape_cast %470 : vector<16x256xbf16> to vector<1x16x256xbf16>
    tpu.vector_store %arg16[%c0_272, %c0_273, %c0_274], %473 {strides = array<i32>} : memref<1x16x256xbf16, #tpu.memory_space<vmem>>, vector<1x16x256xbf16>,
    return
  }
  func.func @transform_0(%arg0: i32) -> (i32, i32, i32) {
    %c0_i32 = arith.constant 0 : i32
    %c0_i32_0 = arith.constant 0 : i32
    %c0_i32_1 = arith.constant 0 : i32
    return %arg0, %c0_i32, %c0_i32_0 : i32, i32, i32
  }
  func.func @transform_1(%arg0: i32) -> (i32, i32) {
    %c0_i32 = arith.constant 0 : i32
    %c0_i32_0 = arith.constant 0 : i32
    %c0_i32_1 = arith.constant 0 : i32
    return %c0_i32, %c0_i32_0 : i32, i32
  }
  func.func @transform_2(%arg0: i32) -> (i32, i32) {
    %c0_i32 = arith.constant 0 : i32
    %c0_i32_0 = arith.constant 0 : i32
    %c0_i32_1 = arith.constant 0 : i32
    return %c0_i32, %c0_i32_0 : i32, i32
  }
  func.func @transform_3(%arg0: i32) -> (i32, i32) {
    %c0_i32 = arith.constant 0 : i32
    %c0_i32_0 = arith.constant 0 : i32
    %c0_i32_1 = arith.constant 0 : i32
    return %c0_i32, %c0_i32_0 : i32, i32
  }
  func.func @transform_4(%arg0: i32) -> (i32, i32) {
    %c0_i32 = arith.constant 0 : i32
    %c0_i32_0 = arith.constant 0 : i32
    %c0_i32_1 = arith.constant 0 : i32
    return %c0_i32, %c0_i32_0 : i32, i32
  }
  func.func @transform_5(%arg0: i32) -> (i32, i32) {
    %c0_i32 = arith.constant 0 : i32
    %c0_i32_0 = arith.constant 0 : i32
    %c0_i32_1 = arith.constant 0 : i32
    return %c0_i32, %c0_i32_0 : i32, i32
  }
  func.func @transform_6(%arg0: i32) -> (i32, i32) {
    %c0_i32 = arith.constant 0 : i32
    %c0_i32_0 = arith.constant 0 : i32
    %c0_i32_1 = arith.constant 0 : i32
    return %c0_i32, %c0_i32_0 : i32, i32
  }
  func.func @transform_7(%arg0: i32) -> (i32, i32) {
    %c0_i32 = arith.constant 0 : i32
    %c0_i32_0 = arith.constant 0 : i32
    %c0_i32_1 = arith.constant 0 : i32
    return %c0_i32, %c0_i32_0 : i32, i32
  }
  func.func @transform_8(%arg0: i32) -> (i32, i32) {
    %c0_i32 = arith.constant 0 : i32
    %c0_i32_0 = arith.constant 0 : i32
    %c0_i32_1 = arith.constant 0 : i32
    return %c0_i32, %c0_i32_0 : i32, i32
  }
  func.func @transform_9(%arg0: i32) -> (i32, i32) {
    %c0_i32 = arith.constant 0 : i32
    %c0_i32_0 = arith.constant 0 : i32
    %c0_i32_1 = arith.constant 0 : i32
    return %c0_i32, %c0_i32_0 : i32, i32
  }
  func.func @transform_10(%arg0: i32) -> (i32, i32) {
    %c0_i32 = arith.constant 0 : i32
    %c0_i32_0 = arith.constant 0 : i32
    %c0_i32_1 = arith.constant 0 : i32
    return %c0_i32, %c0_i32_0 : i32, i32
  }
  func.func @transform_11(%arg0: i32) -> (i32, i32) {
    %c0_i32 = arith.constant 0 : i32
    %c0_i32_0 = arith.constant 0 : i32
    %c0_i32_1 = arith.constant 0 : i32
    return %c0_i32, %c0_i32_0 : i32, i32
  }
  func.func @transform_12(%arg0: i32) -> (i32, i32) {
    %c0_i32 = arith.constant 0 : i32
    %c0_i32_0 = arith.constant 0 : i32
    %c0_i32_1 = arith.constant 0 : i32
    return %c0_i32, %c0_i32_0 : i32, i32
  }
  func.func @transform_13(%arg0: i32) -> (i32, i32) {
    %c0_i32 = arith.constant 0 : i32
    %c0_i32_0 = arith.constant 0 : i32
    %c0_i32_1 = arith.constant 0 : i32
    return %c0_i32, %c0_i32_0 : i32, i32
  }
  func.func @transform_14(%arg0: i32) -> (i32, i32) {
    %c0_i32 = arith.constant 0 : i32
    %c0_i32_0 = arith.constant 0 : i32
    %c0_i32_1 = arith.constant 0 : i32
    return %c0_i32, %c0_i32_0 : i32, i32
  }
  func.func @transform_15(%arg0: i32) -> (i32, i32, i32) {
    %c0_i32 = arith.constant 0 : i32
    %c0_i32_0 = arith.constant 0 : i32
    %c0_i32_1 = arith.constant 0 : i32
    return %arg0, %c0_i32, %c0_i32_0 : i32, i32, i32
  }
}

</mosaic_0001>

<llo_original>
// kernel: gcm_forward.1
$region0: #{gcm_forward.1}
  #allocation0 [shape = 'u32[]', space=smem, size = 0x4, offset = 0x4, fixed_abs, tag = 'smem constant byte address 0x4 - core index']
  #allocation1 [shape = 'u32[144,128]{1,0:T(1,128)}', space=vmem, size = 0x12000, scoped, tag = 'internal scratch']
  #allocation2 [shape = 'bf16[16,512]{1,0:T(16,128)(2,1)}', space=vmem, size = 0x4000, scoped, tag = 'scratch operand']
  #allocation3 [shape = 'bf16[128,256]{1,0:T(16,128)(2,1)}', space=vmem, size = 0x10000, scoped, tag = 'scratch operand']
  #allocation4 [shape = 'bf16[112,256]{1,0:T(16,128)(2,1)}', space=vmem, size = 0xe000, scoped, tag = 'scratch operand']
  %s0 = inlined_call_operand.hbm [shape: bf16[2,16,256], index: 0, kind: input, shape index: {}]
  %s1 = inlined_call_operand.hbm [shape: bf16[32,32], index: 1, kind: input, shape index: {}]
  %s2 = inlined_call_operand.hbm [shape: bf16[16,64], index: 2, kind: input, shape index: {}]
  %s3 = inlined_call_operand.hbm [shape: bf16[16,96], index: 3, kind: input, shape index: {}]
  %s4 = inlined_call_operand.hbm [shape: bf16[16,128], index: 4, kind: input, shape index: {}]
  %s5 = inlined_call_operand.hbm [shape: bf16[16,48], index: 5, kind: input, shape index: {}]
  %s6 = inlined_call_operand.hbm [shape: f32[16,1], index: 6, kind: input, shape index: {}]
  %s7 = inlined_call_operand.hbm [shape: bf16[16,80], index: 7, kind: input, shape index: {}]
  %s8 = inlined_call_operand.hbm [shape: f32[16,1], index: 8, kind: input, shape index: {}]
  %s9 = inlined_call_operand.hbm [shape: bf16[16,112], index: 9, kind: input, shape index: {}]
  %s10 = inlined_call_operand.hbm [shape: f32[16,1], index: 10, kind: input, shape index: {}]
  %s11 = inlined_call_operand.hbm [shape: f32[16,4], index: 11, kind: input, shape index: {}]
  %s12 = inlined_call_operand.hbm [shape: f32[1,4], index: 12, kind: input, shape index: {}]
  %s13 = inlined_call_operand.hbm [shape: f32[16,4], index: 13, kind: input, shape index: {}]
  %s14 = inlined_call_operand.hbm [shape: f32[16,1], index: 14, kind: input, shape index: {}]
  %s15 = inlined_call_operand.hbm [shape: bf16[2,16,256], index: 15, kind: output, shape index: {}]
  %s16 = sld [smem:[#allocation0]]
  $region153: #{gcm_forward.1} parent=0
    _
  %s18 = ssub.s32 1, %s16
  %s19 = scalar_select 0, %s18, %s16
  $region1: #{gcm_forward.1} parent=0
    #allocation5 [shape = 'u8[16384]{0}', space=vmem, size = 0x4000, scoped, tag = 'input window, operand 0']
    #allocation6 [shape = 's32[2]{0}', space=sflag, size = 0x8, scoped, tag = 'scoped memory for gcm_forward.1']
    #allocation7 [shape = 's32[2]{0}', space=sflag, size = 0x8, scoped, tag = 'scoped memory for gcm_forward.1']
    #allocation8 [shape = 'u8[8192]{0}', space=vmem, size = 0x2000, scoped, tag = 'input window, operand 1, single buffered']
    #allocation9 [shape = 's32[1]{0}', space=sflag, size = 0x4, scoped, tag = 'scoped memory for gcm_forward.1']
    #allocation10 [shape = 'u8[4096]{0}', space=vmem, size = 0x1000, scoped, tag = 'input window, operand 2, single buffered']
    #allocation11 [shape = 'u8[4096]{0}', space=vmem, size = 0x1000, scoped, tag = 'input window, operand 3, single buffered']
    #allocation12 [shape = 's32[1]{0}', space=sflag, size = 0x4, scoped, tag = 'scoped memory for gcm_forward.1']
    #allocation13 [shape = 'u8[4096]{0}', space=vmem, size = 0x1000, scoped, tag = 'input window, operand 4, single buffered']
    #allocation14 [shape = 'u8[4096]{0}', space=vmem, size = 0x1000, scoped, tag = 'input window, operand 5, single buffered']
    #allocation15 [shape = 's32[1]{0}', space=sflag, size = 0x4, scoped, tag = 'scoped memory for gcm_forward.1']
    #allocation16 [shape = 'u8[8192]{0}', space=vmem, size = 0x2000, scoped, tag = 'input window, operand 6, single buffered']
    #allocation17 [shape = 'u8[4096]{0}', space=vmem, size = 0x1000, scoped, tag = 'input window, operand 7, single buffered']
    #allocation18 [shape = 's32[1]{0}', space=sflag, size = 0x4, scoped, tag = 'scoped memory for gcm_forward.1']
    #allocation19 [shape = 'u8[8192]{0}', space=vmem, size = 0x2000, scoped, tag = 'input window, operand 8, single buffered']
    #allocation20 [shape = 'u8[4096]{0}', space=vmem, size = 0x1000, scoped, tag = 'input window, operand 9, single buffered']
    #allocation21 [shape = 's32[1]{0}', space=sflag, size = 0x4, scoped, tag = 'scoped memory for gcm_forward.1']
    #allocation22 [shape = 'u8[8192]{0}', space=vmem, size = 0x2000, scoped, tag = 'input window, operand 10, single buffered']
    #allocation23 [shape = 'u8[8192]{0}', space=vmem, size = 0x2000, scoped, tag = 'input window, operand 11, single buffered']
    #allocation24 [shape = 's32[1]{0}', space=sflag, size = 0x4, scoped, tag = 'scoped memory for gcm_forward.1']
    #allocation25 [shape = 'u8[512]{0}', space=vmem, size = 0x400, scoped, tag = 'input window, operand 12, single buffered']
    #allocation26 [shape = 'u8[8192]{0}', space=vmem, size = 0x2000, scoped, tag = 'input window, operand 13, single buffered']
    #allocation27 [shape = 's32[1]{0}', space=sflag, size = 0x4, scoped, tag = 'scoped memory for gcm_forward.1']
    #allocation28 [shape = 'u8[8192]{0}', space=vmem, size = 0x2000, scoped, tag = 'input window, operand 14, single buffered']
    #allocation29 [shape = 'u8[16384]{0}', space=vmem, size = 0x4000, scoped, tag = 'output window, operand 0']
    %20 = vsyncpa [#allocation6], 0
    %s21 = scalar_lea.sflag [#allocation6], 1
    %22 = vsyncpa %s21, 0
    %23 = vsyncpa [#allocation9], 0
    %24 = vsyncpa [#allocation12], 0
    %25 = vsyncpa [#allocation15], 0
    %26 = vsyncpa [#allocation18], 0
    %27 = vsyncpa [#allocation21], 0
    %28 = vsyncpa [#allocation24], 0
    %29 = vsyncpa [#allocation27], 0
    %30 = vsyncpa [#allocation7], 0
    %s31 = scalar_lea.sflag [#allocation7], 1
    %32 = vsyncpa %s31, 0
    loop: start=0, step=1, limit=4
    $region2: #{gcm_forward.1} parent=1 // loop_pre_header
      _
    $region3: #{gcm_forward.1} parent=1 // loop_header
      %s34 = sphi 0, %s38
      %p35 = scmp.ge.s32.totalorder %s34, 4
      %s44 = sphi 0, %s46
      %s47 = sphi 0, %s44
      %s48 = sphi 0, %s47
      %s64 = sphi 0, %s48
      %s68 = sphi 0, %s68
      %s70 = sphi 0, %s68
      %s71 = sphi 0, %s70
      %s85 = sphi 0, %s71
      %s89 = sphi 0, %s89
      %s91 = sphi 0, %s89
      %s92 = sphi 0, %s91
      %s106 = sphi 0, %s92
      %s110 = sphi 0, %s110
      %s112 = sphi 0, %s110
      %s113 = sphi 0, %s112
      %s127 = sphi 0, %s113
      %s131 = sphi 0, %s131
      %s133 = sphi 0, %s131
      %s134 = sphi 0, %s133
      %s148 = sphi 0, %s134
      %s152 = sphi 0, %s152
      %s154 = sphi 0, %s152
      %s155 = sphi 0, %s154
      %s169 = sphi 0, %s155
      %s173 = sphi 0, %s173
      %s175 = sphi 0, %s173
      %s176 = sphi 0, %s175
      %s190 = sphi 0, %s176
      %s194 = sphi 0, %s194
      %s196 = sphi 0, %s194
      %s197 = sphi 0, %s196
      %s211 = sphi 0, %s197
      %s215 = sphi 0, %s215
      %s217 = sphi 0, %s215
      %s218 = sphi 0, %s217
      %s232 = sphi 0, %s218
      %s236 = sphi 0, %s236
      %s238 = sphi 0, %s236
      %s239 = sphi 0, %s238
      %s253 = sphi 0, %s239
      %s257 = sphi 0, %s257
      %s259 = sphi 0, %s257
      %s260 = sphi 0, %s259
      %s274 = sphi 0, %s260
      %s278 = sphi 0, %s278
      %s280 = sphi 0, %s278
      %s281 = sphi 0, %s280
      %s295 = sphi 0, %s281
      %s299 = sphi 0, %s299
      %s301 = sphi 0, %s299
      %s302 = sphi 0, %s301
      %s316 = sphi 0, %s302
      %s320 = sphi 0, %s320
      %s322 = sphi 0, %s320
      %s323 = sphi 0, %s322
      %s337 = sphi 0, %s323
      %s341 = sphi 0, %s341
      %s343 = sphi 0, %s341
      %s344 = sphi 0, %s343
      %s358 = sphi 0, %s344
      %s364 = sphi 0, %s366
      %s367 = sphi 0, %s364
      %s368 = sphi 0, %s367
      %s384 = sphi 0, %s368
    $region4: #{gcm_forward.1} parent=1 // loop_header_branch
      %37 = sbr.rel (%p35) target = $region8
    $region5: #{gcm_forward.1} parent=1 // loop_body
      %s39 = ssub.s32 %s34, 1
      %s40 = ssub.s32 %s34, 2
      %s41 = sadd.s32 %s34, 1
      %s42 = ssub.s32 %s34, %s41
      %p43 = scmp.eq.s32.totalorder %s42, 0
      %s45 = sadd.s32 %s44, 1
      %s46 = scalar_select %p43, %s44, %s45
      %p49 = pneg %p43
      %p50 = scmp.eq.s32.totalorder %s34, 1
      %p51 = por %p49, %p50
      %p52 = scmp.ne.s32.totalorder %s44, %s47
      %p53 = scmp.eq.s32.totalorder %s34, 0
      %p54 = por %p52, %p53
      %p55 = scmp.ne.s32.totalorder %s44, %s47
      %p56 = scmp.eq.s32.totalorder %s39, 1
      %p57 = por %p55, %p56
      %p58 = scmp.ne.s32.totalorder %s47, %s48
      %p59 = scmp.eq.s32.totalorder %s39, 0
      %p60 = por %p58, %p59
      %p61 = scmp.ne.s32.totalorder %s47, %s48
      %p62 = scmp.eq.s32.totalorder %s40, 1
      %p63 = por %p61, %p62
      %p65 = scmp.ne.s32.totalorder %s48, %s64
      %p66 = scmp.eq.s32.totalorder %s40, 0
      %p67 = por %p65, %p66
      %s69 = sadd.s32 %s68, 1
      %p72 = scmp.eq.s32.totalorder %s34, 1
      %p73 = scmp.ne.s32.totalorder %s68, %s70
      %p74 = scmp.eq.s32.totalorder %s34, 0
      %p75 = por %p73, %p74
      %p76 = scmp.ne.s32.totalorder %s68, %s70
      %p77 = scmp.eq.s32.totalorder %s39, 1
      %p78 = por %p76, %p77
      %p79 = scmp.ne.s32.totalorder %s70, %s71
      %p80 = scmp.eq.s32.totalorder %s39, 0
      %p81 = por %p79, %p80
      %p82 = scmp.ne.s32.totalorder %s70, %s71
      %p83 = scmp.eq.s32.totalorder %s40, 1
      %p84 = por %p82, %p83
      %p86 = scmp.ne.s32.totalorder %s71, %s85
      %p87 = scmp.eq.s32.totalorder %s40, 0
      %p88 = por %p86, %p87
      %s90 = sadd.s32 %s89, 1
      %p93 = scmp.eq.s32.totalorder %s34, 1
      %p94 = scmp.ne.s32.totalorder %s89, %s91
      %p95 = scmp.eq.s32.totalorder %s34, 0
      %p96 = por %p94, %p95
      %p97 = scmp.ne.s32.totalorder %s89, %s91
      %p98 = scmp.eq.s32.totalorder %s39, 1
      %p99 = por %p97, %p98
      %p100 = scmp.ne.s32.totalorder %s91, %s92
      %p101 = scmp.eq.s32.totalorder %s39, 0
      %p102 = por %p100, %p101
      %p103 = scmp.ne.s32.totalorder %s91, %s92
      %p104 = scmp.eq.s32.totalorder %s40, 1
      %p105 = por %p103, %p104
      %p107 = scmp.ne.s32.totalorder %s92, %s106
      %p108 = scmp.eq.s32.totalorder %s40, 0
      %p109 = por %p107, %p108
      %s111 = sadd.s32 %s110, 1
      %p114 = scmp.eq.s32.totalorder %s34, 1
      %p115 = scmp.ne.s32.totalorder %s110, %s112
      %p116 = scmp.eq.s32.totalorder %s34, 0
      %p117 = por %p115, %p116
      %p118 = scmp.ne.s32.totalorder %s110, %s112
      %p119 = scmp.eq.s32.totalorder %s39, 1
      %p120 = por %p118, %p119
      %p121 = scmp.ne.s32.totalorder %s112, %s113
      %p122 = scmp.eq.s32.totalorder %s39, 0
      %p123 = por %p121, %p122
      %p124 = scmp.ne.s32.totalorder %s112, %s113
      %p125 = scmp.eq.s32.totalorder %s40, 1
      %p126 = por %p124, %p125
      %p128 = scmp.ne.s32.totalorder %s113, %s127
      %p129 = scmp.eq.s32.totalorder %s40, 0
      %p130 = por %p128, %p129
      %s132 = sadd.s32 %s131, 1
      %p135 = scmp.eq.s32.totalorder %s34, 1
      %p136 = scmp.ne.s32.totalorder %s131, %s133
      %p137 = scmp.eq.s32.totalorder %s34, 0
      %p138 = por %p136, %p137
      %p139 = scmp.ne.s32.totalorder %s131, %s133
      %p140 = scmp.eq.s32.totalorder %s39, 1
      %p141 = por %p139, %p140
      %p142 = scmp.ne.s32.totalorder %s133, %s134
      %p143 = scmp.eq.s32.totalorder %s39, 0
      %p144 = por %p142, %p143
      %p145 = scmp.ne.s32.totalorder %s133, %s134
      %p146 = scmp.eq.s32.totalorder %s40, 1
      %p147 = por %p145, %p146
      %p149 = scmp.ne.s32.totalorder %s134, %s148
      %p150 = scmp.eq.s32.totalorder %s40, 0
      %p151 = por %p149, %p150
      %s153 = sadd.s32 %s152, 1
      %p156 = scmp.eq.s32.totalorder %s34, 1
      %p157 = scmp.ne.s32.totalorder %s152, %s154
      %p158 = scmp.eq.s32.totalorder %s34, 0
      %p159 = por %p157, %p158
      %p160 = scmp.ne.s32.totalorder %s152, %s154
      %p161 = scmp.eq.s32.totalorder %s39, 1
      %p162 = por %p160, %p161
      %p163 = scmp.ne.s32.totalorder %s154, %s155
      %p164 = scmp.eq.s32.totalorder %s39, 0
      %p165 = por %p163, %p164
      %p166 = scmp.ne.s32.totalorder %s154, %s155
      %p167 = scmp.eq.s32.totalorder %s40, 1
      %p168 = por %p166, %p167
      %p170 = scmp.ne.s32.totalorder %s155, %s169
      %p171 = scmp.eq.s32.totalorder %s40, 0
      %p172 = por %p170, %p171
      %s174 = sadd.s32 %s173, 1
      %p177 = scmp.eq.s32.totalorder %s34, 1
      %p178 = scmp.ne.s32.totalorder %s173, %s175
      %p179 = scmp.eq.s32.totalorder %s34, 0
      %p180 = por %p178, %p179
      %p181 = scmp.ne.s32.totalorder %s173, %s175
      %p182 = scmp.eq.s32.totalorder %s39, 1
      %p183 = por %p181, %p182
      %p184 = scmp.ne.s32.totalorder %s175, %s176
      %p185 = scmp.eq.s32.totalorder %s39, 0
      %p186 = por %p184, %p185
      %p187 = scmp.ne.s32.totalorder %s175, %s176
      %p188 = scmp.eq.s32.totalorder %s40, 1
      %p189 = por %p187, %p188
      %p191 = scmp.ne.s32.totalorder %s176, %s190
      %p192 = scmp.eq.s32.totalorder %s40, 0
      %p193 = por %p191, %p192
      %s195 = sadd.s32 %s194, 1
      %p198 = scmp.eq.s32.totalorder %s34, 1
      %p199 = scmp.ne.s32.totalorder %s194, %s196
      %p200 = scmp.eq.s32.totalorder %s34, 0
      %p201 = por %p199, %p200
      %p202 = scmp.ne.s32.totalorder %s194, %s196
      %p203 = scmp.eq.s32.totalorder %s39, 1
      %p204 = por %p202, %p203
      %p205 = scmp.ne.s32.totalorder %s196, %s197
      %p206 = scmp.eq.s32.totalorder %s39, 0
      %p207 = por %p205, %p206
      %p208 = scmp.ne.s32.totalorder %s196, %s197
      %p209 = scmp.eq.s32.totalorder %s40, 1
      %p210 = por %p208, %p209
      %p212 = scmp.ne.s32.totalorder %s197, %s211
      %p213 = scmp.eq.s32.totalorder %s40, 0
      %p214 = por %p212, %p213
      %s216 = sadd.s32 %s215, 1
      %p219 = scmp.eq.s32.totalorder %s34, 1
      %p220 = scmp.ne.s32.totalorder %s215, %s217
      %p221 = scmp.eq.s32.totalorder %s34, 0
      %p222 = por %p220, %p221
      %p223 = scmp.ne.s32.totalorder %s215, %s217
      %p224 = scmp.eq.s32.totalorder %s39, 1
      %p225 = por %p223, %p224
      %p226 = scmp.ne.s32.totalorder %s217, %s218
      %p227 = scmp.eq.s32.totalorder %s39, 0
      %p228 = por %p226, %p227
      %p229 = scmp.ne.s32.totalorder %s217, %s218
      %p230 = scmp.eq.s32.totalorder %s40, 1
      %p231 = por %p229, %p230
      %p233 = scmp.ne.s32.totalorder %s218, %s232
      %p234 = scmp.eq.s32.totalorder %s40, 0
      %p235 = por %p233, %p234
      %s237 = sadd.s32 %s236, 1
      %p240 = scmp.eq.s32.totalorder %s34, 1
      %p241 = scmp.ne.s32.totalorder %s236, %s238
      %p242 = scmp.eq.s32.totalorder %s34, 0
      %p243 = por %p241, %p242
      %p244 = scmp.ne.s32.totalorder %s236, %s238
      %p245 = scmp.eq.s32.totalorder %s39, 1
      %p246 = por %p244, %p245
      %p247 = scmp.ne.s32.totalorder %s238, %s239
      %p248 = scmp.eq.s32.totalorder %s39, 0
      %p249 = por %p247, %p248
      %p250 = scmp.ne.s32.totalorder %s238, %s239
      %p251 = scmp.eq.s32.totalorder %s40, 1
      %p252 = por %p250, %p251
      %p254 = scmp.ne.s32.totalorder %s239, %s253
      %p255 = scmp.eq.s32.totalorder %s40, 0
      %p256 = por %p254, %p255
      %s258 = sadd.s32 %s257, 1
      %p261 = scmp.eq.s32.totalorder %s34, 1
      %p262 = scmp.ne.s32.totalorder %s257, %s259
      %p263 = scmp.eq.s32.totalorder %s34, 0
      %p264 = por %p262, %p263
      %p265 = scmp.ne.s32.totalorder %s257, %s259
      %p266 = scmp.eq.s32.totalorder %s39, 1
      %p267 = por %p265, %p266
      %p268 = scmp.ne.s32.totalorder %s259, %s260
      %p269 = scmp.eq.s32.totalorder %s39, 0
      %p270 = por %p268, %p269
      %p271 = scmp.ne.s32.totalorder %s259, %s260
      %p272 = scmp.eq.s32.totalorder %s40, 1
      %p273 = por %p271, %p272
      %p275 = scmp.ne.s32.totalorder %s260, %s274
      %p276 = scmp.eq.s32.totalorder %s40, 0
      %p277 = por %p275, %p276
      %s279 = sadd.s32 %s278, 1
      %p282 = scmp.eq.s32.totalorder %s34, 1
      %p283 = scmp.ne.s32.totalorder %s278, %s280
      %p284 = scmp.eq.s32.totalorder %s34, 0
      %p285 = por %p283, %p284
      %p286 = scmp.ne.s32.totalorder %s278, %s280
      %p287 = scmp.eq.s32.totalorder %s39, 1
      %p288 = por %p286, %p287
      %p289 = scmp.ne.s32.totalorder %s280, %s281
      %p290 = scmp.eq.s32.totalorder %s39, 0
      %p291 = por %p289, %p290
      %p292 = scmp.ne.s32.totalorder %s280, %s281
      %p293 = scmp.eq.s32.totalorder %s40, 1
      %p294 = por %p292, %p293
      %p296 = scmp.ne.s32.totalorder %s281, %s295
      %p297 = scmp.eq.s32.totalorder %s40, 0
      %p298 = por %p296, %p297
      %s300 = sadd.s32 %s299, 1
      %p303 = scmp.eq.s32.totalorder %s34, 1
      %p304 = scmp.ne.s32.totalorder %s299, %s301
      %p305 = scmp.eq.s32.totalorder %s34, 0
      %p306 = por %p304, %p305
      %p307 = scmp.ne.s32.totalorder %s299, %s301
      %p308 = scmp.eq.s32.totalorder %s39, 1
      %p309 = por %p307, %p308
      %p310 = scmp.ne.s32.totalorder %s301, %s302
      %p311 = scmp.eq.s32.totalorder %s39, 0
      %p312 = por %p310, %p311
      %p313 = scmp.ne.s32.totalorder %s301, %s302
      %p314 = scmp.eq.s32.totalorder %s40, 1
      %p315 = por %p313, %p314
      %p317 = scmp.ne.s32.totalorder %s302, %s316
      %p318 = scmp.eq.s32.totalorder %s40, 0
      %p319 = por %p317, %p318
      %s321 = sadd.s32 %s320, 1
      %p324 = scmp.eq.s32.totalorder %s34, 1
      %p325 = scmp.ne.s32.totalorder %s320, %s322
      %p326 = scmp.eq.s32.totalorder %s34, 0
      %p327 = por %p325, %p326
      %p328 = scmp.ne.s32.totalorder %s320, %s322
      %p329 = scmp.eq.s32.totalorder %s39, 1
      %p330 = por %p328, %p329
      %p331 = scmp.ne.s32.totalorder %s322, %s323
      %p332 = scmp.eq.s32.totalorder %s39, 0
      %p333 = por %p331, %p332
      %p334 = scmp.ne.s32.totalorder %s322, %s323
      %p335 = scmp.eq.s32.totalorder %s40, 1
      %p336 = por %p334, %p335
      %p338 = scmp.ne.s32.totalorder %s323, %s337
      %p339 = scmp.eq.s32.totalorder %s40, 0
      %p340 = por %p338, %p339
      %s342 = sadd.s32 %s341, 1
      %p345 = scmp.eq.s32.totalorder %s34, 1
      %p346 = scmp.ne.s32.totalorder %s341, %s343
      %p347 = scmp.eq.s32.totalorder %s34, 0
      %p348 = por %p346, %p347
      %p349 = scmp.ne.s32.totalorder %s341, %s343
      %p350 = scmp.eq.s32.totalorder %s39, 1
      %p351 = por %p349, %p350
      %p352 = scmp.ne.s32.totalorder %s343, %s344
      %p353 = scmp.eq.s32.totalorder %s39, 0
      %p354 = por %p352, %p353
      %p355 = scmp.ne.s32.totalorder %s343, %s344
      %p356 = scmp.eq.s32.totalorder %s40, 1
      %p357 = por %p355, %p356
      %p359 = scmp.ne.s32.totalorder %s344, %s358
      %p360 = scmp.eq.s32.totalorder %s40, 0
      %p361 = por %p359, %p360
      %s362 = ssub.s32 %s34, %s41
      %p363 = scmp.eq.s32.totalorder %s362, 0
      %s365 = sadd.s32 %s364, 1
      %s366 = scalar_select %p363, %s364, %s365
      %p369 = pneg %p363
      %p370 = scmp.eq.s32.totalorder %s34, 1
      %p371 = por %p369, %p370
      %p372 = scmp.ne.s32.totalorder %s364, %s367
      %p373 = scmp.eq.s32.totalorder %s34, 0
      %p374 = por %p372, %p373
      %p375 = scmp.ne.s32.totalorder %s364, %s367
      %p376 = scmp.eq.s32.totalorder %s39, 1
      %p377 = por %p375, %p376
      %p378 = scmp.ne.s32.totalorder %s367, %s368
      %p379 = scmp.eq.s32.totalorder %s39, 0
      %p380 = por %p378, %p379
      %p381 = scmp.ne.s32.totalorder %s367, %s368
      %p382 = scmp.eq.s32.totalorder %s40, 1
      %p383 = por %p381, %p382
      %p385 = scmp.ne.s32.totalorder %s368, %s384
      %p386 = scmp.eq.s32.totalorder %s40, 0
      %p387 = por %p385, %p386
      %p388 = scmp.le.s32.totalorder 1, %s34
      %p389 = scmp.lt.s32.totalorder %s34, 3
      %p390 = pnand %p388, %p389
      %p391 = pneg %p390
      // Predicated region
      $region9: #{gcm_forward.1} parent=5 // pred_check
        _
      $region10: #{gcm_forward.1} parent=5 // pred_check_branch
        %393 = sbr.rel (%p390) target = $region12
      $region11: #{gcm_forward.1} parent=5 // pred_region
        %s394 = ssub.s32 %s34, 1
        // Predicated region
        $region13: #{gcm_forward.1} parent=11 // pred_check
          %p395 = pneg %p81
        $region14: #{gcm_forward.1} parent=11 // pred_check_branch
          %397 = sbr.rel (%p395) target = $region16
        $region15: #{gcm_forward.1} parent=11 // pred_region
          %s399 = ssub.s32 256, 256
          %400 = vsyncadd [#allocation9], %s399
          %s401 = sshll.u32 [#allocation8], 4
          %s402 = int_to_ptr.vmem [resolvable:$true] %s401
          %407 = dma.hbm_to_vmem [thread:$0]  %s1, 256, %s402, [#allocation9], 64, 64, 4
        $region16: #{gcm_forward.1} parent=11 // pred_fallthru
          _
        // Predicated region
        $region17: #{gcm_forward.1} parent=11 // pred_check
          %p408 = pneg %p102
        $region18: #{gcm_forward.1} parent=11 // pred_check_branch
          %410 = sbr.rel (%p408) target = $region20
        $region19: #{gcm_forward.1} parent=11 // pred_region
          %s412 = ssub.s32 128, 128
          %413 = vsyncadd [#allocation9], %s412
          %s414 = sshll.u32 [#allocation10], 4
          %s415 = int_to_ptr.vmem [resolvable:$true] %s414
          %420 = dma.hbm_to_vmem [thread:$0]  %s2, 128, %s415, [#allocation9], 64, 64, 4
        $region20: #{gcm_forward.1} parent=11 // pred_fallthru
          _
        // Predicated region
        $region21: #{gcm_forward.1} parent=11 // pred_check
          %p421 = pneg %p123
        $region22: #{gcm_forward.1} parent=11 // pred_check_branch
          %423 = sbr.rel (%p421) target = $region24
        $region23: #{gcm_forward.1} parent=11 // pred_region
          %s425 = ssub.s32 128, 128
          %426 = vsyncadd [#allocation12], %s425
          %s427 = sshll.u32 [#allocation11], 4
          %s428 = int_to_ptr.vmem [resolvable:$true] %s427
          %433 = dma.hbm_to_vmem [thread:$0]  %s3, 128, %s428, [#allocation12], 64, 64, 4
        $region24: #{gcm_forward.1} parent=11 // pred_fallthru
          _
        // Predicated region
        $region25: #{gcm_forward.1} parent=11 // pred_check
          %p434 = pneg %p144
        $region26: #{gcm_forward.1} parent=11 // pred_check_branch
          %436 = sbr.rel (%p434) target = $region28
        $region27: #{gcm_forward.1} parent=11 // pred_region
          %s438 = ssub.s32 128, 128
          %439 = vsyncadd [#allocation12], %s438
          %s440 = sshll.u32 [#allocation13], 4
          %s441 = int_to_ptr.vmem [resolvable:$true] %s440
          %446 = dma.hbm_to_vmem [thread:$0]  %s4, 128, %s441, [#allocation12], 64, 64, 4
        $region28: #{gcm_forward.1} parent=11 // pred_fallthru
          _
        // Predicated region
        $region29: #{gcm_forward.1} parent=11 // pred_check
          %p447 = pneg %p165
        $region30: #{gcm_forward.1} parent=11 // pred_check_branch
          %449 = sbr.rel (%p447) target = $region32
        $region31: #{gcm_forward.1} parent=11 // pred_region
          %s451 = ssub.s32 128, 128
          %452 = vsyncadd [#allocation15], %s451
          %s453 = sshll.u32 [#allocation14], 4
          %s454 = int_to_ptr.vmem [resolvable:$true] %s453
          %459 = dma.hbm_to_vmem [thread:$0]  %s5, 128, %s454, [#allocation15], 64, 64, 4
        $region32: #{gcm_forward.1} parent=11 // pred_fallthru
          _
        // Predicated region
        $region33: #{gcm_forward.1} parent=11 // pred_check
          %p460 = pneg %p186
        $region34: #{gcm_forward.1} parent=11 // pred_check_branch
          %462 = sbr.rel (%p460) target = $region36
        $region35: #{gcm_forward.1} parent=11 // pred_region
          %s464 = ssub.s32 256, 256
          %465 = vsyncadd [#allocation15], %s464
          %s466 = sshll.u32 [#allocation16], 4
          %s467 = int_to_ptr.vmem [resolvable:$true] %s466
          %472 = dma.hbm_to_vmem [thread:$0]  %s6, 256, %s467, [#allocation15], 128, 128, 8
        $region36: #{gcm_forward.1} parent=11 // pred_fallthru
          _
        // Predicated region
        $region37: #{gcm_forward.1} parent=11 // pred_check
          %p473 = pneg %p207
        $region38: #{gcm_forward.1} parent=11 // pred_check_branch
          %475 = sbr.rel (%p473) target = $region40
        $region39: #{gcm_forward.1} parent=11 // pred_region
          %s477 = ssub.s32 128, 128
          %478 = vsyncadd [#allocation18], %s477
          %s479 = sshll.u32 [#allocation17], 4
          %s480 = int_to_ptr.vmem [resolvable:$true] %s479
          %485 = dma.hbm_to_vmem [thread:$0]  %s7, 128, %s480, [#allocation18], 64, 64, 4
        $region40: #{gcm_forward.1} parent=11 // pred_fallthru
          _
        // Predicated region
        $region41: #{gcm_forward.1} parent=11 // pred_check
          %p486 = pneg %p228
        $region42: #{gcm_forward.1} parent=11 // pred_check_branch
          %488 = sbr.rel (%p486) target = $region44
        $region43: #{gcm_forward.1} parent=11 // pred_region
          %s490 = ssub.s32 256, 256
          %491 = vsyncadd [#allocation18], %s490
          %s492 = sshll.u32 [#allocation19], 4
          %s493 = int_to_ptr.vmem [resolvable:$true] %s492
          %498 = dma.hbm_to_vmem [thread:$0]  %s8, 256, %s493, [#allocation18], 128, 128, 8
        $region44: #{gcm_forward.1} parent=11 // pred_fallthru
          _
        // Predicated region
        $region45: #{gcm_forward.1} parent=11 // pred_check
          %p499 = pneg %p249
        $region46: #{gcm_forward.1} parent=11 // pred_check_branch
          %501 = sbr.rel (%p499) target = $region48
        $region47: #{gcm_forward.1} parent=11 // pred_region
          %s503 = ssub.s32 128, 128
          %504 = vsyncadd [#allocation21], %s503
          %s505 = sshll.u32 [#allocation20], 4
          %s506 = int_to_ptr.vmem [resolvable:$true] %s505
          %511 = dma.hbm_to_vmem [thread:$0]  %s9, 128, %s506, [#allocation21], 64, 64, 4
        $region48: #{gcm_forward.1} parent=11 // pred_fallthru
          _
        // Predicated region
        $region49: #{gcm_forward.1} parent=11 // pred_check
          %p512 = pneg %p270
        $region50: #{gcm_forward.1} parent=11 // pred_check_branch
          %514 = sbr.rel (%p512) target = $region52
        $region51: #{gcm_forward.1} parent=11 // pred_region
          %s516 = ssub.s32 256, 256
          %517 = vsyncadd [#allocation21], %s516
          %s518 = sshll.u32 [#allocation22], 4
          %s519 = int_to_ptr.vmem [resolvable:$true] %s518
          %524 = dma.hbm_to_vmem [thread:$0]  %s10, 256, %s519, [#allocation21], 128, 128, 8
        $region52: #{gcm_forward.1} parent=11 // pred_fallthru
          _
        // Predicated region
        $region53: #{gcm_forward.1} parent=11 // pred_check
          %p525 = pneg %p291
        $region54: #{gcm_forward.1} parent=11 // pred_check_branch
          %527 = sbr.rel (%p525) target = $region56
        $region55: #{gcm_forward.1} parent=11 // pred_region
          %s529 = ssub.s32 256, 256
          %530 = vsyncadd [#allocation24], %s529
          %s531 = sshll.u32 [#allocation23], 4
          %s532 = int_to_ptr.vmem [resolvable:$true] %s531
          %537 = dma.hbm_to_vmem [thread:$0]  %s11, 256, %s532, [#allocation24], 128, 128, 8
        $region56: #{gcm_forward.1} parent=11 // pred_fallthru
          _
        // Predicated region
        $region57: #{gcm_forward.1} parent=11 // pred_check
          %p538 = pneg %p312
        $region58: #{gcm_forward.1} parent=11 // pred_check_branch
          %540 = sbr.rel (%p538) target = $region60
        $region59: #{gcm_forward.1} parent=11 // pred_region
          %s542 = ssub.s32 16, 16
          %543 = vsyncadd [#allocation24], %s542
          %s545 = sshll.u32 [#allocation25], 4
          %s546 = int_to_ptr.vmem [resolvable:$true] %s545
          %548 = dma.hbm_to_vmem [thread:$0]  %s12, 16, %s546, [#allocation24]
        $region60: #{gcm_forward.1} parent=11 // pred_fallthru
          _
        // Predicated region
        $region61: #{gcm_forward.1} parent=11 // pred_check
          %p549 = pneg %p333
        $region62: #{gcm_forward.1} parent=11 // pred_check_branch
          %551 = sbr.rel (%p549) target = $region64
        $region63: #{gcm_forward.1} parent=11 // pred_region
          %s553 = ssub.s32 256, 256
          %554 = vsyncadd [#allocation27], %s553
          %s555 = sshll.u32 [#allocation26], 4
          %s556 = int_to_ptr.vmem [resolvable:$true] %s555
          %561 = dma.hbm_to_vmem [thread:$0]  %s13, 256, %s556, [#allocation27], 128, 128, 8
        $region64: #{gcm_forward.1} parent=11 // pred_fallthru
          _
        // Predicated region
        $region65: #{gcm_forward.1} parent=11 // pred_check
          %p562 = pneg %p354
        $region66: #{gcm_forward.1} parent=11 // pred_check_branch
          %564 = sbr.rel (%p562) target = $region68
        $region67: #{gcm_forward.1} parent=11 // pred_region
          %s566 = ssub.s32 256, 256
          %567 = vsyncadd [#allocation27], %s566
          %s568 = sshll.u32 [#allocation28], 4
          %s569 = int_to_ptr.vmem [resolvable:$true] %s568
          %574 = dma.hbm_to_vmem [thread:$0]  %s14, 256, %s569, [#allocation27], 128, 128, 8
        $region68: #{gcm_forward.1} parent=11 // pred_fallthru
          _
      $region12: #{gcm_forward.1} parent=5 // pred_fallthru
        _
      %p575 = scmp.lt.s32.totalorder %s34, 2
      // Predicated region
      $region69: #{gcm_forward.1} parent=5 // pred_check
        %p576 = pneg %p575
      $region70: #{gcm_forward.1} parent=5 // pred_check_branch
        %578 = sbr.rel (%p576) target = $region72
      $region71: #{gcm_forward.1} parent=5 // pred_region
        // Predicated region
        $region73: #{gcm_forward.1} parent=71 // pred_check
          %p579 = pneg %p54
        $region74: #{gcm_forward.1} parent=71 // pred_check_branch
          %581 = sbr.rel (%p579) target = $region76
        $region75: #{gcm_forward.1} parent=71 // pred_region
          %s582 = sand.u32 %s44, 1
          %s583 = scalar_lea.sflag [#allocation6], %s582
          %s584 = sand.u32 %s44, 1
          %s585 = smul.addr %s584, 16
          %s586 = scalar_lea.vmem [#allocation5], %s585
          %s588 = ssub.s32 256, 256
          %589 = vsyncadd %s583, %s588
          %s590 = smul.addr %s34, 4
          %s591 = smul.addr %s590, 64
          %s592 = scalar_lea.hbm %s0, %s591
          %s593 = sshll.u32 %s586, 4
          %s594 = int_to_ptr.vmem [resolvable:$true] %s593
          %599 = dma.hbm_to_vmem [thread:$0]  %s592, 256, %s594, %s583, 128, 128, 8
        $region76: #{gcm_forward.1} parent=71 // pred_fallthru
          _
      $region72: #{gcm_forward.1} parent=5 // pred_fallthru
        _
      %p600 = scmp.le.s32.totalorder 1, %s34
      %p601 = scmp.lt.s32.totalorder %s34, 3
      %p602 = pnand %p600, %p601
      %p603 = pneg %p602
      // Predicated region
      $region77: #{gcm_forward.1} parent=5 // pred_check
        _
      $region78: #{gcm_forward.1} parent=5 // pred_check_branch
        %605 = sbr.rel (%p602) target = $region80
      $region79: #{gcm_forward.1} parent=5 // pred_region
        %s606 = ssub.s32 %s34, 1
        %s607 = sand.u32 %s47, 1
        %s608 = scalar_lea.sflag [#allocation6], %s607
        %s609 = sand.u32 %s47, 1
        %s610 = smul.addr %s609, 16
        %s611 = scalar_lea.vmem [#allocation5], %s610
        // Predicated region
        $region81: #{gcm_forward.1} parent=79 // pred_check
          %p612 = pneg %p60
        $region82: #{gcm_forward.1} parent=79 // pred_check_branch
          %614 = sbr.rel (%p612) target = $region84
        $region83: #{gcm_forward.1} parent=79 // pred_region
          %615 = dma.done %s608, 256
        $region84: #{gcm_forward.1} parent=79 // pred_fallthru
          _
        // Predicated region
        $region85: #{gcm_forward.1} parent=79 // pred_check
          %p616 = pneg %p81
        $region86: #{gcm_forward.1} parent=79 // pred_check_branch
          %618 = sbr.rel (%p616) target = $region88
        $region87: #{gcm_forward.1} parent=79 // pred_region
          %619 = dma.done [#allocation9], 256
        $region88: #{gcm_forward.1} parent=79 // pred_fallthru
          _
        // Predicated region
        $region89: #{gcm_forward.1} parent=79 // pred_check
          %p620 = pneg %p102
        $region90: #{gcm_forward.1} parent=79 // pred_check_branch
          %622 = sbr.rel (%p620) target = $region92
        $region91: #{gcm_forward.1} parent=79 // pred_region
          %623 = dma.done [#allocation9], 128
        $region92: #{gcm_forward.1} parent=79 // pred_fallthru
          _
        // Predicated region
        $region93: #{gcm_forward.1} parent=79 // pred_check
          %p624 = pneg %p123
        $region94: #{gcm_forward.1} parent=79 // pred_check_branch
          %626 = sbr.rel (%p624) target = $region96
        $region95: #{gcm_forward.1} parent=79 // pred_region
          %627 = dma.done [#allocation12], 128
        $region96: #{gcm_forward.1} parent=79 // pred_fallthru
          _
        // Predicated region
        $region97: #{gcm_forward.1} parent=79 // pred_check
          %p628 = pneg %p144
        $region98: #{gcm_forward.1} parent=79 // pred_check_branch
          %630 = sbr.rel (%p628) target = $region100
        $region99: #{gcm_forward.1} parent=79 // pred_region
          %631 = dma.done [#allocation12], 128
        $region100: #{gcm_forward.1} parent=79 // pred_fallthru
          _
        // Predicated region
        $region101: #{gcm_forward.1} parent=79 // pred_check
          %p632 = pneg %p165
        $region102: #{gcm_forward.1} parent=79 // pred_check_branch
          %634 = sbr.rel (%p632) target = $region104
        $region103: #{gcm_forward.1} parent=79 // pred_region
          %635 = dma.done [#allocation15], 128
        $region104: #{gcm_forward.1} parent=79 // pred_fallthru
          _
        // Predicated region
        $region105: #{gcm_forward.1} parent=79 // pred_check
          %p636 = pneg %p186
        $region106: #{gcm_forward.1} parent=79 // pred_check_branch
          %638 = sbr.rel (%p636) target = $region108
        $region107: #{gcm_forward.1} parent=79 // pred_region
          %639 = dma.done [#allocation15], 256
        $region108: #{gcm_forward.1} parent=79 // pred_fallthru
          _
        // Predicated region
        $region109: #{gcm_forward.1} parent=79 // pred_check
          %p640 = pneg %p207
        $region110: #{gcm_forward.1} parent=79 // pred_check_branch
          %642 = sbr.rel (%p640) target = $region112
        $region111: #{gcm_forward.1} parent=79 // pred_region
          %643 = dma.done [#allocation18], 128
        $region112: #{gcm_forward.1} parent=79 // pred_fallthru
          _
        // Predicated region
        $region113: #{gcm_forward.1} parent=79 // pred_check
          %p644 = pneg %p228
        $region114: #{gcm_forward.1} parent=79 // pred_check_branch
          %646 = sbr.rel (%p644) target = $region116
        $region115: #{gcm_forward.1} parent=79 // pred_region
          %647 = dma.done [#allocation18], 256
        $region116: #{gcm_forward.1} parent=79 // pred_fallthru
          _
        // Predicated region
        $region117: #{gcm_forward.1} parent=79 // pred_check
          %p648 = pneg %p249
        $region118: #{gcm_forward.1} parent=79 // pred_check_branch
          %650 = sbr.rel (%p648) target = $region120
        $region119: #{gcm_forward.1} parent=79 // pred_region
          %651 = dma.done [#allocation21], 128
        $region120: #{gcm_forward.1} parent=79 // pred_fallthru
          _
        // Predicated region
        $region121: #{gcm_forward.1} parent=79 // pred_check
          %p652 = pneg %p270
        $region122: #{gcm_forward.1} parent=79 // pred_check_branch
          %654 = sbr.rel (%p652) target = $region124
        $region123: #{gcm_forward.1} parent=79 // pred_region
          %655 = dma.done [#allocation21], 256
        $region124: #{gcm_forward.1} parent=79 // pred_fallthru
          _
        // Predicated region
        $region125: #{gcm_forward.1} parent=79 // pred_check
          %p656 = pneg %p291
        $region126: #{gcm_forward.1} parent=79 // pred_check_branch
          %658 = sbr.rel (%p656) target = $region128
        $region127: #{gcm_forward.1} parent=79 // pred_region
          %659 = dma.done [#allocation24], 256
        $region128: #{gcm_forward.1} parent=79 // pred_fallthru
          _
        // Predicated region
        $region129: #{gcm_forward.1} parent=79 // pred_check
          %p660 = pneg %p312
        $region130: #{gcm_forward.1} parent=79 // pred_check_branch
          %662 = sbr.rel (%p660) target = $region132
        $region131: #{gcm_forward.1} parent=79 // pred_region
          %663 = dma.done [#allocation24], 16
        $region132: #{gcm_forward.1} parent=79 // pred_fallthru
          _
        // Predicated region
        $region133: #{gcm_forward.1} parent=79 // pred_check
          %p664 = pneg %p333
        $region134: #{gcm_forward.1} parent=79 // pred_check_branch
          %666 = sbr.rel (%p664) target = $region136
        $region135: #{gcm_forward.1} parent=79 // pred_region
          %667 = dma.done [#allocation27], 256
        $region136: #{gcm_forward.1} parent=79 // pred_fallthru
          _
        // Predicated region
        $region137: #{gcm_forward.1} parent=79 // pred_check
          %p668 = pneg %p354
        $region138: #{gcm_forward.1} parent=79 // pred_check_branch
          %670 = sbr.rel (%p668) target = $region140
        $region139: #{gcm_forward.1} parent=79 // pred_region
          %671 = dma.done [#allocation27], 256
        $region140: #{gcm_forward.1} parent=79 // pred_fallthru
          _
        %s672 = sand.u32 %s47, 1
        %s673 = scalar_lea.sflag [#allocation6], %s672
        %s674 = sand.u32 %s47, 1
        %s675 = smul.addr %s674, 16
        %s676 = scalar_lea.vmem [#allocation5], %s675
        %p677 = pneg %p60
        %p678 = pneg %p57
        %p679 = pneg %p81
        %p680 = pneg %p78
        %p681 = pneg %p102
        %p682 = pneg %p99
        %p683 = pneg %p123
        %p684 = pneg %p120
        %p685 = pneg %p144
        %p686 = pneg %p141
        %p687 = pneg %p165
        %p688 = pneg %p162
        %p689 = pneg %p186
        %p690 = pneg %p183
        %p691 = pneg %p207
        %p692 = pneg %p204
        %p693 = pneg %p228
        %p694 = pneg %p225
        %p695 = pneg %p249
        %p696 = pneg %p246
        %p697 = pneg %p270
        %p698 = pneg %p267
        %p699 = pneg %p291
        %p700 = pneg %p288
        %p701 = pneg %p312
        %p702 = pneg %p309
        %p703 = pneg %p333
        %p704 = pneg %p330
        %p705 = pneg %p354
        %p706 = pneg %p351
        %p707 = pneg %p380
        %p708 = pneg %p377
        %s709 = sand.u32 %s367, 1
        %s710 = scalar_lea.sflag [#allocation7], %s709
        %s711 = sand.u32 %s367, 1
        %s712 = smul.addr %s711, 16
        %s713 = scalar_lea.vmem [#allocation29], %s712
        %716 = vst [vmem:[#allocation2] sm:$0xff] 0
        %717 = vst [vmem:[#allocation2 + $0x18] sm:$0xff] 0
        %v718 = vld [vmem:[%s611] sm:$0xff]
        %v719 = vld [vmem:[%s611 + $0x8] sm:$0xff]
        %v722 = vunpack.c.l.b16 %v718
        %v723 = vunpack.c.h.b16 %v718
        %v724 = vunpack.c.l.b16 %v719
        %v725 = vunpack.c.h.b16 %v719
        %v726 = vpack.c.b16 %v724, %v722
        %v727 = vpack.c.b16 %v725, %v723
        %730 = vst [vmem:[#allocation2 + $0x8] sm:$0xff] %v726
        %731 = vst [vmem:[#allocation2 + $0x10] sm:$0xff] %v727
        %v732 = vlaneseq
        %v733 = vand.u32 %v732, 127
        %v734 = vadd.s32 %v733, 128
        %vm735 = vcmp.lt.s32.totalorder %v733, 0
        %v736 = vsub.s32 0, %v733
        %v737 = vsel %vm735, %v736, %v733
        %v738 = vshrl.u32 %v737, 4
        %v739 = vand.u32 %v737, 15
        %v740 = vsub.s32 0, %v739
        %v741 = vsel %vm735, %v740, %v739
        %vm742 = vcmp.lt.s32.totalorder %v734, 0
        %v743 = vsub.s32 0, %v734
        %v744 = vsel %vm742, %v743, %v734
        %v745 = vshrl.u32 %v744, 4
        %v746 = vand.u32 %v744, 15
        %v747 = vsub.s32 0, %v746
        %v748 = vsel %vm742, %v747, %v746
        %vm749 = vcmp.ne.s32.totalorder %v741, 0
        %vm750 = vcmp.ne.s32.totalorder %v748, 0
        %vm751 = vcmp.lt.s32.totalorder %v741, 0
        %vm752 = vcmp.lt.s32.totalorder %v748, 0
        %vm753 = vmand %vm751, %vm749
        %vm754 = vmand %vm752, %vm750
        %v755 = vadd.s32 %v741, 16
        %v756 = vadd.s32 %v748, 16
        %v757 = vsel %vm753, %v755, %v741
        %v758 = vsel %vm754, %v756, %v748
        %vm759 = vcmask 1040384
        %vm760 = vsmask.f32 256
        %vm761 = vmand %vm759, %vm760
        %v762 = vld [vmem:[#allocation3] sm:$0x1]
        %v763 = vsel %vm761, 1065369472, %v762
        %764 = vst [vmem:[#allocation3] sm:$0x1] %v763
        %v765 = vld [vmem:[#allocation3 + $0x8] sm:$0x1]
        %v766 = vsel %vm761, 1065369472, %v765
        %767 = vst [vmem:[#allocation3 + $0x8] sm:$0x1] %v766
        %vm768 = vcmask 1047555
        %vm769 = vsmask.f32 7950
        %vm770 = vmand %vm768, %vm769
        %v771 = vld [vmem:[#allocation3] sm:$0xf8]
        %v772 = vsel %vm770, 0, %v771
        %773 = vst [vmem:[#allocation3] sm:$0xf8] %v772
        %v774 = vld [vmem:[#allocation3 + $0x8] sm:$0xf8]
        %v775 = vsel %vm770, 0, %v774
        %776 = vst [vmem:[#allocation3 + $0x8] sm:$0xf8] %v775
        %777 = vst [vmem:[#allocation3 + $0x10] sm:$0xff] %v726
        %778 = vst [vmem:[#allocation3 + $0x18] sm:$0xff] %v727
        %v779 = vadd.s32 %v757, 4294967295
        %v780 = vadd.s32 %v758, 4294967295
        %vm781 = vcmp.ge.s32.totalorder %v779, 0
        %vm782 = vcmp.ge.s32.totalorder %v780, 0
        %vm783 = vcmp.lt.s32.totalorder %v779, 16
        %vm784 = vcmp.lt.s32.totalorder %v780, 16
        %vm785 = vmand %vm781, %vm783
        %vm786 = vmand %vm782, %vm784
        %v787 = vsel %vm785, 1, 0
        %v788 = vsel %vm786, 1, 0
        %v789 = vcvt.s32.f32 %v787
        %v790 = vcvt.s32.f32 %v788
        %v791 = vpack.c.bf16 %v789, %v789
        %v792 = vpack.c.bf16 %v790, %v790
        %vm793 = vsmask.f32 7938
        %vm794 = vmand %vm759, %vm793
        %v795 = vld [vmem:[#allocation3] sm:$0x1]
        %v796 = vsel %vm794, %v791, %v795
        %797 = vst [vmem:[#allocation3] sm:$0x1] %v796
        %v798 = vld [vmem:[#allocation3 + $0x8] sm:$0x1]
        %v799 = vsel %vm794, %v792, %v798
        %800 = vst [vmem:[#allocation3 + $0x8] sm:$0x1] %v799
        %v801 = vld [vmem:[#allocation2] sm:$0xff]
        %v802 = vld [vmem:[#allocation2 + $0x8] sm:$0xff]
        %v803 = vld [vmem:[#allocation2 + $0x10] sm:$0xff]
        %806 = vrot.lane.b32.xlu0 %v791, 127
        %v807 = vpop.permute.xlu0 %806
        %808 = vrot.lane.b32.xlu0 %v792, 127
        %v809 = vpop.permute.xlu0 %808
        %vm810 = vcmask 1039360
        %v811 = vsel %vm810, %v807, %v809
        %v815 = vmul.bf16 %v801, %v807
        %v816 = vmul.bf16 %v802, %v811
        %v817 = vmul.bf16 %v803, %v809
        %821 = vrot.lane.b32.xlu0 %v815, 1
        %v822 = vpop.permute.xlu0 %821
        %823 = vrot.lane.b32.xlu0 %v816, 1
        %v824 = vpop.permute.xlu0 %823
        %825 = vrot.lane.b32.xlu0 %v817, 1
        %v826 = vpop.permute.xlu0 %825
        %vm827 = vcmask 7168
        %v828 = vsel %vm827, %v822, %v824
        %v829 = vsel %vm827, %v824, %v826
        %832 = vst [vmem:[#allocation3 + $0x20] sm:$0xff] %v828
        %833 = vst [vmem:[#allocation3 + $0x28] sm:$0xff] %v829
        %v834 = vadd.s32 %v757, 1
        %v835 = vadd.s32 %v758, 1
        %vm836 = vcmp.ge.s32.totalorder %v834, 0
        %vm837 = vcmp.ge.s32.totalorder %v835, 0
        %vm838 = vcmp.lt.s32.totalorder %v834, 16
        %vm839 = vcmp.lt.s32.totalorder %v835, 16
        %vm840 = vmand %vm836, %vm838
        %vm841 = vmand %vm837, %vm839
        %v842 = vsel %vm840, 1, 0
        %v843 = vsel %vm841, 1, 0
        %v844 = vcvt.s32.f32 %v842
        %v845 = vcvt.s32.f32 %v843
        %v846 = vpack.c.bf16 %v844, %v844
        %v847 = vpack.c.bf16 %v845, %v845
        %vm848 = vcmask 1041409
        %vm849 = vsmask.f32 1280
        %vm850 = vmand %vm848, %vm849
        %v851 = vld [vmem:[#allocation3] sm:$0x2]
        %v852 = vsel %vm850, %v846, %v851
        %853 = vst [vmem:[#allocation3] sm:$0x2] %v852
        %v854 = vld [vmem:[#allocation3 + $0x8] sm:$0x2]
        %v855 = vsel %vm850, %v847, %v854
        %856 = vst [vmem:[#allocation3 + $0x8] sm:$0x2] %v855
        %v857 = vld [vmem:[#allocation2 + $0x8] sm:$0xff]
        %v858 = vld [vmem:[#allocation2 + $0x10] sm:$0xff]
        %v859 = vld [vmem:[#allocation2 + $0x18] sm:$0xff]
        %862 = vrot.lane.b32.xlu0 %v846, 1
        %v863 = vpop.permute.xlu0 %862
        %864 = vrot.lane.b32.xlu0 %v847, 1
        %v865 = vpop.permute.xlu0 %864
        %v866 = vsel %vm827, %v863, %v865
        %v870 = vmul.bf16 %v857, %v863
        %v871 = vmul.bf16 %v858, %v866
        %v872 = vmul.bf16 %v859, %v865
        %876 = vrot.lane.b32.xlu0 %v870, 127
        %v877 = vpop.permute.xlu0 %876
        %878 = vrot.lane.b32.xlu0 %v871, 127
        %v879 = vpop.permute.xlu0 %878
        %880 = vrot.lane.b32.xlu0 %v872, 127
        %v881 = vpop.permute.xlu0 %880
        %v882 = vsel %vm810, %v877, %v879
        %v883 = vsel %vm810, %v879, %v881
        %886 = vst [vmem:[#allocation3 + $0x30] sm:$0xff] %v882
        %887 = vst [vmem:[#allocation3 + $0x38] sm:$0xff] %v883
        %v888 = vadd.s32 %v757, 4294967294
        %v889 = vadd.s32 %v758, 4294967294
        %vm890 = vcmp.ge.s32.totalorder %v888, 0
        %vm891 = vcmp.ge.s32.totalorder %v889, 0
        %vm892 = vcmp.lt.s32.totalorder %v888, 16
        %vm893 = vcmp.lt.s32.totalorder %v889, 16
        %vm894 = vmand %vm890, %vm892
        %vm895 = vmand %vm891, %vm893
        %v896 = vsel %vm894, 1, 0
        %v897 = vsel %vm895, 1, 0
        %v898 = vcvt.s32.f32 %v896
        %v899 = vcvt.s32.f32 %v897
        %v900 = vpack.c.bf16 %v898, %v898
        %v901 = vpack.c.bf16 %v899, %v899
        %vm902 = vsmask.f32 7942
        %vm903 = vmand %vm848, %vm902
        %v904 = vld [vmem:[#allocation3] sm:$0x2]
        %v905 = vsel %vm903, %v900, %v904
        %906 = vst [vmem:[#allocation3] sm:$0x2] %v905
        %v907 = vld [vmem:[#allocation3 + $0x8] sm:$0x2]
        %v908 = vsel %vm903, %v901, %v907
        %909 = vst [vmem:[#allocation3 + $0x8] sm:$0x2] %v908
        %v910 = vld [vmem:[#allocation2] sm:$0xff]
        %v911 = vld [vmem:[#allocation2 + $0x8] sm:$0xff]
        %v912 = vld [vmem:[#allocation2 + $0x10] sm:$0xff]
        %915 = vrot.lane.b32.xlu0 %v900, 126
        %v916 = vpop.permute.xlu0 %915
        %917 = vrot.lane.b32.xlu0 %v901, 126
        %v918 = vpop.permute.xlu0 %917
        %vm919 = vcmask 1031168
        %v920 = vsel %vm919, %v916, %v918
        %v924 = vmul.bf16 %v910, %v916
        %v925 = vmul.bf16 %v911, %v920
        %v926 = vmul.bf16 %v912, %v918
        %930 = vrot.lane.b32.xlu0 %v924, 2
        %v931 = vpop.permute.xlu0 %930
        %932 = vrot.lane.b32.xlu0 %v925, 2
        %v933 = vpop.permute.xlu0 %932
        %934 = vrot.lane.b32.xlu0 %v926, 2
        %v935 = vpop.permute.xlu0 %934
        %vm936 = vcmask 15360
        %v937 = vsel %vm936, %v931, %v933
        %v938 = vsel %vm936, %v933, %v935
        %941 = vst [vmem:[#allocation3 + $0x40] sm:$0xff] %v937
        %942 = vst [vmem:[#allocation3 + $0x48] sm:$0xff] %v938
        %v943 = vadd.s32 %v757, 2
        %v944 = vadd.s32 %v758, 2
        %vm945 = vcmp.ge.s32.totalorder %v943, 0
        %vm946 = vcmp.ge.s32.totalorder %v944, 0
        %vm947 = vcmp.lt.s32.totalorder %v943, 16
        %vm948 = vcmp.lt.s32.totalorder %v944, 16
        %vm949 = vmand %vm945, %vm947
        %vm950 = vmand %vm946, %vm948
        %v951 = vsel %vm949, 1, 0
        %v952 = vsel %vm950, 1, 0
        %v953 = vcvt.s32.f32 %v951
        %v954 = vcvt.s32.f32 %v952
        %v955 = vpack.c.bf16 %v953, %v953
        %v956 = vpack.c.bf16 %v954, %v954
        %vm957 = vcmask 1042434
        %vm958 = vsmask.f32 2304
        %vm959 = vmand %vm957, %vm958
        %v960 = vld [vmem:[#allocation3] sm:$0x4]
        %v961 = vsel %vm959, %v955, %v960
        %962 = vst [vmem:[#allocation3] sm:$0x4] %v961
        %v963 = vld [vmem:[#allocation3 + $0x8] sm:$0x4]
        %v964 = vsel %vm959, %v956, %v963
        %965 = vst [vmem:[#allocation3 + $0x8] sm:$0x4] %v964
        %v966 = vld [vmem:[#allocation2 + $0x8] sm:$0xff]
        %v967 = vld [vmem:[#allocation2 + $0x10] sm:$0xff]
        %v968 = vld [vmem:[#allocation2 + $0x18] sm:$0xff]
        %971 = vrot.lane.b32.xlu0 %v955, 2
        %v972 = vpop.permute.xlu0 %971
        %973 = vrot.lane.b32.xlu0 %v956, 2
        %v974 = vpop.permute.xlu0 %973
        %v975 = vsel %vm936, %v972, %v974
        %v979 = vmul.bf16 %v966, %v972
        %v980 = vmul.bf16 %v967, %v975
        %v981 = vmul.bf16 %v968, %v974
        %985 = vrot.lane.b32.xlu0 %v979, 126
        %v986 = vpop.permute.xlu0 %985
        %987 = vrot.lane.b32.xlu0 %v980, 126
        %v988 = vpop.permute.xlu0 %987
        %989 = vrot.lane.b32.xlu0 %v981, 126
        %v990 = vpop.permute.xlu0 %989
        %v991 = vsel %vm919, %v986, %v988
        %v992 = vsel %vm919, %v988, %v990
        %995 = vst [vmem:[#allocation3 + $0x50] sm:$0xff] %v991
        %996 = vst [vmem:[#allocation3 + $0x58] sm:$0xff] %v992
        %v997 = vadd.s32 %v757, 4294967293
        %v998 = vadd.s32 %v758, 4294967293
        %vm999 = vcmp.ge.s32.totalorder %v997, 0
        %vm1000 = vcmp.ge.s32.totalorder %v998, 0
        %vm1001 = vcmp.lt.s32.totalorder %v997, 16
        %vm1002 = vcmp.lt.s32.totalorder %v998, 16
        %vm1003 = vmand %vm999, %vm1001
        %vm1004 = vmand %vm1000, %vm1002
        %v1005 = vsel %vm1003, 1, 0
        %v1006 = vsel %vm1004, 1, 0
        %v1007 = vcvt.s32.f32 %v1005
        %v1008 = vcvt.s32.f32 %v1006
        %v1009 = vpack.c.bf16 %v1007, %v1007
        %v1010 = vpack.c.bf16 %v1008, %v1008
        %vm1011 = vsmask.f32 7946
        %vm1012 = vmand %vm957, %vm1011
        %v1013 = vld [vmem:[#allocation3] sm:$0x4]
        %v1014 = vsel %vm1012, %v1009, %v1013
        %1015 = vst [vmem:[#allocation3] sm:$0x4] %v1014
        %v1016 = vld [vmem:[#allocation3 + $0x8] sm:$0x4]
        %v1017 = vsel %vm1012, %v1010, %v1016
        %1018 = vst [vmem:[#allocation3 + $0x8] sm:$0x4] %v1017
        %v1019 = vld [vmem:[#allocation2] sm:$0xff]
        %v1020 = vld [vmem:[#allocation2 + $0x8] sm:$0xff]
        %v1021 = vld [vmem:[#allocation2 + $0x10] sm:$0xff]
        %1024 = vrot.lane.b32.xlu0 %v1009, 125
        %v1025 = vpop.permute.xlu0 %1024
        %1026 = vrot.lane.b32.xlu0 %v1010, 125
        %v1027 = vpop.permute.xlu0 %1026
        %vm1028 = vcmask 1022976
        %v1029 = vsel %vm1028, %v1025, %v1027
        %v1033 = vmul.bf16 %v1019, %v1025
        %v1034 = vmul.bf16 %v1020, %v1029
        %v1035 = vmul.bf16 %v1021, %v1027
        %1039 = vrot.lane.b32.xlu0 %v1033, 3
        %v1040 = vpop.permute.xlu0 %1039
        %1041 = vrot.lane.b32.xlu0 %v1034, 3
        %v1042 = vpop.permute.xlu0 %1041
        %1043 = vrot.lane.b32.xlu0 %v1035, 3
        %v1044 = vpop.permute.xlu0 %1043
        %vm1045 = vcmask 23552
        %v1046 = vsel %vm1045, %v1040, %v1042
        %v1047 = vsel %vm1045, %v1042, %v1044
        %1050 = vst [vmem:[#allocation3 + $0x60] sm:$0xff] %v1046
        %1051 = vst [vmem:[#allocation3 + $0x68] sm:$0xff] %v1047
        %v1052 = vadd.s32 %v757, 3
        %v1053 = vadd.s32 %v758, 3
        %vm1054 = vcmp.ge.s32.totalorder %v1052, 0
        %vm1055 = vcmp.ge.s32.totalorder %v1053, 0
        %vm1056 = vcmp.lt.s32.totalorder %v1052, 16
        %vm1057 = vcmp.lt.s32.totalorder %v1053, 16
        %vm1058 = vmand %vm1054, %vm1056
        %vm1059 = vmand %vm1055, %vm1057
        %v1060 = vsel %vm1058, 1, 0
        %v1061 = vsel %vm1059, 1, 0
        %v1062 = vcvt.s32.f32 %v1060
        %v1063 = vcvt.s32.f32 %v1061
        %v1064 = vpack.c.bf16 %v1062, %v1062
        %v1065 = vpack.c.bf16 %v1063, %v1063
        %vm1066 = vcmask 1043459
        %vm1067 = vsmask.f32 3328
        %vm1068 = vmand %vm1066, %vm1067
        %v1069 = vld [vmem:[#allocation3] sm:$0x8]
        %v1070 = vsel %vm1068, %v1064, %v1069
        %1071 = vst [vmem:[#allocation3] sm:$0x8] %v1070
        %v1072 = vld [vmem:[#allocation3 + $0x8] sm:$0x8]
        %v1073 = vsel %vm1068, %v1065, %v1072
        %1074 = vst [vmem:[#allocation3 + $0x8] sm:$0x8] %v1073
        %v1075 = vld [vmem:[#allocation2 + $0x8] sm:$0xff]
        %v1076 = vld [vmem:[#allocation2 + $0x10] sm:$0xff]
        %v1077 = vld [vmem:[#allocation2 + $0x18] sm:$0xff]
        %1080 = vrot.lane.b32.xlu0 %v1064, 3
        %v1081 = vpop.permute.xlu0 %1080
        %1082 = vrot.lane.b32.xlu0 %v1065, 3
        %v1083 = vpop.permute.xlu0 %1082
        %v1084 = vsel %vm1045, %v1081, %v1083
        %v1088 = vmul.bf16 %v1075, %v1081
        %v1089 = vmul.bf16 %v1076, %v1084
        %v1090 = vmul.bf16 %v1077, %v1083
        %1094 = vrot.lane.b32.xlu0 %v1088, 125
        %v1095 = vpop.permute.xlu0 %1094
        %1096 = vrot.lane.b32.xlu0 %v1089, 125
        %v1097 = vpop.permute.xlu0 %1096
        %1098 = vrot.lane.b32.xlu0 %v1090, 125
        %v1099 = vpop.permute.xlu0 %1098
        %v1100 = vsel %vm1028, %v1095, %v1097
        %v1101 = vsel %vm1028, %v1097, %v1099
        %1104 = vst [vmem:[#allocation3 + $0x70] sm:$0xff] %v1100
        %1105 = vst [vmem:[#allocation3 + $0x78] sm:$0xff] %v1101
        %v1106 = vld [vmem:[#allocation8] sm:$0xf]
        %v1107 = vld [vmem:[#allocation8 + $0x4] sm:$0xf]
        %v1108 = vld [vmem:[#allocation8 + $0x8] sm:$0xf]
        %v1109 = vld [vmem:[#allocation8 + $0xc] sm:$0xf]
        %v1110 = vld [vmem:[#allocation3] sm:$0xff]
        %v1111 = vld [vmem:[#allocation3 + $0x8] sm:$0xff]
        %v1112 = vld [vmem:[#allocation3 + $0x10] sm:$0xff]
        %v1113 = vld [vmem:[#allocation3 + $0x18] sm:$0xff]
        %v1118 = vunpack.c.l.b16 %v1106
        %v1119 = vunpack.c.l.b16 %v1107
        %v1120 = vunpack.c.l.b16 %v1108
        %v1121 = vunpack.c.l.b16 %v1109
        %v1122 = vpack.c.b16 %v1119, %v1118
        %v1123 = vpack.c.b16 %v1121, %v1120
        %vm1124 = vcmask 261120
        %v1126 = vsel %vm1124, %v1122, 0
        %v1129 = vsel %vm1124, %v1123, 0
        %1131 = vmatprep.subr.bf16.mxu0 %v1111
        %1132 = vmatpush1.bf16.msra.mxu0 %v1110
        %1133 = vmatprep.subr.bf16.mxu0 %v1113
        %1134 = vmatpush1.bf16.msra.mxu0 %v1112
        %1135 = vmatprep.subr.bf16.mxu0 0
        %1136 = vmatpush1.bf16.msra.mxu0 0
        %1137 = vmatprep.subr.bf16.mxu0 0
        %1138 = vmatpush1.bf16.msra.mxu0 0
        %1139 = vmatprep.subr.bf16.mxu0 0
        %1140 = vmatpush1.bf16.msra.mxu0 0
        %1141 = vmatprep.subr.bf16.mxu0 0
        %1142 = vmatpush1.bf16.msra.mxu0 0
        %1143 = vmatprep.subr.bf16.mxu0 0
        %1144 = vmatpush1.bf16.msra.mxu0 0
        %1145 = vmatprep.subr.bf16.mxu0 0
        %1146 = vmatpush1.bf16.msra.mxu0 0
        %1147 = vmatprep.subr.bf16.mxu0 0
        %1148 = vmatpush1.bf16.msra.mxu0 0
        %1149 = vmatprep.subr.bf16.mxu0 0
        %1150 = vmatpush1.bf16.msra.mxu0 0
        %1151 = vmatprep.subr.bf16.mxu0 0
        %1152 = vmatpush1.bf16.msra.mxu0 0
        %1153 = vmatprep.subr.bf16.mxu0 0
        %1154 = vmatpush1.bf16.msra.mxu0 0
        %1155 = vmatprep.subr.bf16.mxu0 0
        %1156 = vmatpush1.bf16.msra.mxu0 0
        %1157 = vmatprep.subr.bf16.mxu0 0
        %1158 = vmatpush1.bf16.msra.mxu0 0
        %1159 = vmatprep.subr.bf16.mxu0 0
        %1160 = vmatpush1.bf16.msra.mxu0 0
        %1161 = vmatprep.subr.bf16.mxu0 0
        %1162 = vmatpush1.bf16.msra.mxu0 0
        %1163 = vmatprep.mubr.bf16.mxu0 0
        %1164 = vmatmul.mubr.bf16.gmra.mrb[0].mxu0 %v1126
        %v1165 = vpop.f32.mrb[0].mxu0
        %v1166 = vadd.f32 0.0, %v1165
        %v1167 = vpop.f32.mrb[0].mxu0
        %v1168 = vadd.f32 0.0, %v1167
        %v1169 = vpop.f32.mrb[0].mxu0
        %v1170 = vadd.f32 0.0, %v1169
        %v1171 = vpop.f32.mrb[0].mxu0
        %v1172 = vadd.f32 0.0, %v1171
        %1173 = vmatprep.mubr.bf16.mxu0 0
        %1174 = vmatmul.mubr.bf16.gmra.mrb[0].mxu0 %v1129
        %v1175 = vpop.f32.mrb[0].mxu0
        %v1176 = vadd.f32 0.0, %v1175
        %v1177 = vpop.f32.mrb[0].mxu0
        %v1178 = vadd.f32 0.0, %v1177
        %v1179 = vpop.f32.mrb[0].mxu0
        %v1180 = vadd.f32 0.0, %v1179
        %v1181 = vpop.f32.mrb[0].mxu0
        %v1182 = vadd.f32 0.0, %v1181
        %1183 = vdwg.mxu0
        %v1184 = vld [vmem:[#allocation10] sm:$0xf]
        %v1185 = vld [vmem:[#allocation10 + $0x4] sm:$0xf]
        %v1186 = vld [vmem:[#allocation3] sm:$0xff]
        %v1187 = vld [vmem:[#allocation3 + $0x8] sm:$0xff]
        %v1188 = vld [vmem:[#allocation3 + $0x10] sm:$0xff]
        %v1189 = vld [vmem:[#allocation3 + $0x18] sm:$0xff]
        %v1190 = vld [vmem:[#allocation3 + $0x20] sm:$0xff]
        %v1191 = vld [vmem:[#allocation3 + $0x28] sm:$0xff]
        %v1192 = vld [vmem:[#allocation3 + $0x30] sm:$0xff]
        %v1193 = vld [vmem:[#allocation3 + $0x38] sm:$0xff]
        %v1196 = vunpack.c.l.b16 %v1184
        %v1197 = vunpack.c.l.b16 %v1185
        %v1198 = vpack.c.b16 %v1197, %v1196
        %vm1199 = vcmask 523264
        %v1201 = vsel %vm1199, %v1198, 0
        %1203 = vmatprep.subr.bf16.mxu0 %v1187
        %1204 = vmatpush1.bf16.msra.mxu0 %v1186
        %1205 = vmatprep.subr.bf16.mxu0 %v1189
        %1206 = vmatpush1.bf16.msra.mxu0 %v1188
        %1207 = vmatprep.subr.bf16.mxu0 %v1191
        %1208 = vmatpush1.bf16.msra.mxu0 %v1190
        %1209 = vmatprep.subr.bf16.mxu0 %v1193
        %1210 = vmatpush1.bf16.msra.mxu0 %v1192
        %1211 = vmatprep.subr.bf16.mxu0 0
        %1212 = vmatpush1.bf16.msra.mxu0 0
        %1213 = vmatprep.subr.bf16.mxu0 0
        %1214 = vmatpush1.bf16.msra.mxu0 0
        %1215 = vmatprep.subr.bf16.mxu0 0
        %1216 = vmatpush1.bf16.msra.mxu0 0
        %1217 = vmatprep.subr.bf16.mxu0 0
        %1218 = vmatpush1.bf16.msra.mxu0 0
        %1219 = vmatprep.subr.bf16.mxu0 0
        %1220 = vmatpush1.bf16.msra.mxu0 0
        %1221 = vmatprep.subr.bf16.mxu0 0
        %1222 = vmatpush1.bf16.msra.mxu0 0
        %1223 = vmatprep.subr.bf16.mxu0 0
        %1224 = vmatpush1.bf16.msra.mxu0 0
        %1225 = vmatprep.subr.bf16.mxu0 0
        %1226 = vmatpush1.bf16.msra.mxu0 0
        %1227 = vmatprep.subr.bf16.mxu0 0
        %1228 = vmatpush1.bf16.msra.mxu0 0
        %1229 = vmatprep.subr.bf16.mxu0 0
        %1230 = vmatpush1.bf16.msra.mxu0 0
        %1231 = vmatprep.subr.bf16.mxu0 0
        %1232 = vmatpush1.bf16.msra.mxu0 0
        %1233 = vmatprep.subr.bf16.mxu0 0
        %1234 = vmatpush1.bf16.msra.mxu0 0
        %1235 = vmatprep.mubr.bf16.mxu0 0
        %1236 = vmatmul.mubr.bf16.gmra.mrb[0].mxu0 %v1201
        %v1237 = vpop.f32.mrb[0].mxu0
        %v1238 = vadd.f32 0.0, %v1237
        %v1239 = vpop.f32.mrb[0].mxu0
        %v1240 = vadd.f32 0.0, %v1239
        %v1241 = vpop.f32.mrb[0].mxu0
        %v1242 = vadd.f32 0.0, %v1241
        %v1243 = vpop.f32.mrb[0].mxu0
        %v1244 = vadd.f32 0.0, %v1243
        %1245 = vdwg.mxu0
        %v1246 = vpack.c.bf16 %v1242, %v1238
        %v1247 = vpack.c.bf16 %v1244, %v1240
        %1248 = vst [vmem:[#allocation2 + $0x8] sm:$0xff] %v1246
        %1249 = vst [vmem:[#allocation2 + $0x10] sm:$0xff] %v1247
        %v1250 = vld [vmem:[#allocation2] sm:$0xff]
        %v1251 = vld [vmem:[#allocation2 + $0x8] sm:$0xff]
        %v1252 = vld [vmem:[#allocation2 + $0x10] sm:$0xff]
        %1256 = vrot.lane.b32.xlu0 %v1250, 16
        %v1257 = vpop.permute.xlu0 %1256
        %1258 = vrot.lane.b32.xlu0 %v1251, 16
        %v1259 = vpop.permute.xlu0 %1258
        %1260 = vrot.lane.b32.xlu0 %v1252, 16
        %v1261 = vpop.permute.xlu0 %1260
        %vm1262 = vcmask 130048
        %v1263 = vsel %vm1262, %v1257, %v1259
        %v1264 = vsel %vm1262, %v1259, %v1261
        %1267 = vst [vmem:[#allocation4] sm:$0xff] %v1263
        %1268 = vst [vmem:[#allocation4 + $0x8] sm:$0xff] %v1264
        %1269 = vst [vmem:[#allocation4 + $0x10] sm:$0xff] %v1246
        %1270 = vst [vmem:[#allocation4 + $0x18] sm:$0xff] %v1247
        %v1271 = vld [vmem:[#allocation2 + $0x8] sm:$0xff]
        %v1272 = vld [vmem:[#allocation2 + $0x10] sm:$0xff]
        %v1273 = vld [vmem:[#allocation2 + $0x18] sm:$0xff]
        %1277 = vrot.lane.b32.xlu0 %v1271, 112
        %v1278 = vpop.permute.xlu0 %1277
        %1279 = vrot.lane.b32.xlu0 %v1272, 112
        %v1280 = vpop.permute.xlu0 %1279
        %1281 = vrot.lane.b32.xlu0 %v1273, 112
        %v1282 = vpop.permute.xlu0 %1281
        %vm1283 = vcmask 916480
        %v1284 = vsel %vm1283, %v1278, %v1280
        %v1285 = vsel %vm1283, %v1280, %v1282
        %1288 = vst [vmem:[#allocation4 + $0x20] sm:$0xff] %v1284
        %1289 = vst [vmem:[#allocation4 + $0x28] sm:$0xff] %v1285
        %v1290 = vld [vmem:[#allocation14] sm:$0xf]
        %v1291 = vld [vmem:[#allocation14 + $0x4] sm:$0xf]
        %v1292 = vld [vmem:[#allocation4] sm:$0xff]
        %v1293 = vld [vmem:[#allocation4 + $0x8] sm:$0xff]
        %v1294 = vld [vmem:[#allocation4 + $0x10] sm:$0xff]
        %v1295 = vld [vmem:[#allocation4 + $0x18] sm:$0xff]
        %v1296 = vld [vmem:[#allocation4 + $0x20] sm:$0xff]
        %v1297 = vld [vmem:[#allocation4 + $0x28] sm:$0xff]
        %v1298 = vld [vmem:[#allocation16] sm:$0xff]
        %v1299 = vld [vmem:[#allocation16 + $0x8] sm:$0xff]
        %1301 = vset.pattern.permute.xlu0 0
        %1302 = vperm.xlu0 %1301, %v1298
        %v1303 = vpop.permute.xlu0 %1302
        %1306 = vset.pattern.permute.xlu0 0
        %1307 = vperm.xlu0 %1306, %v1299
        %v1308 = vpop.permute.xlu0 %1307
        %v1312 = vunpack.c.l.b16 %v1290
        %v1313 = vunpack.c.l.b16 %v1291
        %v1314 = vpack.c.b16 %v1313, %v1312
        %vm1315 = vcmask 392192
        %v1317 = vsel %vm1315, %v1314, 0
        %1319 = vmatprep.subr.bf16.mxu0 %v1293
        %1320 = vmatpush1.bf16.msra.mxu0 %v1292
        %1321 = vmatprep.subr.bf16.mxu0 %v1295
        %1322 = vmatpush1.bf16.msra.mxu0 %v1294
        %1323 = vmatprep.subr.bf16.mxu0 %v1297
        %1324 = vmatpush1.bf16.msra.mxu0 %v1296
        %1325 = vmatprep.subr.bf16.mxu0 0
        %1326 = vmatpush1.bf16.msra.mxu0 0
        %1327 = vmatprep.subr.bf16.mxu0 0
        %1328 = vmatpush1.bf16.msra.mxu0 0
        %1329 = vmatprep.subr.bf16.mxu0 0
        %1330 = vmatpush1.bf16.msra.mxu0 0
        %1331 = vmatprep.subr.bf16.mxu0 0
        %1332 = vmatpush1.bf16.msra.mxu0 0
        %1333 = vmatprep.subr.bf16.mxu0 0
        %1334 = vmatpush1.bf16.msra.mxu0 0
        %1335 = vmatprep.subr.bf16.mxu0 0
        %1336 = vmatpush1.bf16.msra.mxu0 0
        %1337 = vmatprep.subr.bf16.mxu0 0
        %1338 = vmatpush1.bf16.msra.mxu0 0
        %1339 = vmatprep.subr.bf16.mxu0 0
        %1340 = vmatpush1.bf16.msra.mxu0 0
        %1341 = vmatprep.subr.bf16.mxu0 0
        %1342 = vmatpush1.bf16.msra.mxu0 0
        %1343 = vmatprep.subr.bf16.mxu0 0
        %1344 = vmatpush1.bf16.msra.mxu0 0
        %1345 = vmatprep.subr.bf16.mxu0 0
        %1346 = vmatpush1.bf16.msra.mxu0 0
        %1347 = vmatprep.subr.bf16.mxu0 0
        %1348 = vmatpush1.bf16.msra.mxu0 0
        %1349 = vmatprep.subr.bf16.mxu0 0
        %1350 = vmatpush1.bf16.msra.mxu0 0
        %1351 = vmatprep.mubr.bf16.mxu0 0
        %1352 = vmatmul.mubr.bf16.gmra.mrb[0].mxu0 %v1317
        %v1353 = vpop.f32.mrb[0].mxu0
        %v1354 = vadd.f32 %v1303, %v1353
        %v1355 = vpop.f32.mrb[0].mxu0
        %v1356 = vadd.f32 %v1303, %v1355
        %v1357 = vpop.f32.mrb[0].mxu0
        %v1358 = vadd.f32 %v1308, %v1357
        %v1359 = vpop.f32.mrb[0].mxu0
        %v1360 = vadd.f32 %v1308, %v1359
        %1361 = vdwg.mxu0
        %v1362 = vld [vmem:[#allocation11] sm:$0xf]
        %v1363 = vld [vmem:[#allocation11 + $0x4] sm:$0xf]
        %v1364 = vld [vmem:[#allocation3] sm:$0xff]
        %v1365 = vld [vmem:[#allocation3 + $0x8] sm:$0xff]
        %v1366 = vld [vmem:[#allocation3 + $0x10] sm:$0xff]
        %v1367 = vld [vmem:[#allocation3 + $0x18] sm:$0xff]
        %v1368 = vld [vmem:[#allocation3 + $0x20] sm:$0xff]
        %v1369 = vld [vmem:[#allocation3 + $0x28] sm:$0xff]
        %v1370 = vld [vmem:[#allocation3 + $0x30] sm:$0xff]
        %v1371 = vld [vmem:[#allocation3 + $0x38] sm:$0xff]
        %v1372 = vld [vmem:[#allocation3 + $0x40] sm:$0xff]
        %v1373 = vld [vmem:[#allocation3 + $0x48] sm:$0xff]
        %v1374 = vld [vmem:[#allocation3 + $0x50] sm:$0xff]
        %v1375 = vld [vmem:[#allocation3 + $0x58] sm:$0xff]
        %v1378 = vunpack.c.l.b16 %v1362
        %v1379 = vunpack.c.l.b16 %v1363
        %v1380 = vpack.c.b16 %v1379, %v1378
        %vm1381 = vcmask 785408
        %v1383 = vsel %vm1381, %v1380, 0
        %1385 = vmatprep.subr.bf16.mxu0 %v1365
        %1386 = vmatpush1.bf16.msra.mxu0 %v1364
        %1387 = vmatprep.subr.bf16.mxu0 %v1367
        %1388 = vmatpush1.bf16.msra.mxu0 %v1366
        %1389 = vmatprep.subr.bf16.mxu0 %v1369
        %1390 = vmatpush1.bf16.msra.mxu0 %v1368
        %1391 = vmatprep.subr.bf16.mxu0 %v1371
        %1392 = vmatpush1.bf16.msra.mxu0 %v1370
        %1393 = vmatprep.subr.bf16.mxu0 %v1373
        %1394 = vmatpush1.bf16.msra.mxu0 %v1372
        %1395 = vmatprep.subr.bf16.mxu0 %v1375
        %1396 = vmatpush1.bf16.msra.mxu0 %v1374
        %1397 = vmatprep.subr.bf16.mxu0 0
        %1398 = vmatpush1.bf16.msra.mxu0 0
        %1399 = vmatprep.subr.bf16.mxu0 0
        %1400 = vmatpush1.bf16.msra.mxu0 0
        %1401 = vmatprep.subr.bf16.mxu0 0
        %1402 = vmatpush1.bf16.msra.mxu0 0
        %1403 = vmatprep.subr.bf16.mxu0 0
        %1404 = vmatpush1.bf16.msra.mxu0 0
        %1405 = vmatprep.subr.bf16.mxu0 0
        %1406 = vmatpush1.bf16.msra.mxu0 0
        %1407 = vmatprep.subr.bf16.mxu0 0
        %1408 = vmatpush1.bf16.msra.mxu0 0
        %1409 = vmatprep.subr.bf16.mxu0 0
        %1410 = vmatpush1.bf16.msra.mxu0 0
        %1411 = vmatprep.subr.bf16.mxu0 0
        %1412 = vmatpush1.bf16.msra.mxu0 0
        %1413 = vmatprep.subr.bf16.mxu0 0
        %1414 = vmatpush1.bf16.msra.mxu0 0
        %1415 = vmatprep.subr.bf16.mxu0 0
        %1416 = vmatpush1.bf16.msra.mxu0 0
        %1417 = vmatprep.mubr.bf16.mxu0 0
        %1418 = vmatmul.mubr.bf16.gmra.mrb[0].mxu0 %v1383
        %v1419 = vpop.f32.mrb[0].mxu0
        %v1420 = vadd.f32 0.0, %v1419
        %v1421 = vpop.f32.mrb[0].mxu0
        %v1422 = vadd.f32 0.0, %v1421
        %v1423 = vpop.f32.mrb[0].mxu0
        %v1424 = vadd.f32 0.0, %v1423
        %v1425 = vpop.f32.mrb[0].mxu0
        %v1426 = vadd.f32 0.0, %v1425
        %1427 = vdwg.mxu0
        %v1428 = vpack.c.bf16 %v1424, %v1420
        %v1429 = vpack.c.bf16 %v1426, %v1422
        %1430 = vst [vmem:[#allocation2 + $0x8] sm:$0xff] %v1428
        %1431 = vst [vmem:[#allocation2 + $0x10] sm:$0xff] %v1429
        %v1432 = vld [vmem:[#allocation2] sm:$0xff]
        %v1433 = vld [vmem:[#allocation2 + $0x8] sm:$0xff]
        %v1434 = vld [vmem:[#allocation2 + $0x10] sm:$0xff]
        %1438 = vrot.lane.b32.xlu0 %v1432, 32
        %v1439 = vpop.permute.xlu0 %1438
        %1440 = vrot.lane.b32.xlu0 %v1433, 32
        %v1441 = vpop.permute.xlu0 %1440
        %1442 = vrot.lane.b32.xlu0 %v1434, 32
        %v1443 = vpop.permute.xlu0 %1442
        %vm1444 = vcmask 261120
        %v1445 = vsel %vm1444, %v1439, %v1441
        %v1446 = vsel %vm1444, %v1441, %v1443
        %1449 = vst [vmem:[#allocation4] sm:$0xff] %v1445
        %1450 = vst [vmem:[#allocation4 + $0x8] sm:$0xff] %v1446
        %v1451 = vld [vmem:[#allocation2] sm:$0xff]
        %v1452 = vld [vmem:[#allocation2 + $0x8] sm:$0xff]
        %v1453 = vld [vmem:[#allocation2 + $0x10] sm:$0xff]
        %1457 = vrot.lane.b32.xlu0 %v1451, 16
        %v1458 = vpop.permute.xlu0 %1457
        %1459 = vrot.lane.b32.xlu0 %v1452, 16
        %v1460 = vpop.permute.xlu0 %1459
        %1461 = vrot.lane.b32.xlu0 %v1453, 16
        %v1462 = vpop.permute.xlu0 %1461
        %v1463 = vsel %vm1262, %v1458, %v1460
        %v1464 = vsel %vm1262, %v1460, %v1462
        %1467 = vst [vmem:[#allocation4 + $0x10] sm:$0xff] %v1463
        %1468 = vst [vmem:[#allocation4 + $0x18] sm:$0xff] %v1464
        %1469 = vst [vmem:[#allocation4 + $0x20] sm:$0xff] %v1428
        %1470 = vst [vmem:[#allocation4 + $0x28] sm:$0xff] %v1429
        %v1471 = vld [vmem:[#allocation2 + $0x8] sm:$0xff]
        %v1472 = vld [vmem:[#allocation2 + $0x10] sm:$0xff]
        %v1473 = vld [vmem:[#allocation2 + $0x18] sm:$0xff]
        %1477 = vrot.lane.b32.xlu0 %v1471, 112
        %v1478 = vpop.permute.xlu0 %1477
        %1479 = vrot.lane.b32.xlu0 %v1472, 112
        %v1480 = vpop.permute.xlu0 %1479
        %1481 = vrot.lane.b32.xlu0 %v1473, 112
        %v1482 = vpop.permute.xlu0 %1481
        %v1483 = vsel %vm1283, %v1478, %v1480
        %v1484 = vsel %vm1283, %v1480, %v1482
        %1487 = vst [vmem:[#allocation4 + $0x30] sm:$0xff] %v1483
        %1488 = vst [vmem:[#allocation4 + $0x38] sm:$0xff] %v1484
        %v1489 = vld [vmem:[#allocation2 + $0x8] sm:$0xff]
        %v1490 = vld [vmem:[#allocation2 + $0x10] sm:$0xff]
        %v1491 = vld [vmem:[#allocation2 + $0x18] sm:$0xff]
        %1495 = vrot.lane.b32.xlu0 %v1489, 96
        %v1496 = vpop.permute.xlu0 %1495
        %1497 = vrot.lane.b32.xlu0 %v1490, 96
        %v1498 = vpop.permute.xlu0 %1497
        %1499 = vrot.lane.b32.xlu0 %v1491, 96
        %v1500 = vpop.permute.xlu0 %1499
        %vm1501 = vcmask 785408
        %v1502 = vsel %vm1501, %v1496, %v1498
        %v1503 = vsel %vm1501, %v1498, %v1500
        %1506 = vst [vmem:[#allocation4 + $0x40] sm:$0xff] %v1502
        %1507 = vst [vmem:[#allocation4 + $0x48] sm:$0xff] %v1503
        %v1508 = vld [vmem:[#allocation17] sm:$0xf]
        %v1509 = vld [vmem:[#allocation17 + $0x4] sm:$0xf]
        %v1510 = vld [vmem:[#allocation4] sm:$0xff]
        %v1511 = vld [vmem:[#allocation4 + $0x8] sm:$0xff]
        %v1512 = vld [vmem:[#allocation4 + $0x10] sm:$0xff]
        %v1513 = vld [vmem:[#allocation4 + $0x18] sm:$0xff]
        %v1514 = vld [vmem:[#allocation4 + $0x20] sm:$0xff]
        %v1515 = vld [vmem:[#allocation4 + $0x28] sm:$0xff]
        %v1516 = vld [vmem:[#allocation4 + $0x30] sm:$0xff]
        %v1517 = vld [vmem:[#allocation4 + $0x38] sm:$0xff]
        %v1518 = vld [vmem:[#allocation4 + $0x40] sm:$0xff]
        %v1519 = vld [vmem:[#allocation4 + $0x48] sm:$0xff]
        %v1520 = vld [vmem:[#allocation19] sm:$0xff]
        %v1521 = vld [vmem:[#allocation19 + $0x8] sm:$0xff]
        %1523 = vset.pattern.permute.xlu0 0
        %1524 = vperm.xlu0 %1523, %v1520
        %v1525 = vpop.permute.xlu0 %1524
        %1528 = vset.pattern.permute.xlu0 0
        %1529 = vperm.xlu0 %1528, %v1521
        %v1530 = vpop.permute.xlu0 %1529
        %v1534 = vunpack.c.l.b16 %v1508
        %v1535 = vunpack.c.l.b16 %v1509
        %v1536 = vpack.c.b16 %v1535, %v1534
        %vm1537 = vcmask 654336
        %v1539 = vsel %vm1537, %v1536, 0
        %1541 = vmatprep.subr.bf16.mxu0 %v1511
        %1542 = vmatpush1.bf16.msra.mxu0 %v1510
        %1543 = vmatprep.subr.bf16.mxu0 %v1513
        %1544 = vmatpush1.bf16.msra.mxu0 %v1512
        %1545 = vmatprep.subr.bf16.mxu0 %v1515
        %1546 = vmatpush1.bf16.msra.mxu0 %v1514
        %1547 = vmatprep.subr.bf16.mxu0 %v1517
        %1548 = vmatpush1.bf16.msra.mxu0 %v1516
        %1549 = vmatprep.subr.bf16.mxu0 %v1519
        %1550 = vmatpush1.bf16.msra.mxu0 %v1518
        %1551 = vmatprep.subr.bf16.mxu0 0
        %1552 = vmatpush1.bf16.msra.mxu0 0
        %1553 = vmatprep.subr.bf16.mxu0 0
        %1554 = vmatpush1.bf16.msra.mxu0 0
        %1555 = vmatprep.subr.bf16.mxu0 0
        %1556 = vmatpush1.bf16.msra.mxu0 0
        %1557 = vmatprep.subr.bf16.mxu0 0
        %1558 = vmatpush1.bf16.msra.mxu0 0
        %1559 = vmatprep.subr.bf16.mxu0 0
        %1560 = vmatpush1.bf16.msra.mxu0 0
        %1561 = vmatprep.subr.bf16.mxu0 0
        %1562 = vmatpush1.bf16.msra.mxu0 0
        %1563 = vmatprep.subr.bf16.mxu0 0
        %1564 = vmatpush1.bf16.msra.mxu0 0
        %1565 = vmatprep.subr.bf16.mxu0 0
        %1566 = vmatpush1.bf16.msra.mxu0 0
        %1567 = vmatprep.subr.bf16.mxu0 0
        %1568 = vmatpush1.bf16.msra.mxu0 0
        %1569 = vmatprep.subr.bf16.mxu0 0
        %1570 = vmatpush1.bf16.msra.mxu0 0
        %1571 = vmatprep.subr.bf16.mxu0 0
        %1572 = vmatpush1.bf16.msra.mxu0 0
        %1573 = vmatprep.mubr.bf16.mxu0 0
        %1574 = vmatmul.mubr.bf16.gmra.mrb[0].mxu0 %v1539
        %v1575 = vpop.f32.mrb[0].mxu0
        %v1576 = vadd.f32 %v1525, %v1575
        %v1577 = vpop.f32.mrb[0].mxu0
        %v1578 = vadd.f32 %v1525, %v1577
        %v1579 = vpop.f32.mrb[0].mxu0
        %v1580 = vadd.f32 %v1530, %v1579
        %v1581 = vpop.f32.mrb[0].mxu0
        %v1582 = vadd.f32 %v1530, %v1581
        %1583 = vdwg.mxu0
        %v1584 = vld [vmem:[#allocation13] sm:$0xf]
        %v1585 = vld [vmem:[#allocation13 + $0x4] sm:$0xf]
        %v1586 = vld [vmem:[#allocation3] sm:$0xff]
        %v1587 = vld [vmem:[#allocation3 + $0x8] sm:$0xff]
        %v1588 = vld [vmem:[#allocation3 + $0x10] sm:$0xff]
        %v1589 = vld [vmem:[#allocation3 + $0x18] sm:$0xff]
        %v1590 = vld [vmem:[#allocation3 + $0x20] sm:$0xff]
        %v1591 = vld [vmem:[#allocation3 + $0x28] sm:$0xff]
        %v1592 = vld [vmem:[#allocation3 + $0x30] sm:$0xff]
        %v1593 = vld [vmem:[#allocation3 + $0x38] sm:$0xff]
        %v1594 = vld [vmem:[#allocation3 + $0x40] sm:$0xff]
        %v1595 = vld [vmem:[#allocation3 + $0x48] sm:$0xff]
        %v1596 = vld [vmem:[#allocation3 + $0x50] sm:$0xff]
        %v1597 = vld [vmem:[#allocation3 + $0x58] sm:$0xff]
        %v1598 = vld [vmem:[#allocation3 + $0x60] sm:$0xff]
        %v1599 = vld [vmem:[#allocation3 + $0x68] sm:$0xff]
        %v1600 = vld [vmem:[#allocation3 + $0x70] sm:$0xff]
        %v1601 = vld [vmem:[#allocation3 + $0x78] sm:$0xff]
        %v1604 = vunpack.c.l.b16 %v1584
        %v1605 = vunpack.c.l.b16 %v1585
        %v1606 = vpack.c.b16 %v1605, %v1604
        %1608 = vmatprep.subr.bf16.mxu0 %v1587
        %1609 = vmatpush1.bf16.msra.mxu0 %v1586
        %1610 = vmatprep.subr.bf16.mxu0 %v1589
        %1611 = vmatpush1.bf16.msra.mxu0 %v1588
        %1612 = vmatprep.subr.bf16.mxu0 %v1591
        %1613 = vmatpush1.bf16.msra.mxu0 %v1590
        %1614 = vmatprep.subr.bf16.mxu0 %v1593
        %1615 = vmatpush1.bf16.msra.mxu0 %v1592
        %1616 = vmatprep.subr.bf16.mxu0 %v1595
        %1617 = vmatpush1.bf16.msra.mxu0 %v1594
        %1618 = vmatprep.subr.bf16.mxu0 %v1597
        %1619 = vmatpush1.bf16.msra.mxu0 %v1596
        %1620 = vmatprep.subr.bf16.mxu0 %v1599
        %1621 = vmatpush1.bf16.msra.mxu0 %v1598
        %1622 = vmatprep.subr.bf16.mxu0 %v1601
        %1623 = vmatpush1.bf16.msra.mxu0 %v1600
        %1624 = vmatprep.subr.bf16.mxu0 0
        %1625 = vmatpush1.bf16.msra.mxu0 0
        %1626 = vmatprep.subr.bf16.mxu0 0
        %1627 = vmatpush1.bf16.msra.mxu0 0
        %1628 = vmatprep.subr.bf16.mxu0 0
        %1629 = vmatpush1.bf16.msra.mxu0 0
        %1630 = vmatprep.subr.bf16.mxu0 0
        %1631 = vmatpush1.bf16.msra.mxu0 0
        %1632 = vmatprep.subr.bf16.mxu0 0
        %1633 = vmatpush1.bf16.msra.mxu0 0
        %1634 = vmatprep.subr.bf16.mxu0 0
        %1635 = vmatpush1.bf16.msra.mxu0 0
        %1636 = vmatprep.subr.bf16.mxu0 0
        %1637 = vmatpush1.bf16.msra.mxu0 0
        %1638 = vmatprep.subr.bf16.mxu0 0
        %1639 = vmatpush1.bf16.msra.mxu0 0
        %1640 = vmatprep.mubr.bf16.mxu0 0
        %1641 = vmatmul.mubr.bf16.gmra.mrb[0].mxu0 %v1606
        %v1642 = vpop.f32.mrb[0].mxu0
        %v1643 = vadd.f32 0.0, %v1642
        %v1644 = vpop.f32.mrb[0].mxu0
        %v1645 = vadd.f32 0.0, %v1644
        %v1646 = vpop.f32.mrb[0].mxu0
        %v1647 = vadd.f32 0.0, %v1646
        %v1648 = vpop.f32.mrb[0].mxu0
        %v1649 = vadd.f32 0.0, %v1648
        %1650 = vdwg.mxu0
        %v1651 = vpack.c.bf16 %v1647, %v1643
        %v1652 = vpack.c.bf16 %v1649, %v1645
        %1653 = vst [vmem:[#allocation2 + $0x8] sm:$0xff] %v1651
        %1654 = vst [vmem:[#allocation2 + $0x10] sm:$0xff] %v1652
        %v1655 = vld [vmem:[#allocation2] sm:$0xff]
        %v1656 = vld [vmem:[#allocation2 + $0x8] sm:$0xff]
        %v1657 = vld [vmem:[#allocation2 + $0x10] sm:$0xff]
        %1661 = vrot.lane.b32.xlu0 %v1655, 48
        %v1662 = vpop.permute.xlu0 %1661
        %1663 = vrot.lane.b32.xlu0 %v1656, 48
        %v1664 = vpop.permute.xlu0 %1663
        %1665 = vrot.lane.b32.xlu0 %v1657, 48
        %v1666 = vpop.permute.xlu0 %1665
        %vm1667 = vcmask 392192
        %v1668 = vsel %vm1667, %v1662, %v1664
        %v1669 = vsel %vm1667, %v1664, %v1666
        %1672 = vst [vmem:[#allocation4] sm:$0xff] %v1668
        %1673 = vst [vmem:[#allocation4 + $0x8] sm:$0xff] %v1669
        %v1674 = vld [vmem:[#allocation2] sm:$0xff]
        %v1675 = vld [vmem:[#allocation2 + $0x8] sm:$0xff]
        %v1676 = vld [vmem:[#allocation2 + $0x10] sm:$0xff]
        %1680 = vrot.lane.b32.xlu0 %v1674, 32
        %v1681 = vpop.permute.xlu0 %1680
        %1682 = vrot.lane.b32.xlu0 %v1675, 32
        %v1683 = vpop.permute.xlu0 %1682
        %1684 = vrot.lane.b32.xlu0 %v1676, 32
        %v1685 = vpop.permute.xlu0 %1684
        %v1686 = vsel %vm1444, %v1681, %v1683
        %v1687 = vsel %vm1444, %v1683, %v1685
        %1690 = vst [vmem:[#allocation4 + $0x10] sm:$0xff] %v1686
        %1691 = vst [vmem:[#allocation4 + $0x18] sm:$0xff] %v1687
        %v1692 = vld [vmem:[#allocation2] sm:$0xff]
        %v1693 = vld [vmem:[#allocation2 + $0x8] sm:$0xff]
        %v1694 = vld [vmem:[#allocation2 + $0x10] sm:$0xff]
        %1698 = vrot.lane.b32.xlu0 %v1692, 16
        %v1699 = vpop.permute.xlu0 %1698
        %1700 = vrot.lane.b32.xlu0 %v1693, 16
        %v1701 = vpop.permute.xlu0 %1700
        %1702 = vrot.lane.b32.xlu0 %v1694, 16
        %v1703 = vpop.permute.xlu0 %1702
        %v1704 = vsel %vm1262, %v1699, %v1701
        %v1705 = vsel %vm1262, %v1701, %v1703
        %1708 = vst [vmem:[#allocation4 + $0x20] sm:$0xff] %v1704
        %1709 = vst [vmem:[#allocation4 + $0x28] sm:$0xff] %v1705
        %1710 = vst [vmem:[#allocation4 + $0x30] sm:$0xff] %v1651
        %1711 = vst [vmem:[#allocation4 + $0x38] sm:$0xff] %v1652
        %v1712 = vld [vmem:[#allocation2 + $0x8] sm:$0xff]
        %v1713 = vld [vmem:[#allocation2 + $0x10] sm:$0xff]
        %v1714 = vld [vmem:[#allocation2 + $0x18] sm:$0xff]
        %1718 = vrot.lane.b32.xlu0 %v1712, 112
        %v1719 = vpop.permute.xlu0 %1718
        %1720 = vrot.lane.b32.xlu0 %v1713, 112
        %v1721 = vpop.permute.xlu0 %1720
        %1722 = vrot.lane.b32.xlu0 %v1714, 112
        %v1723 = vpop.permute.xlu0 %1722
        %v1724 = vsel %vm1283, %v1719, %v1721
        %v1725 = vsel %vm1283, %v1721, %v1723
        %1728 = vst [vmem:[#allocation4 + $0x40] sm:$0xff] %v1724
        %1729 = vst [vmem:[#allocation4 + $0x48] sm:$0xff] %v1725
        %v1730 = vld [vmem:[#allocation2 + $0x8] sm:$0xff]
        %v1731 = vld [vmem:[#allocation2 + $0x10] sm:$0xff]
        %v1732 = vld [vmem:[#allocation2 + $0x18] sm:$0xff]
        %1736 = vrot.lane.b32.xlu0 %v1730, 96
        %v1737 = vpop.permute.xlu0 %1736
        %1738 = vrot.lane.b32.xlu0 %v1731, 96
        %v1739 = vpop.permute.xlu0 %1738
        %1740 = vrot.lane.b32.xlu0 %v1732, 96
        %v1741 = vpop.permute.xlu0 %1740
        %v1742 = vsel %vm1501, %v1737, %v1739
        %v1743 = vsel %vm1501, %v1739, %v1741
        %1746 = vst [vmem:[#allocation4 + $0x50] sm:$0xff] %v1742
        %1747 = vst [vmem:[#allocation4 + $0x58] sm:$0xff] %v1743
        %v1748 = vld [vmem:[#allocation2 + $0x8] sm:$0xff]
        %v1749 = vld [vmem:[#allocation2 + $0x10] sm:$0xff]
        %v1750 = vld [vmem:[#allocation2 + $0x18] sm:$0xff]
        %1754 = vrot.lane.b32.xlu0 %v1748, 80
        %v1755 = vpop.permute.xlu0 %1754
        %1756 = vrot.lane.b32.xlu0 %v1749, 80
        %v1757 = vpop.permute.xlu0 %1756
        %1758 = vrot.lane.b32.xlu0 %v1750, 80
        %v1759 = vpop.permute.xlu0 %1758
        %vm1760 = vcmask 654336
        %v1761 = vsel %vm1760, %v1755, %v1757
        %v1762 = vsel %vm1760, %v1757, %v1759
        %1765 = vst [vmem:[#allocation4 + $0x60] sm:$0xff] %v1761
        %1766 = vst [vmem:[#allocation4 + $0x68] sm:$0xff] %v1762
        %v1767 = vld [vmem:[#allocation20] sm:$0xf]
        %v1768 = vld [vmem:[#allocation20 + $0x4] sm:$0xf]
        %v1769 = vld [vmem:[#allocation4] sm:$0xff]
        %v1770 = vld [vmem:[#allocation4 + $0x8] sm:$0xff]
        %v1771 = vld [vmem:[#allocation4 + $0x10] sm:$0xff]
        %v1772 = vld [vmem:[#allocation4 + $0x18] sm:$0xff]
        %v1773 = vld [vmem:[#allocation4 + $0x20] sm:$0xff]
        %v1774 = vld [vmem:[#allocation4 + $0x28] sm:$0xff]
        %v1775 = vld [vmem:[#allocation4 + $0x30] sm:$0xff]
        %v1776 = vld [vmem:[#allocation4 + $0x38] sm:$0xff]
        %v1777 = vld [vmem:[#allocation4 + $0x40] sm:$0xff]
        %v1778 = vld [vmem:[#allocation4 + $0x48] sm:$0xff]
        %v1779 = vld [vmem:[#allocation4 + $0x50] sm:$0xff]
        %v1780 = vld [vmem:[#allocation4 + $0x58] sm:$0xff]
        %v1781 = vld [vmem:[#allocation4 + $0x60] sm:$0xff]
        %v1782 = vld [vmem:[#allocation4 + $0x68] sm:$0xff]
        %v1783 = vld [vmem:[#allocation22] sm:$0xff]
        %v1784 = vld [vmem:[#allocation22 + $0x8] sm:$0xff]
        %1786 = vset.pattern.permute.xlu0 0
        %1787 = vperm.xlu0 %1786, %v1783
        %v1788 = vpop.permute.xlu0 %1787
        %1791 = vset.pattern.permute.xlu0 0
        %1792 = vperm.xlu0 %1791, %v1784
        %v1793 = vpop.permute.xlu0 %1792
        %v1797 = vunpack.c.l.b16 %v1767
        %v1798 = vunpack.c.l.b16 %v1768
        %v1799 = vpack.c.b16 %v1798, %v1797
        %vm1800 = vcmask 916480
        %v1802 = vsel %vm1800, %v1799, 0
        %1804 = vmatprep.subr.bf16.mxu0 %v1770
        %1805 = vmatpush1.bf16.msra.mxu0 %v1769
        %1806 = vmatprep.subr.bf16.mxu0 %v1772
        %1807 = vmatpush1.bf16.msra.mxu0 %v1771
        %1808 = vmatprep.subr.bf16.mxu0 %v1774
        %1809 = vmatpush1.bf16.msra.mxu0 %v1773
        %1810 = vmatprep.subr.bf16.mxu0 %v1776
        %1811 = vmatpush1.bf16.msra.mxu0 %v1775
        %1812 = vmatprep.subr.bf16.mxu0 %v1778
        %1813 = vmatpush1.bf16.msra.mxu0 %v1777
        %1814 = vmatprep.subr.bf16.mxu0 %v1780
        %1815 = vmatpush1.bf16.msra.mxu0 %v1779
        %1816 = vmatprep.subr.bf16.mxu0 %v1782
        %1817 = vmatpush1.bf16.msra.mxu0 %v1781
        %1818 = vmatprep.subr.bf16.mxu0 0
        %1819 = vmatpush1.bf16.msra.mxu0 0
        %1820 = vmatprep.subr.bf16.mxu0 0
        %1821 = vmatpush1.bf16.msra.mxu0 0
        %1822 = vmatprep.subr.bf16.mxu0 0
        %1823 = vmatpush1.bf16.msra.mxu0 0
        %1824 = vmatprep.subr.bf16.mxu0 0
        %1825 = vmatpush1.bf16.msra.mxu0 0
        %1826 = vmatprep.subr.bf16.mxu0 0
        %1827 = vmatpush1.bf16.msra.mxu0 0
        %1828 = vmatprep.subr.bf16.mxu0 0
        %1829 = vmatpush1.bf16.msra.mxu0 0
        %1830 = vmatprep.subr.bf16.mxu0 0
        %1831 = vmatpush1.bf16.msra.mxu0 0
        %1832 = vmatprep.subr.bf16.mxu0 0
        %1833 = vmatpush1.bf16.msra.mxu0 0
        %1834 = vmatprep.subr.bf16.mxu0 0
        %1835 = vmatpush1.bf16.msra.mxu0 0
        %1836 = vmatprep.mubr.bf16.mxu0 0
        %1837 = vmatmul.mubr.bf16.gmra.mrb[0].mxu0 %v1802
        %v1838 = vpop.f32.mrb[0].mxu0
        %v1839 = vadd.f32 %v1788, %v1838
        %v1840 = vpop.f32.mrb[0].mxu0
        %v1841 = vadd.f32 %v1788, %v1840
        %v1842 = vpop.f32.mrb[0].mxu0
        %v1843 = vadd.f32 %v1793, %v1842
        %v1844 = vpop.f32.mrb[0].mxu0
        %v1845 = vadd.f32 %v1793, %v1844
        %1846 = vdwg.mxu0
        %v1847 = vadd.f32 %v1166, %v1168
        %1848 = vadd.xlane.f32.xlu0 %v1847
        %v1849 = vpop.xlane.xlu0 %1848
        %v1850 = vadd.f32 %v1170, %v1172
        %1851 = vadd.xlane.f32.xlu0 %v1850
        %v1852 = vpop.xlane.xlu0 %1851
        %v1853 = vrcp.pop 256.0
        %v1854 = vmul.f32 %v1849, %v1853
        %v1855 = vmul.f32 %v1852, %v1853
        %v1856 = vld [vmem:[#allocation23] sm:$0xff]
        %v1857 = vld [vmem:[#allocation23 + $0x8] sm:$0xff]
        %v1858 = vmul.f32 %v1856, %v1854
        %v1859 = vmul.f32 %v1857, %v1855
        %vm1860 = vcmask 31744
        %v1861 = vsel %vm1860, %v1858, 0.0
        %v1862 = vsel %vm1860, %v1859, 0.0
        %v1863 = vadd.f32 %v1861, %v1862
        %v1864 = vrot.slane %v1863, 4
        %v1865 = vadd.f32 %v1863, %v1864
        %v1866 = vrot.slane %v1865, 2
        %v1867 = vadd.f32 %v1865, %v1866
        %v1868 = vrot.slane %v1867, 1
        %v1869 = vadd.f32 %v1867, %v1868
        %v1870 = vld [vmem:[#allocation25] sm:$0x1]
        %v1871 = vadd.f32 %v1869, %v1870
        %v1872 = vmul.f32 %v1871, 0.5
        %v1873 = vmul.f32 %v1871, 0.70710677
        %v1874 = vand.u32 2147483647, %v1873
        %v1875 = vmul.f32 %v1874, 0.3275911
        %v1876 = vadd.f32 %v1875, 1.0
        %v1877 = vrcp.pop %v1876
        %v1878 = vmul.f32 1.0, %v1877
        %v1879 = vmul.f32 %v1878, 1.0614054
        %v1880 = vadd.f32 %v1879, -1.4531521
        %v1881 = vmul.f32 %v1880, %v1878
        %v1882 = vadd.f32 %v1881, 1.4214138
        %v1883 = vmul.f32 %v1882, %v1878
        %v1884 = vadd.f32 %v1883, -0.28449672
        %v1885 = vmul.f32 %v1884, %v1878
        %v1886 = vadd.f32 %v1885, 0.2548296
        %v1887 = vmul.f32 %v1886, %v1878
        %v1888 = vsub.f32 0.0, %v1874
        %v1889 = vmul.f32 %v1888, %v1874
        %v1890 = vmul.f32 %v1889, 1.442695
        %v1891 = vpow.pop %v1890
        %v1892 = vmul.f32 %v1887, %v1891
        %v1893 = vsub.f32 1.0, %v1892
        %vm1894 = vcmp.ge.f32.partialorder %v1873, 0.0
        %v1895 = vsub.f32 0.0, %v1893
        %v1896 = vsel %vm1894, %v1893, %v1895
        %v1897 = vadd.f32 %v1896, 1.0
        %v1898 = vmul.f32 %v1872, %v1897
        %v1899 = vld [vmem:[#allocation26] sm:$0xff]
        %v1900 = vld [vmem:[#allocation26 + $0x8] sm:$0xff]
        %v1901 = vlaneseq
        %v1902 = vshrl.u32 %v1901, 7
        %v1903 = vsub.s32 0, %v1902
        %v1904 = vrot.slane %v1898, %v1903
        %v1905 = vmul.f32 %v1899, %v1904
        %v1906 = vmul.f32 %v1900, %v1904
        %v1907 = vsel %vm1860, %v1905, 0.0
        %1908 = vadd.xlane.f32.xlu0 %v1907
        %v1909 = vpop.xlane.xlu0 %1908
        %v1910 = vsel %vm1860, %v1906, 0.0
        %1911 = vadd.xlane.f32.xlu0 %v1910
        %v1912 = vpop.xlane.xlu0 %1911
        %v1913 = vld [vmem:[#allocation28] sm:$0xff]
        %v1914 = vld [vmem:[#allocation28 + $0x8] sm:$0xff]
        %v1915 = vadd.f32 %v1909, %v1913
        %v1916 = vadd.f32 %v1912, %v1914
        %v1917 = vsub.f32 0.0, %v1915
        %v1918 = vsub.f32 0.0, %v1916
        %v1919 = vmul.f32 %v1917, 1.442695
        %v1920 = vpow.pop %v1919
        %v1921 = vmul.f32 %v1918, 1.442695
        %v1922 = vpow.pop %v1921
        %v1923 = vadd.f32 %v1920, 1.0
        %v1924 = vadd.f32 %v1922, 1.0
        %v1925 = vrcp.pop %v1923
        %v1926 = vmul.f32 1.0, %v1925
        %v1927 = vrcp.pop %v1924
        %v1928 = vmul.f32 1.0, %v1927
        %1930 = vset.pattern.permute.xlu0 0
        %1931 = vperm.xlu0 %1930, %v1926
        %v1932 = vpop.permute.xlu0 %1931
        %1935 = vset.pattern.permute.xlu0 0
        %1936 = vperm.xlu0 %1935, %v1928
        %v1937 = vpop.permute.xlu0 %1936
        %v1939 = vmul.f32 %v1932, %v1166
        %v1940 = vmul.f32 %v1932, %v1168
        %v1941 = vmul.f32 %v1937, %v1170
        %v1942 = vmul.f32 %v1937, %v1172
        %v1943 = vadd.f32 %v1354, %v1356
        %1944 = vadd.xlane.f32.xlu0 %v1943
        %v1945 = vpop.xlane.xlu0 %1944
        %v1946 = vadd.f32 %v1358, %v1360
        %1947 = vadd.xlane.f32.xlu0 %v1946
        %v1948 = vpop.xlane.xlu0 %1947
        %v1949 = vmul.f32 %v1945, %v1853
        %v1950 = vmul.f32 %v1948, %v1853
        %v1951 = vmul.f32 %v1856, %v1949
        %v1952 = vmul.f32 %v1857, %v1950
        %v1953 = vsel %vm1860, %v1951, 0.0
        %v1954 = vsel %vm1860, %v1952, 0.0
        %v1955 = vadd.f32 %v1953, %v1954
        %v1956 = vrot.slane %v1955, 4
        %v1957 = vadd.f32 %v1955, %v1956
        %v1958 = vrot.slane %v1957, 2
        %v1959 = vadd.f32 %v1957, %v1958
        %v1960 = vrot.slane %v1959, 1
        %v1961 = vadd.f32 %v1959, %v1960
        %v1962 = vadd.f32 %v1961, %v1870
        %v1963 = vmul.f32 %v1962, 0.5
        %v1964 = vmul.f32 %v1962, 0.70710677
        %v1965 = vand.u32 2147483647, %v1964
        %v1966 = vmul.f32 %v1965, 0.3275911
        %v1967 = vadd.f32 %v1966, 1.0
        %v1968 = vrcp.pop %v1967
        %v1969 = vmul.f32 1.0, %v1968
        %v1970 = vmul.f32 %v1969, 1.0614054
        %v1971 = vadd.f32 %v1970, -1.4531521
        %v1972 = vmul.f32 %v1971, %v1969
        %v1973 = vadd.f32 %v1972, 1.4214138
        %v1974 = vmul.f32 %v1973, %v1969
        %v1975 = vadd.f32 %v1974, -0.28449672
        %v1976 = vmul.f32 %v1975, %v1969
        %v1977 = vadd.f32 %v1976, 0.2548296
        %v1978 = vmul.f32 %v1977, %v1969
        %v1979 = vsub.f32 0.0, %v1965
        %v1980 = vmul.f32 %v1979, %v1965
        %v1981 = vmul.f32 %v1980, 1.442695
        %v1982 = vpow.pop %v1981
        %v1983 = vmul.f32 %v1978, %v1982
        %v1984 = vsub.f32 1.0, %v1983
        %vm1985 = vcmp.ge.f32.partialorder %v1964, 0.0
        %v1986 = vsub.f32 0.0, %v1984
        %v1987 = vsel %vm1985, %v1984, %v1986
        %v1988 = vadd.f32 %v1987, 1.0
        %v1989 = vmul.f32 %v1963, %v1988
        %v1990 = vlaneseq
        %v1991 = vshrl.u32 %v1990, 7
        %v1992 = vsub.s32 0, %v1991
        %v1993 = vrot.slane %v1989, %v1992
        %v1994 = vmul.f32 %v1899, %v1993
        %v1995 = vmul.f32 %v1900, %v1993
        %v1996 = vsel %vm1860, %v1994, 0.0
        %1997 = vadd.xlane.f32.xlu0 %v1996
        %v1998 = vpop.xlane.xlu0 %1997
        %v1999 = vsel %vm1860, %v1995, 0.0
        %2000 = vadd.xlane.f32.xlu0 %v1999
        %v2001 = vpop.xlane.xlu0 %2000
        %v2002 = vadd.f32 %v1998, %v1913
        %v2003 = vadd.f32 %v2001, %v1914
        %v2004 = vsub.f32 0.0, %v2002
        %v2005 = vsub.f32 0.0, %v2003
        %v2006 = vmul.f32 %v2004, 1.442695
        %v2007 = vpow.pop %v2006
        %v2008 = vmul.f32 %v2005, 1.442695
        %v2009 = vpow.pop %v2008
        %v2010 = vadd.f32 %v2007, 1.0
        %v2011 = vadd.f32 %v2009, 1.0
        %v2012 = vrcp.pop %v2010
        %v2013 = vmul.f32 1.0, %v2012
        %v2014 = vrcp.pop %v2011
        %v2015 = vmul.f32 1.0, %v2014
        %2017 = vset.pattern.permute.xlu0 0
        %2018 = vperm.xlu0 %2017, %v2013
        %v2019 = vpop.permute.xlu0 %2018
        %2022 = vset.pattern.permute.xlu0 0
        %2023 = vperm.xlu0 %2022, %v2015
        %v2024 = vpop.permute.xlu0 %2023
        %v2026 = vmul.f32 %v2019, %v1354
        %v2027 = vmul.f32 %v2019, %v1356
        %v2028 = vmul.f32 %v2024, %v1358
        %v2029 = vmul.f32 %v2024, %v1360
        %v2030 = vadd.f32 %v1939, %v2026
        %v2031 = vadd.f32 %v1940, %v2027
        %v2032 = vadd.f32 %v1941, %v2028
        %v2033 = vadd.f32 %v1942, %v2029
        %v2034 = vadd.f32 %v1576, %v1578
        %2035 = vadd.xlane.f32.xlu0 %v2034
        %v2036 = vpop.xlane.xlu0 %2035
        %v2037 = vadd.f32 %v1580, %v1582
        %2038 = vadd.xlane.f32.xlu0 %v2037
        %v2039 = vpop.xlane.xlu0 %2038
        %v2040 = vmul.f32 %v2036, %v1853
        %v2041 = vmul.f32 %v2039, %v1853
        %v2042 = vmul.f32 %v1856, %v2040
        %v2043 = vmul.f32 %v1857, %v2041
        %v2044 = vsel %vm1860, %v2042, 0.0
        %v2045 = vsel %vm1860, %v2043, 0.0
        %v2046 = vadd.f32 %v2044, %v2045
        %v2047 = vrot.slane %v2046, 4
        %v2048 = vadd.f32 %v2046, %v2047
        %v2049 = vrot.slane %v2048, 2
        %v2050 = vadd.f32 %v2048, %v2049
        %v2051 = vrot.slane %v2050, 1
        %v2052 = vadd.f32 %v2050, %v2051
        %v2053 = vadd.f32 %v2052, %v1870
        %v2054 = vmul.f32 %v2053, 0.5
        %v2055 = vmul.f32 %v2053, 0.70710677
        %v2056 = vand.u32 2147483647, %v2055
        %v2057 = vmul.f32 %v2056, 0.3275911
        %v2058 = vadd.f32 %v2057, 1.0
        %v2059 = vrcp.pop %v2058
        %v2060 = vmul.f32 1.0, %v2059
        %v2061 = vmul.f32 %v2060, 1.0614054
        %v2062 = vadd.f32 %v2061, -1.4531521
        %v2063 = vmul.f32 %v2062, %v2060
        %v2064 = vadd.f32 %v2063, 1.4214138
        %v2065 = vmul.f32 %v2064, %v2060
        %v2066 = vadd.f32 %v2065, -0.28449672
        %v2067 = vmul.f32 %v2066, %v2060
        %v2068 = vadd.f32 %v2067, 0.2548296
        %v2069 = vmul.f32 %v2068, %v2060
        %v2070 = vsub.f32 0.0, %v2056
        %v2071 = vmul.f32 %v2070, %v2056
        %v2072 = vmul.f32 %v2071, 1.442695
        %v2073 = vpow.pop %v2072
        %v2074 = vmul.f32 %v2069, %v2073
        %v2075 = vsub.f32 1.0, %v2074
        %vm2076 = vcmp.ge.f32.partialorder %v2055, 0.0
        %v2077 = vsub.f32 0.0, %v2075
        %v2078 = vsel %vm2076, %v2075, %v2077
        %v2079 = vadd.f32 %v2078, 1.0
        %v2080 = vmul.f32 %v2054, %v2079
        %v2081 = vlaneseq
        %v2082 = vshrl.u32 %v2081, 7
        %v2083 = vsub.s32 0, %v2082
        %v2084 = vrot.slane %v2080, %v2083
        %v2085 = vmul.f32 %v1899, %v2084
        %v2086 = vmul.f32 %v1900, %v2084
        %v2087 = vsel %vm1860, %v2085, 0.0
        %2088 = vadd.xlane.f32.xlu0 %v2087
        %v2089 = vpop.xlane.xlu0 %2088
        %v2090 = vsel %vm1860, %v2086, 0.0
        %2091 = vadd.xlane.f32.xlu0 %v2090
        %v2092 = vpop.xlane.xlu0 %2091
        %v2093 = vadd.f32 %v2089, %v1913
        %v2094 = vadd.f32 %v2092, %v1914
        %v2095 = vsub.f32 0.0, %v2093
        %v2096 = vsub.f32 0.0, %v2094
        %v2097 = vmul.f32 %v2095, 1.442695
        %v2098 = vpow.pop %v2097
        %v2099 = vmul.f32 %v2096, 1.442695
        %v2100 = vpow.pop %v2099
        %v2101 = vadd.f32 %v2098, 1.0
        %v2102 = vadd.f32 %v2100, 1.0
        %v2103 = vrcp.pop %v2101
        %v2104 = vmul.f32 1.0, %v2103
        %v2105 = vrcp.pop %v2102
        %v2106 = vmul.f32 1.0, %v2105
        %2108 = vset.pattern.permute.xlu0 0
        %2109 = vperm.xlu0 %2108, %v2104
        %v2110 = vpop.permute.xlu0 %2109
        %2113 = vset.pattern.permute.xlu0 0
        %2114 = vperm.xlu0 %2113, %v2106
        %v2115 = vpop.permute.xlu0 %2114
        %v2117 = vmul.f32 %v2110, %v1576
        %v2118 = vmul.f32 %v2110, %v1578
        %v2119 = vmul.f32 %v2115, %v1580
        %v2120 = vmul.f32 %v2115, %v1582
        %v2121 = vadd.f32 %v2030, %v2117
        %v2122 = vadd.f32 %v2031, %v2118
        %v2123 = vadd.f32 %v2032, %v2119
        %v2124 = vadd.f32 %v2033, %v2120
        %v2125 = vadd.f32 %v1839, %v1841
        %2126 = vadd.xlane.f32.xlu0 %v2125
        %v2127 = vpop.xlane.xlu0 %2126
        %v2128 = vadd.f32 %v1843, %v1845
        %2129 = vadd.xlane.f32.xlu0 %v2128
        %v2130 = vpop.xlane.xlu0 %2129
        %v2131 = vmul.f32 %v2127, %v1853
        %v2132 = vmul.f32 %v2130, %v1853
        %v2133 = vmul.f32 %v1856, %v2131
        %v2134 = vmul.f32 %v1857, %v2132
        %v2135 = vsel %vm1860, %v2133, 0.0
        %v2136 = vsel %vm1860, %v2134, 0.0
        %v2137 = vadd.f32 %v2135, %v2136
        %v2138 = vrot.slane %v2137, 4
        %v2139 = vadd.f32 %v2137, %v2138
        %v2140 = vrot.slane %v2139, 2
        %v2141 = vadd.f32 %v2139, %v2140
        %v2142 = vrot.slane %v2141, 1
        %v2143 = vadd.f32 %v2141, %v2142
        %v2144 = vadd.f32 %v2143, %v1870
        %v2145 = vmul.f32 %v2144, 0.5
        %v2146 = vmul.f32 %v2144, 0.70710677
        %v2147 = vand.u32 2147483647, %v2146
        %v2148 = vmul.f32 %v2147, 0.3275911
        %v2149 = vadd.f32 %v2148, 1.0
        %v2150 = vrcp.pop %v2149
        %v2151 = vmul.f32 1.0, %v2150
        %v2152 = vmul.f32 %v2151, 1.0614054
        %v2153 = vadd.f32 %v2152, -1.4531521
        %v2154 = vmul.f32 %v2153, %v2151
        %v2155 = vadd.f32 %v2154, 1.4214138
        %v2156 = vmul.f32 %v2155, %v2151
        %v2157 = vadd.f32 %v2156, -0.28449672
        %v2158 = vmul.f32 %v2157, %v2151
        %v2159 = vadd.f32 %v2158, 0.2548296
        %v2160 = vmul.f32 %v2159, %v2151
        %v2161 = vsub.f32 0.0, %v2147
        %v2162 = vmul.f32 %v2161, %v2147
        %v2163 = vmul.f32 %v2162, 1.442695
        %v2164 = vpow.pop %v2163
        %v2165 = vmul.f32 %v2160, %v2164
        %v2166 = vsub.f32 1.0, %v2165
        %vm2167 = vcmp.ge.f32.partialorder %v2146, 0.0
        %v2168 = vsub.f32 0.0, %v2166
        %v2169 = vsel %vm2167, %v2166, %v2168
        %v2170 = vadd.f32 %v2169, 1.0
        %v2171 = vmul.f32 %v2145, %v2170
        %v2172 = vlaneseq
        %v2173 = vshrl.u32 %v2172, 7
        %v2174 = vsub.s32 0, %v2173
        %v2175 = vrot.slane %v2171, %v2174
        %v2176 = vmul.f32 %v1899, %v2175
        %v2177 = vmul.f32 %v1900, %v2175
        %v2178 = vsel %vm1860, %v2176, 0.0
        %2179 = vadd.xlane.f32.xlu0 %v2178
        %v2180 = vpop.xlane.xlu0 %2179
        %v2181 = vsel %vm1860, %v2177, 0.0
        %2182 = vadd.xlane.f32.xlu0 %v2181
        %v2183 = vpop.xlane.xlu0 %2182
        %v2184 = vadd.f32 %v2180, %v1913
        %v2185 = vadd.f32 %v2183, %v1914
        %v2186 = vsub.f32 0.0, %v2184
        %v2187 = vsub.f32 0.0, %v2185
        %v2188 = vmul.f32 %v2186, 1.442695
        %v2189 = vpow.pop %v2188
        %v2190 = vmul.f32 %v2187, 1.442695
        %v2191 = vpow.pop %v2190
        %v2192 = vadd.f32 %v2189, 1.0
        %v2193 = vadd.f32 %v2191, 1.0
        %v2194 = vrcp.pop %v2192
        %v2195 = vmul.f32 1.0, %v2194
        %v2196 = vrcp.pop %v2193
        %v2197 = vmul.f32 1.0, %v2196
        %2199 = vset.pattern.permute.xlu0 0
        %2200 = vperm.xlu0 %2199, %v2195
        %v2201 = vpop.permute.xlu0 %2200
        %2204 = vset.pattern.permute.xlu0 0
        %2205 = vperm.xlu0 %2204, %v2197
        %v2206 = vpop.permute.xlu0 %2205
        %v2208 = vmul.f32 %v2201, %v1839
        %v2209 = vmul.f32 %v2201, %v1841
        %v2210 = vmul.f32 %v2206, %v1843
        %v2211 = vmul.f32 %v2206, %v1845
        %v2212 = vadd.f32 %v2121, %v2208
        %v2213 = vadd.f32 %v2122, %v2209
        %v2214 = vadd.f32 %v2123, %v2210
        %v2215 = vadd.f32 %v2124, %v2211
        %v2216 = vadd.f32 %v2212, %v1176
        %v2217 = vadd.f32 %v2213, %v1178
        %v2218 = vadd.f32 %v2214, %v1180
        %v2219 = vadd.f32 %v2215, %v1182
        %v2220 = vmax.f32 %v2216, 0.0
        %v2221 = vmax.f32 %v2217, 0.0
        %v2222 = vmax.f32 %v2218, 0.0
        %v2223 = vmax.f32 %v2219, 0.0
        %v2224 = vpack.c.bf16 %v2222, %v2220
        %v2225 = vpack.c.bf16 %v2223, %v2221
        %v2228 = vunpack.c.l.b16 %v2224
        %v2229 = vunpack.c.l.b16 %v2225
        %v2230 = vunpack.c.h.b16 %v2224
        %v2231 = vunpack.c.h.b16 %v2225
        %v2232 = vpack.c.b16 %v2229, %v2228
        %v2233 = vpack.c.b16 %v2231, %v2230
        %2236 = vst [vmem:[%s713] sm:$0xff] %v2232
        %2237 = vst [vmem:[%s713 + $0x8] sm:$0xff] %v2233
        %s2238 = sand.u32 %s367, 1
        %s2239 = scalar_lea.sflag [#allocation7], %s2238
        %s2240 = sand.u32 %s367, 1
        %s2241 = smul.addr %s2240, 16
        %s2242 = scalar_lea.vmem [#allocation29], %s2241
        // Predicated region
        $region141: #{gcm_forward.1} parent=79 // pred_check
          %p2243 = pneg %p377
        $region142: #{gcm_forward.1} parent=79 // pred_check_branch
          %2245 = sbr.rel (%p2243) target = $region144
        $region143: #{gcm_forward.1} parent=79 // pred_region
          %s2247 = ssub.s32 256, 256
          %2248 = vsyncadd %s2239, %s2247
          %s2249 = smul.addr %s39, 4
          %s2250 = smul.addr %s2249, 64
          %s2251 = scalar_lea.hbm %s15, %s2250
          %s2252 = sshll.u32 %s2242, 4
          %s2253 = int_to_ptr.vmem [resolvable:$true] %s2252
          %2258 = dma.vmem_to_hbm [thread:$0]  %s2253, 256, %s2251, %s2239, 128, 128, 8
        $region144: #{gcm_forward.1} parent=79 // pred_fallthru
          _
      $region80: #{gcm_forward.1} parent=5 // pred_fallthru
        _
      %p2259 = scmp.le.s32.totalorder 2, %s34
      // Predicated region
      $region145: #{gcm_forward.1} parent=5 // pred_check
        %p2260 = pneg %p2259
      $region146: #{gcm_forward.1} parent=5 // pred_check_branch
        %2262 = sbr.rel (%p2260) target = $region148
      $region147: #{gcm_forward.1} parent=5 // pred_region
        %s2263 = ssub.s32 %s34, 2
        // Predicated region
        $region149: #{gcm_forward.1} parent=147 // pred_check
          %p2264 = pneg %p383
        $region150: #{gcm_forward.1} parent=147 // pred_check_branch
          %2266 = sbr.rel (%p2264) target = $region152
        $region151: #{gcm_forward.1} parent=147 // pred_region
          %s2267 = sand.u32 %s368, 1
          %s2268 = scalar_lea.sflag [#allocation7], %s2267
          %s2269 = sand.u32 %s368, 1
          %s2270 = smul.addr %s2269, 16
          %s2271 = scalar_lea.vmem [#allocation29], %s2270
          %2272 = dma.done %s2268, 256
        $region152: #{gcm_forward.1} parent=147 // pred_fallthru
          _
      $region148: #{gcm_forward.1} parent=5 // pred_fallthru
        _
    $region6: #{gcm_forward.1} parent=1 // loop_footer
      %s38 = sadd.s32 1, %s34
    $region7: #{gcm_forward.1} parent=1 // loop_footer_branch
      %33 = sbr.rel target = $region3
    $region8: #{gcm_forward.1} parent=1 // loop_exit
      _
    %2273 = vsyncpa [#allocation6], 1
    %s2274 = scalar_lea.sflag [#allocation6], 1
    %2275 = vsyncpa %s2274, 1
    %2276 = vsyncpa [#allocation9], 1
    %2277 = vsyncpa [#allocation12], 1
    %2278 = vsyncpa [#allocation15], 1
    %2279 = vsyncpa [#allocation18], 1
    %2280 = vsyncpa [#allocation21], 1
    %2281 = vsyncpa [#allocation24], 1
    %2282 = vsyncpa [#allocation27], 1
    %2283 = vsyncpa [#allocation7], 1
    %s2284 = scalar_lea.sflag [#allocation7], 1
    %2285 = vsyncpa %s2284, 1

</llo_original>
